<compile_context>
chip_gen: v7x
topology: tpu7x:2x2x1
jax: 0.10.0
libtpu: 0.0.40
codegen_flags: <defaults>
</compile_context>

<pallas_src>
import functools

import jax
import jax.numpy as jnp
from jax.experimental import pallas as pl
from jax.experimental.pallas import tpu as pltpu

BN_EPS = 1e-5
LPAD = 8          # left zero-pad of the W axis (sublane-aligns the interior)


def _double_conv_kernel(x_ref, w1_ref, b1_ref, w2_ref, b2_ref, o_ref, hp_ref,
                        *, W, RS, LPAD):
    """One (batch, row-strip) step of the fused DoubleConv.

    x_ref : (H+4, W+2*LPAD, Cin)  host-padded full-height input (bf16)
    w1_ref: (3, 3*Cin, C)         layer-1 taps grouped by dy, row = dx*Cin+ci
    b1_ref: (1, C)                layer-1 folded bias (f32)
    w2_ref: (3, 3*C, C)           layer-2 taps grouped by dy, row = dx*C+ci
    b2_ref: (1, C)                layer-2 folded bias (f32)
    o_ref : (RS*W, C)             output strip (out_dtype)
    hp_ref: (RS+2, W+2*LPAD, C)   VMEM scratch: layer-1 activation + halo
    """
    s = pl.program_id(1)
    r0 = s * RS                  # first output row of this strip
    RE = RS + 2                  # strip rows + 1-row halo on each side
    X0 = LPAD - 1                # column read by the dx=0 tap
    C = o_ref.shape[-1]

    def conv3x3(src_ref, row0, n_rows, w_ref, b_ref):
        # 3 accumulating MXU matmuls (one per dy).  The dy-group patch is the
        # 3 dx-shifted slabs concatenated on the channel axis (K = 3*C_in);
        # no full 9-tap im2col is ever materialized.
        def dy_patch(dy):
            taps = [src_ref[pl.ds(row0 + dy, n_rows), pl.ds(X0 + dx, W), :]
                    for dx in range(3)]
            return jnp.concatenate(taps, axis=-1).reshape(n_rows * W, -1)

        acc = jnp.dot(dy_patch(0), w_ref[0], preferred_element_type=jnp.float32)
        for dy in (1, 2):
            acc = acc + jnp.dot(dy_patch(dy), w_ref[dy],
                                preferred_element_type=jnp.float32)
        return jnp.maximum(acc + b_ref[...], 0.0)            # f32 epilogue

    # ---- Layer 1 over the strip + 1-row halo (halo rows recomputed). ----
    y1 = conv3x3(x_ref, r0, RE, w1_ref, b1_ref)              # (RE*W, C) f32

    # Stage the activation (bf16) into the W-padded scratch; the interior
    # store starts at column LPAD, i.e. sublane-aligned.
    hp_ref[:, LPAD:LPAD + W, :] = y1.reshape(RE, W, C).astype(hp_ref.dtype)

    # Zero ONLY the halo border (the interior is fully overwritten above).
    # Re-done every step so megacore sharding of the parallel axes is safe.
    hp_ref[:, X0:X0 + 1, :] = jnp.zeros((RE, 1, C), hp_ref.dtype)
    hp_ref[:, LPAD + W:LPAD + W + 1, :] = jnp.zeros((RE, 1, C), hp_ref.dtype)

    @pl.when(s == 0)                        # top image boundary
    def _():
        hp_ref[0:1, :, :] = jnp.zeros((1, hp_ref.shape[1], C), hp_ref.dtype)

    @pl.when(s == pl.num_programs(1) - 1)   # bottom image boundary
    def _():
        hp_ref[RE - 1:RE, :, :] = jnp.zeros((1, hp_ref.shape[1], C),
                                            hp_ref.dtype)

    # ---- Layer 2 reads the strip + halo from the scratch. ----
    y2 = conv3x3(hp_ref, 0, RS, w2_ref, b2_ref)              # (RS*W, C) f32
    o_ref[...] = y2.astype(o_ref.dtype)


def _fold_bn(layer, eps=BN_EPS):
    """Fold eval-mode BatchNorm + conv bias into (w_folded, bias_folded)."""
    scale = layer["gamma"] / jnp.sqrt(layer["rvar"] + eps)           # (Cout,)
    w_f = layer["w"] * scale                                         # HWIO * O
    b_f = (layer["b"] - layer["rmean"]) * scale + layer["beta"]
    return w_f, b_f


def _pick_rows_per_strip(H, W, C, itemsize=2, budget_bytes=2 << 20):
    """Largest divisor of H whose dominant per-strip temp (~RS*W*3C bytes)
    fits the budget, preferring >=2 strips (v7x megacore / deeper pipeline)."""
    max_rs = max(1, budget_bytes // max(1, W * 3 * C * itemsize))
    best = 1
    for rs in range(1, H + 1):
        if H % rs:
            continue
        if rs > max_rs:
            break
        if H // rs >= 2 or H == 1:
            best = rs
    return best


def double_conv_nhwc(x_nhwc, layers, *, compute_dtype=jnp.bfloat16,
                     out_dtype=jnp.bfloat16):
    """Fused DoubleConv on NHWC input.  layers = two dicts of conv/BN params."""
    B, H, W, Cin = x_nhwc.shape
    C = layers[0]["w"].shape[-1]
    if W % 8:
        # TODO(synk): zero-pad W to a multiple of 8 for general widths.
        raise NotImplementedError("double_conv_nhwc requires W % 8 == 0")

    RS = _pick_rows_per_strip(H, W, C)
    S = H // RS
    Wp = W + 2 * LPAD

    (w1, b1), (w2, b2) = _fold_bn(layers[0]), _fold_bn(layers[1])
    w1p = w1.reshape(3, 3 * Cin, C).astype(compute_dtype)   # row = dx*Cin + ci
    w2p = w2.reshape(3, 3 * C, C).astype(compute_dtype)     # row = dx*C   + ci
    b1p = b1.reshape(1, C).astype(jnp.float32)
    b2p = b2.reshape(1, C).astype(jnp.float32)

    # One cheap host-side pad of the small Cin-channel input supplies the
    # whole-image halo (2 zero rows top/bottom, LPAD zero cols each side) and
    # sublane-aligns the data columns.  Fuses with the transpose + bf16 cast.
    xh = jnp.pad(x_nhwc.astype(compute_dtype),
                 ((0, 0), (2, 2), (LPAD, LPAD), (0, 0)))     # (B, H+4, Wp, Cin)

    kernel = functools.partial(_double_conv_kernel, W=W, RS=RS, LPAD=LPAD)

    out_isz = jnp.dtype(out_dtype).itemsize
    flops = 2 * B * S * 9 * ((RS + 2) * W * Cin * C + RS * W * C * C)
    bytes_accessed = (B * (H + 4) * Wp * Cin * 2
                      + (w1p.size + w2p.size) * 2 + (b1p.size + b2p.size) * 4
                      + B * H * W * C * out_isz)

    # Per-step VMEM footprint (double-buffered blocks + scratch + temporaries)
    # with 2x headroom; v5e's 16 MiB scoped default is too small for real H*W.
    step_bytes = (2 * (H + 4) * Wp * Cin * 2                 # input block x2
                  + 2 * (w1p.size + w2p.size) * 2            # weight blocks x2
                  + 2 * RS * W * C * out_isz                 # output block x2
                  + (RS + 2) * Wp * C * 2                    # hp scratch
                  + (RS + 2) * W * 3 * max(Cin, C) * 2       # dy-group patch
                  + 2 * (RS + 2) * W * C * 4)                # f32 accumulators
    vmem_limit = int(min(max(2 * step_bytes, 32 << 20), 48 << 20))

    out = pl.pallas_call(
        kernel,
        out_shape=jax.ShapeDtypeStruct((B, H * W, C), out_dtype),
        grid=(B, S),
        in_specs=[
            # Full (padded) image per batch element; resident across strips.
            pl.BlockSpec((None, H + 4, Wp, Cin), lambda b, s: (b, 0, 0, 0)),
            pl.BlockSpec((3, 3 * Cin, C), lambda b, s: (0, 0, 0)),
            pl.BlockSpec((1, C), lambda b, s: (0, 0)),
            pl.BlockSpec((3, 3 * C, C), lambda b, s: (0, 0, 0)),
            pl.BlockSpec((1, C), lambda b, s: (0, 0)),
        ],
        out_specs=pl.BlockSpec((None, RS * W, C), lambda b, s: (b, s, 0)),
        scratch_shapes=[pltpu.VMEM((RS + 2, Wp, C), compute_dtype)],
        compiler_params=pltpu.CompilerParams(
            dimension_semantics=("parallel", "parallel"),
            vmem_limit_bytes=vmem_limit),
        cost_estimate=pl.CostEstimate(
            flops=flops, transcendentals=0, bytes_accessed=bytes_accessed),
    )(xh, w1p, b1p, w2p, b2p)

    # Row-major split is free; channels are exactly Cout (no slice needed).
    return out.reshape(B, H, W, C)


def input_conv_forward(x_nchw, layers, *, compute_dtype=jnp.bfloat16,
                       out_dtype=jnp.bfloat16):
    """Pallas InputConv.forward.  Input/output are NCHW to match PyTorch."""
    x = jnp.transpose(x_nchw, (0, 2, 3, 1))      # NCHW -> NHWC
    y = double_conv_nhwc(x, layers, compute_dtype=compute_dtype,
                         out_dtype=out_dtype)
    return jnp.transpose(y, (0, 3, 1, 2))        # NHWC -> NCHW


def init_input_conv_params(key, in_channels, out_channels):
    """Deterministic params mirroring Conv2d(3x3) + fresh BatchNorm2d (x2)."""
    layers = []
    cin = in_channels
    for _ in range(2):
        key, k_w, k_b = jax.random.split(key, 3)
        bound = float(cin * 9) ** -0.5
        layers.append(dict(
            w=jax.random.uniform(k_w, (3, 3, cin, out_channels), jnp.float32,
                                 -bound, bound),                       # HWIO
            b=jax.random.uniform(k_b, (out_channels,), jnp.float32,
                                 -bound, bound),
            gamma=jnp.ones((out_channels,), jnp.float32),
            beta=jnp.zeros((out_channels,), jnp.float32),
            rmean=jnp.zeros((out_channels,), jnp.float32),
            rvar=jnp.ones((out_channels,), jnp.float32),
        ))
        cin = out_channels
    return layers


def _reference_forward(x_nchw, layers, compute_dtype):
    """Plain-JAX reference with matching numerics (folded BN, cast operands)."""
    x = jnp.transpose(x_nchw, (0, 2, 3, 1))
    for layer in layers:
        w_f, b_f = _fold_bn(layer)
        y = jax.lax.conv_general_dilated(
            x.astype(compute_dtype), w_f.astype(compute_dtype),
            window_strides=(1, 1), padding="SAME",
            dimension_numbers=("NHWC", "HWIO", "NHWC"),
            preferred_element_type=jnp.float32)
        x = jnp.maximum(y + b_f, 0.0)
    return jnp.transpose(x, (0, 3, 1, 2))


if __name__ == "__main__":
    key = jax.random.PRNGKey(0)
    k_x, k_p = jax.random.split(key)

    B, Cin, Cout, H, W = 2, 4, 8, 16, 16
    x = jax.random.normal(k_x, (B, Cin, H, W), jnp.float32)   # NCHW like PyTorch
    layers = init_input_conv_params(k_p, Cin, Cout)

    fwd = jax.jit(input_conv_forward)
    out = jax.block_until_ready(fwd(x, layers))
    assert out.shape == (B, Cout, H, W)
    out_f32 = out.astype(jnp.float32)

    # Reference mirroring the kernel numerics (bf16 operands, f32 accum).
    ref_bf16 = _reference_forward(x, layers, jnp.bfloat16)
    assert float(jnp.max(jnp.abs(out_f32 - ref_bf16))) < 3e-2

    # Loose check against full-f32 module semantics (bf16 compute + bf16 out).
    ref_f32 = _reference_forward(x, layers, jnp.float32)
    assert float(jnp.max(jnp.abs(out_f32 - ref_f32))) < 1e-1

    print("KERNEL_OK")
</pallas_src>

<mosaic_0001>
module attributes {stable_mosaic.version = 11 : i64} {
  func.func @_double_conv_kernel(%arg0: i32, %arg1: i32, %arg2: memref<1x20x32x4xbf16, #tpu.memory_space<vmem>>, %arg3: memref<3x12x8xbf16, #tpu.memory_space<vmem>>, %arg4: memref<1x8xf32, #tpu.memory_space<vmem>>, %arg5: memref<3x24x8xbf16, #tpu.memory_space<vmem>>, %arg6: memref<1x8xf32, #tpu.memory_space<vmem>>, %arg7: memref<1x128x8xbf16, #tpu.memory_space<vmem>>, %arg8: memref<10x32x8xbf16, #tpu.memory_space<vmem>>) attributes {dimension_semantics = [#tpu.dimension_semantics<parallel>, #tpu.dimension_semantics<parallel>], iteration_bounds = array<i64: 2, 2>, scalar_prefetch = 0 : i64, scratch_operands = 1 : i64, tpu.core_type = #tpu.core_type<tc>, window_params = [{transform_indices = @transform_0, window_bounds = array<i64: 1, 20, 32, 4>}, {pipeline_mode = #tpu.pipeline_mode<synchronous>, transform_indices = @transform_1, window_bounds = array<i64: 3, 12, 8>}, {pipeline_mode = #tpu.pipeline_mode<synchronous>, transform_indices = @transform_2, window_bounds = array<i64: 1, 8>}, {pipeline_mode = #tpu.pipeline_mode<synchronous>, transform_indices = @transform_3, window_bounds = array<i64: 3, 24, 8>}, {pipeline_mode = #tpu.pipeline_mode<synchronous>, transform_indices = @transform_4, window_bounds = array<i64: 1, 8>}, {transform_indices = @transform_5, window_bounds = array<i64: 1, 128, 8>}]} {
    %c8_i32 = arith.constant 8 : i32
    %0 = arith.muli %arg1, %c8_i32 : i32
    %c0_i32 = arith.constant 0 : i32
    %1 = arith.addi %0, %c0_i32 : i32
    %c0 = arith.constant 0 : index
    %2 = arith.index_cast %1 : i32 to index
    %c7 = arith.constant 7 : index
    %c0_0 = arith.constant 0 : index
    %3 = vector.load %arg2[%c0, %2, %c7, %c0_0] : memref<1x20x32x4xbf16, #tpu.memory_space<vmem>>, vector<1x10x16x4xbf16>
    %4 = vector.shape_cast %3 : vector<1x10x16x4xbf16> to vector<10x16x4xbf16>
    %c0_i32_1 = arith.constant 0 : i32
    %5 = arith.addi %0, %c0_i32_1 : i32
    %c0_2 = arith.constant 0 : index
    %6 = arith.index_cast %5 : i32 to index
    %c8 = arith.constant 8 : index
    %c0_3 = arith.constant 0 : index
    %7 = vector.load %arg2[%c0_2, %6, %c8, %c0_3] : memref<1x20x32x4xbf16, #tpu.memory_space<vmem>>, vector<1x10x16x4xbf16>
    %8 = vector.shape_cast %7 : vector<1x10x16x4xbf16> to vector<10x16x4xbf16>
    %c0_i32_4 = arith.constant 0 : i32
    %9 = arith.addi %0, %c0_i32_4 : i32
    %c0_5 = arith.constant 0 : index
    %10 = arith.index_cast %9 : i32 to index
    %c9 = arith.constant 9 : index
    %c0_6 = arith.constant 0 : index
    %11 = vector.load %arg2[%c0_5, %10, %c9, %c0_6] : memref<1x20x32x4xbf16, #tpu.memory_space<vmem>>, vector<1x10x16x4xbf16>
    %12 = vector.shape_cast %11 : vector<1x10x16x4xbf16> to vector<10x16x4xbf16>
    %13 = tpu.concatenate %4, %8, %12 in 2 : vector<10x16x4xbf16>, vector<10x16x4xbf16>, vector<10x16x4xbf16> -> vector<10x16x12xbf16>
    %14 = vector.shape_cast %13 : vector<10x16x12xbf16> to vector<160x12xbf16>
    %c0_7 = arith.constant 0 : index
    %c0_8 = arith.constant 0 : index
    %c0_9 = arith.constant 0 : index
    %15 = vector.load %arg3[%c0_7, %c0_8, %c0_9] : memref<3x12x8xbf16, #tpu.memory_space<vmem>>, vector<1x12x8xbf16>
    %16 = vector.shape_cast %15 : vector<1x12x8xbf16> to vector<12x8xbf16>
    %cst = arith.constant dense<0.000000e+00> : vector<160x8xf32>
    %17 = tpu.matmul %14, %16, %cst {dimension_numbers = #tpu.dot_dimension_numbers<[1], [0], [0], [1], [0, 0, 1, 1], [], []>} : vector<160x12xbf16>, vector<12x8xbf16>, vector<160x8xf32> -> vector<160x8xf32>
    %c1_i32 = arith.constant 1 : i32
    %18 = arith.addi %0, %c1_i32 : i32
    %c0_10 = arith.constant 0 : index
    %19 = arith.index_cast %18 : i32 to index
    %c7_11 = arith.constant 7 : index
    %c0_12 = arith.constant 0 : index
    %20 = vector.load %arg2[%c0_10, %19, %c7_11, %c0_12] : memref<1x20x32x4xbf16, #tpu.memory_space<vmem>>, vector<1x10x16x4xbf16>
    %21 = vector.shape_cast %20 : vector<1x10x16x4xbf16> to vector<10x16x4xbf16>
    %c1_i32_13 = arith.constant 1 : i32
    %22 = arith.addi %0, %c1_i32_13 : i32
    %c0_14 = arith.constant 0 : index
    %23 = arith.index_cast %22 : i32 to index
    %c8_15 = arith.constant 8 : index
    %c0_16 = arith.constant 0 : index
    %24 = vector.load %arg2[%c0_14, %23, %c8_15, %c0_16] : memref<1x20x32x4xbf16, #tpu.memory_space<vmem>>, vector<1x10x16x4xbf16>
    %25 = vector.shape_cast %24 : vector<1x10x16x4xbf16> to vector<10x16x4xbf16>
    %c1_i32_17 = arith.constant 1 : i32
    %26 = arith.addi %0, %c1_i32_17 : i32
    %c0_18 = arith.constant 0 : index
    %27 = arith.index_cast %26 : i32 to index
    %c9_19 = arith.constant 9 : index
    %c0_20 = arith.constant 0 : index
    %28 = vector.load %arg2[%c0_18, %27, %c9_19, %c0_20] : memref<1x20x32x4xbf16, #tpu.memory_space<vmem>>, vector<1x10x16x4xbf16>
    %29 = vector.shape_cast %28 : vector<1x10x16x4xbf16> to vector<10x16x4xbf16>
    %30 = tpu.concatenate %21, %25, %29 in 2 : vector<10x16x4xbf16>, vector<10x16x4xbf16>, vector<10x16x4xbf16> -> vector<10x16x12xbf16>
    %31 = vector.shape_cast %30 : vector<10x16x12xbf16> to vector<160x12xbf16>
    %c1 = arith.constant 1 : index
    %c0_21 = arith.constant 0 : index
    %c0_22 = arith.constant 0 : index
    %32 = vector.load %arg3[%c1, %c0_21, %c0_22] : memref<3x12x8xbf16, #tpu.memory_space<vmem>>, vector<1x12x8xbf16>
    %33 = vector.shape_cast %32 : vector<1x12x8xbf16> to vector<12x8xbf16>
    %cst_23 = arith.constant dense<0.000000e+00> : vector<160x8xf32>
    %34 = tpu.matmul %31, %33, %cst_23 {dimension_numbers = #tpu.dot_dimension_numbers<[1], [0], [0], [1], [0, 0, 1, 1], [], []>} : vector<160x12xbf16>, vector<12x8xbf16>, vector<160x8xf32> -> vector<160x8xf32>
    %35 = arith.addf %17, %34 : vector<160x8xf32>
    %c2_i32 = arith.constant 2 : i32
    %36 = arith.addi %0, %c2_i32 : i32
    %c0_24 = arith.constant 0 : index
    %37 = arith.index_cast %36 : i32 to index
    %c7_25 = arith.constant 7 : index
    %c0_26 = arith.constant 0 : index
    %38 = vector.load %arg2[%c0_24, %37, %c7_25, %c0_26] : memref<1x20x32x4xbf16, #tpu.memory_space<vmem>>, vector<1x10x16x4xbf16>
    %39 = vector.shape_cast %38 : vector<1x10x16x4xbf16> to vector<10x16x4xbf16>
    %c2_i32_27 = arith.constant 2 : i32
    %40 = arith.addi %0, %c2_i32_27 : i32
    %c0_28 = arith.constant 0 : index
    %41 = arith.index_cast %40 : i32 to index
    %c8_29 = arith.constant 8 : index
    %c0_30 = arith.constant 0 : index
    %42 = vector.load %arg2[%c0_28, %41, %c8_29, %c0_30] : memref<1x20x32x4xbf16, #tpu.memory_space<vmem>>, vector<1x10x16x4xbf16>
    %43 = vector.shape_cast %42 : vector<1x10x16x4xbf16> to vector<10x16x4xbf16>
    %c2_i32_31 = arith.constant 2 : i32
    %44 = arith.addi %0, %c2_i32_31 : i32
    %c0_32 = arith.constant 0 : index
    %45 = arith.index_cast %44 : i32 to index
    %c9_33 = arith.constant 9 : index
    %c0_34 = arith.constant 0 : index
    %46 = vector.load %arg2[%c0_32, %45, %c9_33, %c0_34] : memref<1x20x32x4xbf16, #tpu.memory_space<vmem>>, vector<1x10x16x4xbf16>
    %47 = vector.shape_cast %46 : vector<1x10x16x4xbf16> to vector<10x16x4xbf16>
    %48 = tpu.concatenate %39, %43, %47 in 2 : vector<10x16x4xbf16>, vector<10x16x4xbf16>, vector<10x16x4xbf16> -> vector<10x16x12xbf16>
    %49 = vector.shape_cast %48 : vector<10x16x12xbf16> to vector<160x12xbf16>
    %c2 = arith.constant 2 : index
    %c0_35 = arith.constant 0 : index
    %c0_36 = arith.constant 0 : index
    %50 = vector.load %arg3[%c2, %c0_35, %c0_36] : memref<3x12x8xbf16, #tpu.memory_space<vmem>>, vector<1x12x8xbf16>
    %51 = vector.shape_cast %50 : vector<1x12x8xbf16> to vector<12x8xbf16>
    %cst_37 = arith.constant dense<0.000000e+00> : vector<160x8xf32>
    %52 = tpu.matmul %49, %51, %cst_37 {dimension_numbers = #tpu.dot_dimension_numbers<[1], [0], [0], [1], [0, 0, 1, 1], [], []>} : vector<160x12xbf16>, vector<12x8xbf16>, vector<160x8xf32> -> vector<160x8xf32>
    %53 = arith.addf %35, %52 : vector<160x8xf32>
    %c0_38 = arith.constant 0 : index
    %c0_39 = arith.constant 0 : index
    %54 = vector.load %arg4[%c0_38, %c0_39] : memref<1x8xf32, #tpu.memory_space<vmem>>, vector<1x8xf32>
    %55 = vector.broadcast %54 : vector<1x8xf32> to vector<160x8xf32>
    %56 = arith.addf %53, %55 : vector<160x8xf32>
    %cst_40 = arith.constant 0.000000e+00 : f32
    %57 = vector.broadcast %cst_40 : f32 to vector<160x8xf32>
    %58 = arith.maximumf %56, %57 : vector<160x8xf32>
    %59 = vector.shape_cast %58 : vector<160x8xf32> to vector<10x16x8xf32>
    %60 = arith.truncf %59 : vector<10x16x8xf32> to vector<10x16x8xbf16>
    %c0_41 = arith.constant 0 : index
    %c8_42 = arith.constant 8 : index
    %c0_43 = arith.constant 0 : index
    %61 = vector.load %arg8[%c0_41, %c8_42, %c0_43] : memref<10x32x8xbf16, #tpu.memory_space<vmem>>, vector<10x16x8xbf16>
    tpu.vector_store %arg8[%c0_41, %c8_42, %c0_43], %60 {strides = array<i32>} : memref<10x32x8xbf16, #tpu.memory_space<vmem>>, vector<10x16x8xbf16>,
    %cst_44 = arith.constant 0.000000e+00 : bf16
    %62 = vector.broadcast %cst_44 : bf16 to vector<10x1x8xbf16>
    %c0_45 = arith.constant 0 : index
    %c7_46 = arith.constant 7 : index
    %c0_47 = arith.constant 0 : index
    %63 = vector.load %arg8[%c0_45, %c7_46, %c0_47] : memref<10x32x8xbf16, #tpu.memory_space<vmem>>, vector<10x1x8xbf16>
    tpu.vector_store %arg8[%c0_45, %c7_46, %c0_47], %62 {strides = array<i32>} : memref<10x32x8xbf16, #tpu.memory_space<vmem>>, vector<10x1x8xbf16>,
    %cst_48 = arith.constant 0.000000e+00 : bf16
    %64 = vector.broadcast %cst_48 : bf16 to vector<10x1x8xbf16>
    %c0_49 = arith.constant 0 : index
    %c24 = arith.constant 24 : index
    %c0_50 = arith.constant 0 : index
    %65 = vector.load %arg8[%c0_49, %c24, %c0_50] : memref<10x32x8xbf16, #tpu.memory_space<vmem>>, vector<10x1x8xbf16>
    tpu.vector_store %arg8[%c0_49, %c24, %c0_50], %64 {strides = array<i32>} : memref<10x32x8xbf16, #tpu.memory_space<vmem>>, vector<10x1x8xbf16>,
    %c0_i32_51 = arith.constant 0 : i32
    %66 = arith.cmpi eq, %arg1, %c0_i32_51 : i32
    %67 = arith.extui %66 : i1 to i32
    %c0_i32_52 = arith.constant 0 : i32
    %68 = arith.cmpi ne, %67, %c0_i32_52 : i32
    scf.if %68 {
      %cst_100 = arith.constant 0.000000e+00 : bf16
      %107 = vector.broadcast %cst_100 : bf16 to vector<1x32x8xbf16>
      %c0_101 = arith.constant 0 : index
      %c0_102 = arith.constant 0 : index
      %c0_103 = arith.constant 0 : index
      %108 = vector.load %arg8[%c0_101, %c0_102, %c0_103] : memref<10x32x8xbf16, #tpu.memory_space<vmem>>, vector<1x32x8xbf16>
      tpu.vector_store %arg8[%c0_101, %c0_102, %c0_103], %107 {strides = array<i32>} : memref<10x32x8xbf16, #tpu.memory_space<vmem>>, vector<1x32x8xbf16>,
    } else {
    }
    %c1_i32_53 = arith.constant 1 : i32
    %69 = arith.cmpi eq, %arg1, %c1_i32_53 : i32
    %70 = arith.extui %69 : i1 to i32
    %c0_i32_54 = arith.constant 0 : i32
    %71 = arith.cmpi ne, %70, %c0_i32_54 : i32
    scf.if %71 {
      %cst_100 = arith.constant 0.000000e+00 : bf16
      %107 = vector.broadcast %cst_100 : bf16 to vector<1x32x8xbf16>
      %c9_101 = arith.constant 9 : index
      %c0_102 = arith.constant 0 : index
      %c0_103 = arith.constant 0 : index
      %108 = vector.load %arg8[%c9_101, %c0_102, %c0_103] : memref<10x32x8xbf16, #tpu.memory_space<vmem>>, vector<1x32x8xbf16>
      tpu.vector_store %arg8[%c9_101, %c0_102, %c0_103], %107 {strides = array<i32>} : memref<10x32x8xbf16, #tpu.memory_space<vmem>>, vector<1x32x8xbf16>,
    } else {
    }
    %c0_55 = arith.constant 0 : index
    %c7_56 = arith.constant 7 : index
    %c0_57 = arith.constant 0 : index
    %72 = vector.load %arg8[%c0_55, %c7_56, %c0_57] : memref<10x32x8xbf16, #tpu.memory_space<vmem>>, vector<8x16x8xbf16>
    %c0_58 = arith.constant 0 : index
    %c8_59 = arith.constant 8 : index
    %c0_60 = arith.constant 0 : index
    %73 = vector.load %arg8[%c0_58, %c8_59, %c0_60] : memref<10x32x8xbf16, #tpu.memory_space<vmem>>, vector<8x16x8xbf16>
    %c0_61 = arith.constant 0 : index
    %c9_62 = arith.constant 9 : index
    %c0_63 = arith.constant 0 : index
    %74 = vector.load %arg8[%c0_61, %c9_62, %c0_63] : memref<10x32x8xbf16, #tpu.memory_space<vmem>>, vector<8x16x8xbf16>
    %75 = tpu.concatenate %72, %73, %74 in 2 : vector<8x16x8xbf16>, vector<8x16x8xbf16>, vector<8x16x8xbf16> -> vector<8x16x24xbf16>
    %76 = vector.shape_cast %75 : vector<8x16x24xbf16> to vector<128x24xbf16>
    %c0_64 = arith.constant 0 : index
    %c0_65 = arith.constant 0 : index
    %c0_66 = arith.constant 0 : index
    %77 = vector.load %arg5[%c0_64, %c0_65, %c0_66] : memref<3x24x8xbf16, #tpu.memory_space<vmem>>, vector<1x24x8xbf16>
    %78 = vector.shape_cast %77 : vector<1x24x8xbf16> to vector<24x8xbf16>
    %cst_67 = arith.constant dense<0.000000e+00> : vector<128x8xf32>
    %79 = tpu.matmul %76, %78, %cst_67 {dimension_numbers = #tpu.dot_dimension_numbers<[1], [0], [0], [1], [0, 0, 1, 1], [], []>} : vector<128x24xbf16>, vector<24x8xbf16>, vector<128x8xf32> -> vector<128x8xf32>
    %c1_68 = arith.constant 1 : index
    %c7_69 = arith.constant 7 : index
    %c0_70 = arith.constant 0 : index
    %80 = vector.load %arg8[%c1_68, %c7_69, %c0_70] : memref<10x32x8xbf16, #tpu.memory_space<vmem>>, vector<8x16x8xbf16>
    %c1_71 = arith.constant 1 : index
    %c8_72 = arith.constant 8 : index
    %c0_73 = arith.constant 0 : index
    %81 = vector.load %arg8[%c1_71, %c8_72, %c0_73] : memref<10x32x8xbf16, #tpu.memory_space<vmem>>, vector<8x16x8xbf16>
    %c1_74 = arith.constant 1 : index
    %c9_75 = arith.constant 9 : index
    %c0_76 = arith.constant 0 : index
    %82 = vector.load %arg8[%c1_74, %c9_75, %c0_76] : memref<10x32x8xbf16, #tpu.memory_space<vmem>>, vector<8x16x8xbf16>
    %83 = tpu.concatenate %80, %81, %82 in 2 : vector<8x16x8xbf16>, vector<8x16x8xbf16>, vector<8x16x8xbf16> -> vector<8x16x24xbf16>
    %84 = vector.shape_cast %83 : vector<8x16x24xbf16> to vector<128x24xbf16>
    %c1_77 = arith.constant 1 : index
    %c0_78 = arith.constant 0 : index
    %c0_79 = arith.constant 0 : index
    %85 = vector.load %arg5[%c1_77, %c0_78, %c0_79] : memref<3x24x8xbf16, #tpu.memory_space<vmem>>, vector<1x24x8xbf16>
    %86 = vector.shape_cast %85 : vector<1x24x8xbf16> to vector<24x8xbf16>
    %cst_80 = arith.constant dense<0.000000e+00> : vector<128x8xf32>
    %87 = tpu.matmul %84, %86, %cst_80 {dimension_numbers = #tpu.dot_dimension_numbers<[1], [0], [0], [1], [0, 0, 1, 1], [], []>} : vector<128x24xbf16>, vector<24x8xbf16>, vector<128x8xf32> -> vector<128x8xf32>
    %88 = arith.addf %79, %87 : vector<128x8xf32>
    %c2_81 = arith.constant 2 : index
    %c7_82 = arith.constant 7 : index
    %c0_83 = arith.constant 0 : index
    %89 = vector.load %arg8[%c2_81, %c7_82, %c0_83] : memref<10x32x8xbf16, #tpu.memory_space<vmem>>, vector<8x16x8xbf16>
    %c2_84 = arith.constant 2 : index
    %c8_85 = arith.constant 8 : index
    %c0_86 = arith.constant 0 : index
    %90 = vector.load %arg8[%c2_84, %c8_85, %c0_86] : memref<10x32x8xbf16, #tpu.memory_space<vmem>>, vector<8x16x8xbf16>
    %c2_87 = arith.constant 2 : index
    %c9_88 = arith.constant 9 : index
    %c0_89 = arith.constant 0 : index
    %91 = vector.load %arg8[%c2_87, %c9_88, %c0_89] : memref<10x32x8xbf16, #tpu.memory_space<vmem>>, vector<8x16x8xbf16>
    %92 = tpu.concatenate %89, %90, %91 in 2 : vector<8x16x8xbf16>, vector<8x16x8xbf16>, vector<8x16x8xbf16> -> vector<8x16x24xbf16>
    %93 = vector.shape_cast %92 : vector<8x16x24xbf16> to vector<128x24xbf16>
    %c2_90 = arith.constant 2 : index
    %c0_91 = arith.constant 0 : index
    %c0_92 = arith.constant 0 : index
    %94 = vector.load %arg5[%c2_90, %c0_91, %c0_92] : memref<3x24x8xbf16, #tpu.memory_space<vmem>>, vector<1x24x8xbf16>
    %95 = vector.shape_cast %94 : vector<1x24x8xbf16> to vector<24x8xbf16>
    %cst_93 = arith.constant dense<0.000000e+00> : vector<128x8xf32>
    %96 = tpu.matmul %93, %95, %cst_93 {dimension_numbers = #tpu.dot_dimension_numbers<[1], [0], [0], [1], [0, 0, 1, 1], [], []>} : vector<128x24xbf16>, vector<24x8xbf16>, vector<128x8xf32> -> vector<128x8xf32>
    %97 = arith.addf %88, %96 : vector<128x8xf32>
    %c0_94 = arith.constant 0 : index
    %c0_95 = arith.constant 0 : index
    %98 = vector.load %arg6[%c0_94, %c0_95] : memref<1x8xf32, #tpu.memory_space<vmem>>, vector<1x8xf32>
    %99 = vector.broadcast %98 : vector<1x8xf32> to vector<128x8xf32>
    %100 = arith.addf %97, %99 : vector<128x8xf32>
    %cst_96 = arith.constant 0.000000e+00 : f32
    %101 = vector.broadcast %cst_96 : f32 to vector<128x8xf32>
    %102 = arith.maximumf %100, %101 : vector<128x8xf32>
    %103 = arith.truncf %102 : vector<128x8xf32> to vector<128x8xbf16>
    %c0_97 = arith.constant 0 : index
    %c0_98 = arith.constant 0 : index
    %c0_99 = arith.constant 0 : index
    %104 = vector.load %arg7[%c0_97, %c0_98, %c0_99] : memref<1x128x8xbf16, #tpu.memory_space<vmem>>, vector<1x128x8xbf16>
    %105 = vector.shape_cast %104 : vector<1x128x8xbf16> to vector<128x8xbf16>
    %106 = vector.shape_cast %103 : vector<128x8xbf16> to vector<1x128x8xbf16>
    tpu.vector_store %arg7[%c0_97, %c0_98, %c0_99], %106 {strides = array<i32>} : memref<1x128x8xbf16, #tpu.memory_space<vmem>>, vector<1x128x8xbf16>,
    return
  }
  func.func @transform_0(%arg0: i32, %arg1: i32) -> (i32, i32, i32, i32) {
    %c0_i32 = arith.constant 0 : i32
    %c0_i32_0 = arith.constant 0 : i32
    %c0_i32_1 = arith.constant 0 : i32
    %c0_i32_2 = arith.constant 0 : i32
    return %arg0, %c0_i32, %c0_i32_0, %c0_i32_1 : i32, i32, i32, i32
  }
  func.func @transform_1(%arg0: i32, %arg1: i32) -> (i32, i32, i32) {
    %c0_i32 = arith.constant 0 : i32
    %c0_i32_0 = arith.constant 0 : i32
    %c0_i32_1 = arith.constant 0 : i32
    %c0_i32_2 = arith.constant 0 : i32
    return %c0_i32, %c0_i32_0, %c0_i32_1 : i32, i32, i32
  }
  func.func @transform_2(%arg0: i32, %arg1: i32) -> (i32, i32) {
    %c0_i32 = arith.constant 0 : i32
    %c0_i32_0 = arith.constant 0 : i32
    %c0_i32_1 = arith.constant 0 : i32
    return %c0_i32, %c0_i32_0 : i32, i32
  }
  func.func @transform_3(%arg0: i32, %arg1: i32) -> (i32, i32, i32) {
    %c0_i32 = arith.constant 0 : i32
    %c0_i32_0 = arith.constant 0 : i32
    %c0_i32_1 = arith.constant 0 : i32
    %c0_i32_2 = arith.constant 0 : i32
    return %c0_i32, %c0_i32_0, %c0_i32_1 : i32, i32, i32
  }
  func.func @transform_4(%arg0: i32, %arg1: i32) -> (i32, i32) {
    %c0_i32 = arith.constant 0 : i32
    %c0_i32_0 = arith.constant 0 : i32
    %c0_i32_1 = arith.constant 0 : i32
    return %c0_i32, %c0_i32_0 : i32, i32
  }
  func.func @transform_5(%arg0: i32, %arg1: i32) -> (i32, i32, i32) {
    %c0_i32 = arith.constant 0 : i32
    %c0_i32_0 = arith.constant 0 : i32
    return %arg0, %arg1, %c0_i32 : i32, i32, i32
  }
}

</mosaic_0001>

<llo_original>
// kernel: input_conv_forward.1
$region0: #{input_conv_forward.1}
  #allocation0 [shape = 'u32[]', space=smem, size = 0x4, offset = 0x4, fixed_abs, tag = 'smem constant byte address 0x4 - core index']
  #allocation1 [shape = 'u32[144,128]{1,0:T(1,128)}', space=vmem, size = 0x12000, scoped, tag = 'internal scratch']
  #allocation2 [shape = 'bf16[10,32,8]{2,1,0:T(16,128)(2,1)}', space=vmem, size = 0x14000, scoped, tag = 'scratch operand']
  %s0 = inlined_call_operand.vmem [shape: bf16[2,20,32,4], index: 0, kind: input, shape index: {}]
  %s1 = inlined_call_operand.vmem [shape: bf16[3,12,8], index: 1, kind: input, shape index: {}]
  %s2 = inlined_call_operand.vmem [shape: f32[1,8], index: 2, kind: input, shape index: {}]
  %s3 = inlined_call_operand.vmem [shape: bf16[3,24,8], index: 3, kind: input, shape index: {}]
  %s4 = inlined_call_operand.vmem [shape: f32[1,8], index: 4, kind: input, shape index: {}]
  %s5 = inlined_call_operand.vmem [shape: bf16[2,256,8], index: 5, kind: output, shape index: {}]
  %s6 = sld [smem:[#allocation0]]
  $region61: #{input_conv_forward.1} parent=0
    _
  %s8 = ssub.s32 1, %s6
  %s9 = scalar_select 0, %s8, %s6
  loop: start=0, step=1, limit=6
  $region2: #{input_conv_forward.1} parent=0 // loop_pre_header
    _
  $region3: #{input_conv_forward.1} parent=0 // loop_header
    %s11 = sphi 0, %s15
    %p12 = scmp.ge.s32.totalorder %s11, 6
    %s18 = sphi 0, %s30
    %s19 = sphi 0, %s26
    %s20 = sphi 0, %s18
    %s21 = sphi 0, %s19
    %s22 = sphi 0, %s20
    %s23 = sphi 0, %s21
    %s33 = sphi 0, %s35
    %s36 = sphi 0, %s33
    %s37 = sphi 0, %s36
    %s53 = sphi 0, %s37
    %s57 = sphi 0, %s57
    %s59 = sphi 0, %s57
    %s60 = sphi 0, %s59
    %s74 = sphi 0, %s60
    %s78 = sphi 0, %s78
    %s80 = sphi 0, %s78
    %s81 = sphi 0, %s80
    %s95 = sphi 0, %s81
    %s99 = sphi 0, %s99
    %s101 = sphi 0, %s99
    %s102 = sphi 0, %s101
    %s116 = sphi 0, %s102
    %s120 = sphi 0, %s120
    %s122 = sphi 0, %s120
    %s123 = sphi 0, %s122
    %s137 = sphi 0, %s123
    %s145 = sphi 0, %s147
    %s148 = sphi 0, %s145
    %s149 = sphi 0, %s148
    %s165 = sphi 0, %s149
  $region4: #{input_conv_forward.1} parent=0 // loop_header_branch
    %14 = sbr.rel (%p12) target = $region8
  $region5: #{input_conv_forward.1} parent=0 // loop_body
    %s16 = ssub.s32 %s11, 1
    %s17 = ssub.s32 %s11, 2
    %s24 = sadd.s32 1, %s19
    %p25 = scmp.ge.s32.totalorder %s24, 2
    %s26 = scalar_select %p25, 0, %s24
    %s27 = sadd.s32 1, %s18
    %s28 = scalar_select %p25, %s27, %s18
    %p29 = scmp.ge.s32.totalorder %s28, 2
    %s30 = scalar_select %p29, 0, %s28
    %s31 = ssub.s32 %s18, %s30
    %p32 = scmp.eq.s32.totalorder %s31, 0
    %s34 = sadd.s32 %s33, 1
    %s35 = scalar_select %p32, %s33, %s34
    %p38 = pneg %p32
    %p39 = scmp.eq.s32.totalorder %s11, 3
    %p40 = por %p38, %p39
    %p41 = scmp.ne.s32.totalorder %s33, %s36
    %p42 = scmp.eq.s32.totalorder %s11, 0
    %p43 = por %p41, %p42
    %p44 = scmp.ne.s32.totalorder %s33, %s36
    %p45 = scmp.eq.s32.totalorder %s16, 3
    %p46 = por %p44, %p45
    %p47 = scmp.ne.s32.totalorder %s36, %s37
    %p48 = scmp.eq.s32.totalorder %s16, 0
    %p49 = por %p47, %p48
    %p50 = scmp.ne.s32.totalorder %s36, %s37
    %p51 = scmp.eq.s32.totalorder %s17, 3
    %p52 = por %p50, %p51
    %p54 = scmp.ne.s32.totalorder %s37, %s53
    %p55 = scmp.eq.s32.totalorder %s17, 0
    %p56 = por %p54, %p55
    %s58 = sadd.s32 %s57, 1
    %p61 = scmp.eq.s32.totalorder %s11, 3
    %p62 = scmp.ne.s32.totalorder %s57, %s59
    %p63 = scmp.eq.s32.totalorder %s11, 0
    %p64 = por %p62, %p63
    %p65 = scmp.ne.s32.totalorder %s57, %s59
    %p66 = scmp.eq.s32.totalorder %s16, 3
    %p67 = por %p65, %p66
    %p68 = scmp.ne.s32.totalorder %s59, %s60
    %p69 = scmp.eq.s32.totalorder %s16, 0
    %p70 = por %p68, %p69
    %p71 = scmp.ne.s32.totalorder %s59, %s60
    %p72 = scmp.eq.s32.totalorder %s17, 3
    %p73 = por %p71, %p72
    %p75 = scmp.ne.s32.totalorder %s60, %s74
    %p76 = scmp.eq.s32.totalorder %s17, 0
    %p77 = por %p75, %p76
    %s79 = sadd.s32 %s78, 1
    %p82 = scmp.eq.s32.totalorder %s11, 3
    %p83 = scmp.ne.s32.totalorder %s78, %s80
    %p84 = scmp.eq.s32.totalorder %s11, 0
    %p85 = por %p83, %p84
    %p86 = scmp.ne.s32.totalorder %s78, %s80
    %p87 = scmp.eq.s32.totalorder %s16, 3
    %p88 = por %p86, %p87
    %p89 = scmp.ne.s32.totalorder %s80, %s81
    %p90 = scmp.eq.s32.totalorder %s16, 0
    %p91 = por %p89, %p90
    %p92 = scmp.ne.s32.totalorder %s80, %s81
    %p93 = scmp.eq.s32.totalorder %s17, 3
    %p94 = por %p92, %p93
    %p96 = scmp.ne.s32.totalorder %s81, %s95
    %p97 = scmp.eq.s32.totalorder %s17, 0
    %p98 = por %p96, %p97
    %s100 = sadd.s32 %s99, 1
    %p103 = scmp.eq.s32.totalorder %s11, 3
    %p104 = scmp.ne.s32.totalorder %s99, %s101
    %p105 = scmp.eq.s32.totalorder %s11, 0
    %p106 = por %p104, %p105
    %p107 = scmp.ne.s32.totalorder %s99, %s101
    %p108 = scmp.eq.s32.totalorder %s16, 3
    %p109 = por %p107, %p108
    %p110 = scmp.ne.s32.totalorder %s101, %s102
    %p111 = scmp.eq.s32.totalorder %s16, 0
    %p112 = por %p110, %p111
    %p113 = scmp.ne.s32.totalorder %s101, %s102
    %p114 = scmp.eq.s32.totalorder %s17, 3
    %p115 = por %p113, %p114
    %p117 = scmp.ne.s32.totalorder %s102, %s116
    %p118 = scmp.eq.s32.totalorder %s17, 0
    %p119 = por %p117, %p118
    %s121 = sadd.s32 %s120, 1
    %p124 = scmp.eq.s32.totalorder %s11, 3
    %p125 = scmp.ne.s32.totalorder %s120, %s122
    %p126 = scmp.eq.s32.totalorder %s11, 0
    %p127 = por %p125, %p126
    %p128 = scmp.ne.s32.totalorder %s120, %s122
    %p129 = scmp.eq.s32.totalorder %s16, 3
    %p130 = por %p128, %p129
    %p131 = scmp.ne.s32.totalorder %s122, %s123
    %p132 = scmp.eq.s32.totalorder %s16, 0
    %p133 = por %p131, %p132
    %p134 = scmp.ne.s32.totalorder %s122, %s123
    %p135 = scmp.eq.s32.totalorder %s17, 3
    %p136 = por %p134, %p135
    %p138 = scmp.ne.s32.totalorder %s123, %s137
    %p139 = scmp.eq.s32.totalorder %s17, 0
    %p140 = por %p138, %p139
    %s141 = ssub.s32 %s18, %s30
    %s142 = ssub.s32 %s19, %s26
    %s143 = sor.u32 %s141, %s142
    %p144 = scmp.eq.s32.totalorder %s143, 0
    %s146 = sadd.s32 %s145, 1
    %s147 = scalar_select %p144, %s145, %s146
    %p150 = pneg %p144
    %p151 = scmp.eq.s32.totalorder %s11, 3
    %p152 = por %p150, %p151
    %p153 = scmp.ne.s32.totalorder %s145, %s148
    %p154 = scmp.eq.s32.totalorder %s11, 0
    %p155 = por %p153, %p154
    %p156 = scmp.ne.s32.totalorder %s145, %s148
    %p157 = scmp.eq.s32.totalorder %s16, 3
    %p158 = por %p156, %p157
    %p159 = scmp.ne.s32.totalorder %s148, %s149
    %p160 = scmp.eq.s32.totalorder %s16, 0
    %p161 = por %p159, %p160
    %p162 = scmp.ne.s32.totalorder %s148, %s149
    %p163 = scmp.eq.s32.totalorder %s17, 3
    %p164 = por %p162, %p163
    %p166 = scmp.ne.s32.totalorder %s149, %s165
    %p167 = scmp.eq.s32.totalorder %s17, 0
    %p168 = por %p166, %p167
    %p169 = scmp.le.s32.totalorder 1, %s11
    %p170 = scmp.lt.s32.totalorder %s11, 5
    %p171 = pnand %p169, %p170
    %p172 = pneg %p171
    // Predicated region
    $region9: #{input_conv_forward.1} parent=5 // pred_check
      _
    $region10: #{input_conv_forward.1} parent=5 // pred_check_branch
      %174 = sbr.rel (%p171) target = $region12
    $region11: #{input_conv_forward.1} parent=5 // pred_region
      %s175 = ssub.s32 %s11, 1
      // Predicated region
      $region13: #{input_conv_forward.1} parent=11 // pred_check
        %p176 = pneg %p70
      $region14: #{input_conv_forward.1} parent=11 // pred_check_branch
        %178 = sbr.rel (%p176) target = $region16
      $region15: #{input_conv_forward.1} parent=11 // pred_region
        _
      $region16: #{input_conv_forward.1} parent=11 // pred_fallthru
        _
      // Predicated region
      $region17: #{input_conv_forward.1} parent=11 // pred_check
        %p179 = pneg %p91
      $region18: #{input_conv_forward.1} parent=11 // pred_check_branch
        %181 = sbr.rel (%p179) target = $region20
      $region19: #{input_conv_forward.1} parent=11 // pred_region
        _
      $region20: #{input_conv_forward.1} parent=11 // pred_fallthru
        _
      // Predicated region
      $region21: #{input_conv_forward.1} parent=11 // pred_check
        %p182 = pneg %p112
      $region22: #{input_conv_forward.1} parent=11 // pred_check_branch
        %184 = sbr.rel (%p182) target = $region24
      $region23: #{input_conv_forward.1} parent=11 // pred_region
        _
      $region24: #{input_conv_forward.1} parent=11 // pred_fallthru
        _
      // Predicated region
      $region25: #{input_conv_forward.1} parent=11 // pred_check
        %p185 = pneg %p133
      $region26: #{input_conv_forward.1} parent=11 // pred_check_branch
        %187 = sbr.rel (%p185) target = $region28
      $region27: #{input_conv_forward.1} parent=11 // pred_region
        _
      $region28: #{input_conv_forward.1} parent=11 // pred_fallthru
        _
    $region12: #{input_conv_forward.1} parent=5 // pred_fallthru
      _
    %p188 = scmp.lt.s32.totalorder %s11, 4
    // Predicated region
    $region29: #{input_conv_forward.1} parent=5 // pred_check
      %p189 = pneg %p188
    $region30: #{input_conv_forward.1} parent=5 // pred_check_branch
      %191 = sbr.rel (%p189) target = $region32
    $region31: #{input_conv_forward.1} parent=5 // pred_region
      // Predicated region
      $region33: #{input_conv_forward.1} parent=31 // pred_check
        %p192 = pneg %p43
      $region34: #{input_conv_forward.1} parent=31 // pred_check_branch
        %194 = sbr.rel (%p192) target = $region36
      $region35: #{input_conv_forward.1} parent=31 // pred_region
        %p195 = scmp.lt.s32.totalorder %s18, 1
        %s196 = scalar_select %p195, %s18, 1
        %s197 = smul.addr %s196, 80
        %s198 = smul.addr %s197, 4
        %s199 = scalar_lea.vmem %s0, %s198
      $region36: #{input_conv_forward.1} parent=31 // pred_fallthru
        _
    $region32: #{input_conv_forward.1} parent=5 // pred_fallthru
      _
    %p200 = scmp.le.s32.totalorder 1, %s11
    %p201 = scmp.lt.s32.totalorder %s11, 5
    %p202 = pnand %p200, %p201
    %p203 = pneg %p202
    // Predicated region
    $region37: #{input_conv_forward.1} parent=5 // pred_check
      _
    $region38: #{input_conv_forward.1} parent=5 // pred_check_branch
      %205 = sbr.rel (%p202) target = $region40
    $region39: #{input_conv_forward.1} parent=5 // pred_region
      %s206 = ssub.s32 %s11, 1
      %p207 = scmp.lt.s32.totalorder %s20, 1
      %s208 = scalar_select %p207, %s20, 1
      %s209 = smul.addr %s208, 80
      %s210 = smul.addr %s209, 4
      %s211 = scalar_lea.vmem %s0, %s210
      %p212 = pneg %p49
      %p213 = pneg %p46
      %p214 = pneg %p70
      %p215 = pneg %p67
      %p216 = pneg %p91
      %p217 = pneg %p88
      %p218 = pneg %p112
      %p219 = pneg %p109
      %p220 = pneg %p133
      %p221 = pneg %p130
      %p222 = pneg %p161
      %p223 = pneg %p158
      %s224 = smul.u32 16, %s21
      %p225 = scmp.lt.s32.totalorder %s20, 1
      %s226 = scalar_select %p225, %s20, 1
      %p227 = scmp.lt.s32.totalorder %s224, 31
      %s228 = scalar_select %p227, %s224, 31
      %s229 = smul.addr %s226, 32
      %s230 = sadd.s32 %s228, %s229
      %s231 = smul.addr %s230, 4
      %s232 = scalar_lea.vmem %s5, %s231
      %p233 = scmp.lt.s32.totalorder %s20, 1
      %s234 = scalar_select %p233, %s20, 1
      %s235 = smul.addr %s234, 80
      %s236 = smul.addr %s235, 4
      %s237 = scalar_lea.vmem %s0, %s236
      %s238 = smul.u32 16, %s21
      %p239 = scmp.lt.s32.totalorder %s20, 1
      %s240 = scalar_select %p239, %s20, 1
      %p241 = scmp.lt.s32.totalorder %s238, 31
      %s242 = scalar_select %p241, %s238, 31
      %s243 = smul.addr %s240, 32
      %s244 = sadd.s32 %s242, %s243
      %s245 = smul.addr %s244, 4
      %s246 = scalar_lea.vmem %s5, %s245
      %s247 = smul.u32 16, %s21
      %s249 = smul.u32 %s21, 8
      %s250 = smul.u32 %s249, 4
      %s251 = smul.addr %s250, 4
      %s252 = scalar_lea.vmem %s237, %s251
      %v253 = vld [vmem:[%s252] sm:$0x8]
      %v254 = vld [vmem:[%s252 + $0x4] sm:$0xf]
      %v255 = vld [vmem:[%s252 + $0x8] sm:$0xf]
      %v256 = vld [vmem:[%s252 + $0x10] sm:$0x8]
      %v257 = vld [vmem:[%s252 + $0x14] sm:$0xf]
      %v258 = vld [vmem:[%s252 + $0x18] sm:$0xf]
      %v259 = vld [vmem:[%s252 + $0x20] sm:$0x8]
      %v260 = vld [vmem:[%s252 + $0x24] sm:$0xf]
      %v261 = vld [vmem:[%s252 + $0x28] sm:$0xf]
      %v262 = vld [vmem:[%s252 + $0x30] sm:$0x8]
      %v263 = vld [vmem:[%s252 + $0x34] sm:$0xf]
      %v264 = vld [vmem:[%s252 + $0x38] sm:$0xf]
      %v265 = vld [vmem:[%s252 + $0x40] sm:$0x8]
      %v266 = vld [vmem:[%s252 + $0x44] sm:$0xf]
      %v267 = vld [vmem:[%s252 + $0x48] sm:$0xf]
      %v268 = vld [vmem:[%s252 + $0x50] sm:$0x8]
      %v269 = vld [vmem:[%s252 + $0x54] sm:$0xf]
      %v270 = vld [vmem:[%s252 + $0x58] sm:$0xf]
      %v271 = vld [vmem:[%s252 + $0x60] sm:$0x8]
      %v272 = vld [vmem:[%s252 + $0x64] sm:$0xf]
      %v273 = vld [vmem:[%s252 + $0x68] sm:$0xf]
      %v274 = vld [vmem:[%s252 + $0x70] sm:$0x8]
      %v275 = vld [vmem:[%s252 + $0x74] sm:$0xf]
      %v276 = vld [vmem:[%s252 + $0x78] sm:$0xf]
      %v277 = vld [vmem:[%s252 + $0x80] sm:$0x8]
      %v278 = vld [vmem:[%s252 + $0x84] sm:$0xf]
      %v279 = vld [vmem:[%s252 + $0x88] sm:$0xf]
      %v280 = vld [vmem:[%s252 + $0x90] sm:$0x8]
      %v281 = vld [vmem:[%s252 + $0x94] sm:$0xf]
      %v282 = vld [vmem:[%s252 + $0x98] sm:$0xf]
      %v283 = vld [vmem:[%s252 + $0xc] sm:$0x1]
      %v284 = vld [vmem:[%s252 + $0x1c] sm:$0x1]
      %v285 = vld [vmem:[%s252 + $0x2c] sm:$0x1]
      %v286 = vld [vmem:[%s252 + $0x3c] sm:$0x1]
      %v287 = vld [vmem:[%s252 + $0x4c] sm:$0x1]
      %v288 = vld [vmem:[%s252 + $0x5c] sm:$0x1]
      %v289 = vld [vmem:[%s252 + $0x6c] sm:$0x1]
      %v290 = vld [vmem:[%s252 + $0x7c] sm:$0x1]
      %v291 = vld [vmem:[%s252 + $0x8c] sm:$0x1]
      %v292 = vld [vmem:[%s252 + $0x9c] sm:$0x1]
      %v323 = vunpack.c.l.b16 %v253
      %v324 = vunpack.c.l.b16 %v254
      %v325 = vunpack.c.l.b16 %v255
      %v326 = vunpack.c.l.b16 %v256
      %v327 = vunpack.c.l.b16 %v257
      %v328 = vunpack.c.l.b16 %v258
      %v329 = vunpack.c.l.b16 %v259
      %v330 = vunpack.c.l.b16 %v260
      %v331 = vunpack.c.l.b16 %v261
      %v332 = vunpack.c.l.b16 %v262
      %v333 = vunpack.c.l.b16 %v263
      %v334 = vunpack.c.l.b16 %v264
      %v335 = vunpack.c.l.b16 %v265
      %v336 = vunpack.c.l.b16 %v266
      %v337 = vunpack.c.l.b16 %v267
      %v338 = vunpack.c.l.b16 %v268
      %v339 = vunpack.c.l.b16 %v269
      %v340 = vunpack.c.l.b16 %v270
      %v341 = vunpack.c.l.b16 %v271
      %v342 = vunpack.c.l.b16 %v272
      %v343 = vunpack.c.l.b16 %v273
      %v344 = vunpack.c.l.b16 %v274
      %v345 = vunpack.c.l.b16 %v275
      %v346 = vunpack.c.l.b16 %v276
      %v347 = vunpack.c.l.b16 %v277
      %v348 = vunpack.c.l.b16 %v278
      %v349 = vunpack.c.l.b16 %v279
      %v350 = vunpack.c.l.b16 %v280
      %v351 = vunpack.c.l.b16 %v281
      %v352 = vunpack.c.l.b16 %v282
      %v353 = vpack.c.b16 %v324, %v323
      %v354 = vpack.c.b16 %v325, %v325
      %v355 = vpack.c.b16 %v327, %v326
      %v356 = vpack.c.b16 %v328, %v328
      %v357 = vpack.c.b16 %v330, %v329
      %v358 = vpack.c.b16 %v331, %v331
      %v359 = vpack.c.b16 %v333, %v332
      %v360 = vpack.c.b16 %v334, %v334
      %v361 = vpack.c.b16 %v336, %v335
      %v362 = vpack.c.b16 %v337, %v337
      %v363 = vpack.c.b16 %v339, %v338
      %v364 = vpack.c.b16 %v340, %v340
      %v365 = vpack.c.b16 %v342, %v341
      %v366 = vpack.c.b16 %v343, %v343
      %v367 = vpack.c.b16 %v345, %v344
      %v368 = vpack.c.b16 %v346, %v346
      %v369 = vpack.c.b16 %v348, %v347
      %v370 = vpack.c.b16 %v349, %v349
      %v371 = vpack.c.b16 %v351, %v350
      %v372 = vpack.c.b16 %v352, %v352
      %v373 = vpack.c.b16 %v325, %v324
      %v374 = vpack.c.b16 %v328, %v327
      %v375 = vpack.c.b16 %v331, %v330
      %v376 = vpack.c.b16 %v334, %v333
      %v377 = vpack.c.b16 %v337, %v336
      %v378 = vpack.c.b16 %v340, %v339
      %v379 = vpack.c.b16 %v343, %v342
      %v380 = vpack.c.b16 %v346, %v345
      %v381 = vpack.c.b16 %v349, %v348
      %v382 = vpack.c.b16 %v352, %v351
      %v384 = vshrl.u32 %v373, 16
      %v386 = vrot.slane %v384, 4
      %v387 = vshll.u32 %v373, 16
      %v389 = vrot.slane %v387, 5
      %v390 = vor.u32 %v386, %v389
      %v392 = vshrl.u32 %v374, 16
      %v394 = vrot.slane %v392, 4
      %v395 = vshll.u32 %v374, 16
      %v397 = vrot.slane %v395, 5
      %v398 = vor.u32 %v394, %v397
      %v400 = vshrl.u32 %v375, 16
      %v402 = vrot.slane %v400, 4
      %v403 = vshll.u32 %v375, 16
      %v405 = vrot.slane %v403, 5
      %v406 = vor.u32 %v402, %v405
      %v408 = vshrl.u32 %v376, 16
      %v410 = vrot.slane %v408, 4
      %v411 = vshll.u32 %v376, 16
      %v413 = vrot.slane %v411, 5
      %v414 = vor.u32 %v410, %v413
      %v416 = vshrl.u32 %v377, 16
      %v418 = vrot.slane %v416, 4
      %v419 = vshll.u32 %v377, 16
      %v421 = vrot.slane %v419, 5
      %v422 = vor.u32 %v418, %v421
      %v424 = vshrl.u32 %v378, 16
      %v426 = vrot.slane %v424, 4
      %v427 = vshll.u32 %v378, 16
      %v429 = vrot.slane %v427, 5
      %v430 = vor.u32 %v426, %v429
      %v432 = vshrl.u32 %v379, 16
      %v434 = vrot.slane %v432, 4
      %v435 = vshll.u32 %v379, 16
      %v437 = vrot.slane %v435, 5
      %v438 = vor.u32 %v434, %v437
      %v440 = vshrl.u32 %v380, 16
      %v442 = vrot.slane %v440, 4
      %v443 = vshll.u32 %v380, 16
      %v445 = vrot.slane %v443, 5
      %v446 = vor.u32 %v442, %v445
      %v448 = vshrl.u32 %v381, 16
      %v450 = vrot.slane %v448, 4
      %v451 = vshll.u32 %v381, 16
      %v453 = vrot.slane %v451, 5
      %v454 = vor.u32 %v450, %v453
      %v456 = vshrl.u32 %v382, 16
      %v458 = vrot.slane %v456, 4
      %v459 = vshll.u32 %v382, 16
      %v461 = vrot.slane %v459, 5
      %v462 = vor.u32 %v458, %v461
      %463 = vrot.lane.b32.xlu0 %v390, 4
      %v464 = vpop.permute.xlu0 %463
      %465 = vrot.lane.b32.xlu0 %v398, 4
      %v466 = vpop.permute.xlu0 %465
      %467 = vrot.lane.b32.xlu0 %v406, 4
      %v468 = vpop.permute.xlu0 %467
      %469 = vrot.lane.b32.xlu0 %v414, 4
      %v470 = vpop.permute.xlu0 %469
      %471 = vrot.lane.b32.xlu0 %v422, 4
      %v472 = vpop.permute.xlu0 %471
      %473 = vrot.lane.b32.xlu0 %v430, 4
      %v474 = vpop.permute.xlu0 %473
      %475 = vrot.lane.b32.xlu0 %v438, 4
      %v476 = vpop.permute.xlu0 %475
      %477 = vrot.lane.b32.xlu0 %v446, 4
      %v478 = vpop.permute.xlu0 %477
      %479 = vrot.lane.b32.xlu0 %v454, 4
      %v480 = vpop.permute.xlu0 %479
      %481 = vrot.lane.b32.xlu0 %v462, 4
      %v482 = vpop.permute.xlu0 %481
      %v493 = vunpack.c.l.b16 %v283
      %v494 = vunpack.c.l.b16 %v284
      %v495 = vunpack.c.l.b16 %v285
      %v496 = vunpack.c.l.b16 %v286
      %v497 = vunpack.c.l.b16 %v287
      %v498 = vunpack.c.l.b16 %v288
      %v499 = vunpack.c.l.b16 %v289
      %v500 = vunpack.c.l.b16 %v290
      %v501 = vunpack.c.l.b16 %v291
      %v502 = vunpack.c.l.b16 %v292
      %v503 = vpack.c.b16 %v493, %v493
      %v504 = vpack.c.b16 %v494, %v494
      %v505 = vpack.c.b16 %v495, %v495
      %v506 = vpack.c.b16 %v496, %v496
      %v507 = vpack.c.b16 %v497, %v497
      %v508 = vpack.c.b16 %v498, %v498
      %v509 = vpack.c.b16 %v499, %v499
      %v510 = vpack.c.b16 %v500, %v500
      %v511 = vpack.c.b16 %v501, %v501
      %v512 = vpack.c.b16 %v502, %v502
      %vm513 = vcmask 1042432
      %v514 = vrot.slane %v373, 5
      %v515 = vrot.slane %v503, 5
      %v516 = vsel %vm513, %v514, %v515
      %v517 = vrot.slane %v374, 5
      %v518 = vrot.slane %v504, 5
      %v519 = vsel %vm513, %v517, %v518
      %v520 = vrot.slane %v375, 5
      %v521 = vrot.slane %v505, 5
      %v522 = vsel %vm513, %v520, %v521
      %v523 = vrot.slane %v376, 5
      %v524 = vrot.slane %v506, 5
      %v525 = vsel %vm513, %v523, %v524
      %v526 = vrot.slane %v377, 5
      %v527 = vrot.slane %v507, 5
      %v528 = vsel %vm513, %v526, %v527
      %v529 = vrot.slane %v378, 5
      %v530 = vrot.slane %v508, 5
      %v531 = vsel %vm513, %v529, %v530
      %v532 = vrot.slane %v379, 5
      %v533 = vrot.slane %v509, 5
      %v534 = vsel %vm513, %v532, %v533
      %v535 = vrot.slane %v380, 5
      %v536 = vrot.slane %v510, 5
      %v537 = vsel %vm513, %v535, %v536
      %v538 = vrot.slane %v381, 5
      %v539 = vrot.slane %v511, 5
      %v540 = vsel %vm513, %v538, %v539
      %v541 = vrot.slane %v382, 5
      %v542 = vrot.slane %v512, 5
      %v543 = vsel %vm513, %v541, %v542
      %544 = vrot.lane.b32.xlu0 %v514, 8
      %v545 = vpop.permute.xlu0 %544
      %546 = vrot.lane.b32.xlu0 %v516, 8
      %v547 = vpop.permute.xlu0 %546
      %548 = vrot.lane.b32.xlu0 %v517, 8
      %v549 = vpop.permute.xlu0 %548
      %550 = vrot.lane.b32.xlu0 %v519, 8
      %v551 = vpop.permute.xlu0 %550
      %552 = vrot.lane.b32.xlu0 %v520, 8
      %v553 = vpop.permute.xlu0 %552
      %554 = vrot.lane.b32.xlu0 %v522, 8
      %v555 = vpop.permute.xlu0 %554
      %556 = vrot.lane.b32.xlu0 %v523, 8
      %v557 = vpop.permute.xlu0 %556
      %558 = vrot.lane.b32.xlu0 %v525, 8
      %v559 = vpop.permute.xlu0 %558
      %560 = vrot.lane.b32.xlu0 %v526, 8
      %v561 = vpop.permute.xlu0 %560
      %562 = vrot.lane.b32.xlu0 %v528, 8
      %v563 = vpop.permute.xlu0 %562
      %564 = vrot.lane.b32.xlu0 %v529, 8
      %v565 = vpop.permute.xlu0 %564
      %566 = vrot.lane.b32.xlu0 %v531, 8
      %v567 = vpop.permute.xlu0 %566
      %568 = vrot.lane.b32.xlu0 %v532, 8
      %v569 = vpop.permute.xlu0 %568
      %570 = vrot.lane.b32.xlu0 %v534, 8
      %v571 = vpop.permute.xlu0 %570
      %572 = vrot.lane.b32.xlu0 %v535, 8
      %v573 = vpop.permute.xlu0 %572
      %574 = vrot.lane.b32.xlu0 %v537, 8
      %v575 = vpop.permute.xlu0 %574
      %576 = vrot.lane.b32.xlu0 %v538, 8
      %v577 = vpop.permute.xlu0 %576
      %578 = vrot.lane.b32.xlu0 %v540, 8
      %v579 = vpop.permute.xlu0 %578
      %580 = vrot.lane.b32.xlu0 %v541, 8
      %v581 = vpop.permute.xlu0 %580
      %582 = vrot.lane.b32.xlu0 %v543, 8
      %v583 = vpop.permute.xlu0 %582
      %vm584 = vcmask 31744
      %v587 = vsel %vm584, %v353, %v464
      %v589 = vsel %vm584, %v354, %v464
      %v592 = vsel %vm584, %v355, %v466
      %v594 = vsel %vm584, %v356, %v466
      %v597 = vsel %vm584, %v357, %v468
      %v599 = vsel %vm584, %v358, %v468
      %v602 = vsel %vm584, %v359, %v470
      %v604 = vsel %vm584, %v360, %v470
      %v607 = vsel %vm584, %v361, %v472
      %v609 = vsel %vm584, %v362, %v472
      %v612 = vsel %vm584, %v363, %v474
      %v614 = vsel %vm584, %v364, %v474
      %v617 = vsel %vm584, %v365, %v476
      %v619 = vsel %vm584, %v366, %v476
      %v622 = vsel %vm584, %v367, %v478
      %v624 = vsel %vm584, %v368, %v478
      %v627 = vsel %vm584, %v369, %v480
      %v629 = vsel %vm584, %v370, %v480
      %v632 = vsel %vm584, %v371, %v482
      %v634 = vsel %vm584, %v372, %v482
      %vm635 = vcmask 64512
      %v637 = vsel %vm635, %v587, %v545
      %v639 = vsel %vm635, %v589, %v547
      %v641 = vsel %vm635, %v592, %v549
      %v643 = vsel %vm635, %v594, %v551
      %v645 = vsel %vm635, %v597, %v553
      %v647 = vsel %vm635, %v599, %v555
      %v649 = vsel %vm635, %v602, %v557
      %v651 = vsel %vm635, %v604, %v559
      %v653 = vsel %vm635, %v607, %v561
      %v655 = vsel %vm635, %v609, %v563
      %v657 = vsel %vm635, %v612, %v565
      %v659 = vsel %vm635, %v614, %v567
      %v661 = vsel %vm635, %v617, %v569
      %v663 = vsel %vm635, %v619, %v571
      %v665 = vsel %vm635, %v622, %v573
      %v667 = vsel %vm635, %v624, %v575
      %v669 = vsel %vm635, %v627, %v577
      %v671 = vsel %vm635, %v629, %v579
      %v673 = vsel %vm635, %v632, %v581
      %v675 = vsel %vm635, %v634, %v583
      %vm676 = vsmask.f32 4352
      %v677 = vshrl.u32 %v637, 16
      %v679 = vrot.slane %v677, 3
      %v680 = vshll.u32 %v637, 16
      %v682 = vrot.slane %v680, 4
      %v683 = vor.u32 %v679, %v682
      %v684 = vshrl.u32 %v639, 16
      %v686 = vrot.slane %v684, 3
      %v687 = vshll.u32 %v639, 16
      %v689 = vrot.slane %v687, 4
      %v690 = vor.u32 %v686, %v689
      %v691 = vsel %vm676, %v683, %v690
      %v692 = vshrl.u32 %v641, 16
      %v694 = vrot.slane %v692, 3
      %v695 = vshll.u32 %v641, 16
      %v697 = vrot.slane %v695, 4
      %v698 = vor.u32 %v694, %v697
      %v699 = vshrl.u32 %v643, 16
      %v701 = vrot.slane %v699, 3
      %v702 = vshll.u32 %v643, 16
      %v704 = vrot.slane %v702, 4
      %v705 = vor.u32 %v701, %v704
      %v706 = vsel %vm676, %v698, %v705
      %v707 = vshrl.u32 %v645, 16
      %v709 = vrot.slane %v707, 3
      %v710 = vshll.u32 %v645, 16
      %v712 = vrot.slane %v710, 4
      %v713 = vor.u32 %v709, %v712
      %v714 = vshrl.u32 %v647, 16
      %v716 = vrot.slane %v714, 3
      %v717 = vshll.u32 %v647, 16
      %v719 = vrot.slane %v717, 4
      %v720 = vor.u32 %v716, %v719
      %v721 = vsel %vm676, %v713, %v720
      %v722 = vshrl.u32 %v649, 16
      %v724 = vrot.slane %v722, 3
      %v725 = vshll.u32 %v649, 16
      %v727 = vrot.slane %v725, 4
      %v728 = vor.u32 %v724, %v727
      %v729 = vshrl.u32 %v651, 16
      %v731 = vrot.slane %v729, 3
      %v732 = vshll.u32 %v651, 16
      %v734 = vrot.slane %v732, 4
      %v735 = vor.u32 %v731, %v734
      %v736 = vsel %vm676, %v728, %v735
      %v737 = vshrl.u32 %v653, 16
      %v739 = vrot.slane %v737, 3
      %v740 = vshll.u32 %v653, 16
      %v742 = vrot.slane %v740, 4
      %v743 = vor.u32 %v739, %v742
      %v744 = vshrl.u32 %v655, 16
      %v746 = vrot.slane %v744, 3
      %v747 = vshll.u32 %v655, 16
      %v749 = vrot.slane %v747, 4
      %v750 = vor.u32 %v746, %v749
      %v751 = vsel %vm676, %v743, %v750
      %v752 = vshrl.u32 %v657, 16
      %v754 = vrot.slane %v752, 3
      %v755 = vshll.u32 %v657, 16
      %v757 = vrot.slane %v755, 4
      %v758 = vor.u32 %v754, %v757
      %v759 = vshrl.u32 %v659, 16
      %v761 = vrot.slane %v759, 3
      %v762 = vshll.u32 %v659, 16
      %v764 = vrot.slane %v762, 4
      %v765 = vor.u32 %v761, %v764
      %v766 = vsel %vm676, %v758, %v765
      %v767 = vshrl.u32 %v661, 16
      %v769 = vrot.slane %v767, 3
      %v770 = vshll.u32 %v661, 16
      %v772 = vrot.slane %v770, 4
      %v773 = vor.u32 %v769, %v772
      %v774 = vshrl.u32 %v663, 16
      %v776 = vrot.slane %v774, 3
      %v777 = vshll.u32 %v663, 16
      %v779 = vrot.slane %v777, 4
      %v780 = vor.u32 %v776, %v779
      %v781 = vsel %vm676, %v773, %v780
      %v782 = vshrl.u32 %v665, 16
      %v784 = vrot.slane %v782, 3
      %v785 = vshll.u32 %v665, 16
      %v787 = vrot.slane %v785, 4
      %v788 = vor.u32 %v784, %v787
      %v789 = vshrl.u32 %v667, 16
      %v791 = vrot.slane %v789, 3
      %v792 = vshll.u32 %v667, 16
      %v794 = vrot.slane %v792, 4
      %v795 = vor.u32 %v791, %v794
      %v796 = vsel %vm676, %v788, %v795
      %v797 = vshrl.u32 %v669, 16
      %v799 = vrot.slane %v797, 3
      %v800 = vshll.u32 %v669, 16
      %v802 = vrot.slane %v800, 4
      %v803 = vor.u32 %v799, %v802
      %v804 = vshrl.u32 %v671, 16
      %v806 = vrot.slane %v804, 3
      %v807 = vshll.u32 %v671, 16
      %v809 = vrot.slane %v807, 4
      %v810 = vor.u32 %v806, %v809
      %v811 = vsel %vm676, %v803, %v810
      %v812 = vshrl.u32 %v673, 16
      %v814 = vrot.slane %v812, 3
      %v815 = vshll.u32 %v673, 16
      %v817 = vrot.slane %v815, 4
      %v818 = vor.u32 %v814, %v817
      %v819 = vshrl.u32 %v675, 16
      %v821 = vrot.slane %v819, 3
      %v822 = vshll.u32 %v675, 16
      %v824 = vrot.slane %v822, 4
      %v825 = vor.u32 %v821, %v824
      %v826 = vsel %vm676, %v818, %v825
      %v827 = vld [vmem:[%s1] sm:$0xf]
      %v828 = vld [vmem:[%s1 + $0x4] sm:$0x3]
      %s829 = sadd.s32 %s249, 1
      %s830 = smul.u32 %s829, 4
      %s831 = smul.addr %s830, 4
      %s832 = scalar_lea.vmem %s237, %s831
      %v833 = vld [vmem:[%s832] sm:$0x8]
      %v834 = vld [vmem:[%s832 + $0x4] sm:$0xf]
      %v835 = vld [vmem:[%s832 + $0x8] sm:$0xf]
      %v836 = vld [vmem:[%s832 + $0x10] sm:$0x8]
      %v837 = vld [vmem:[%s832 + $0x14] sm:$0xf]
      %v838 = vld [vmem:[%s832 + $0x18] sm:$0xf]
      %v839 = vld [vmem:[%s832 + $0x20] sm:$0x8]
      %v840 = vld [vmem:[%s832 + $0x24] sm:$0xf]
      %v841 = vld [vmem:[%s832 + $0x28] sm:$0xf]
      %v842 = vld [vmem:[%s832 + $0x30] sm:$0x8]
      %v843 = vld [vmem:[%s832 + $0x34] sm:$0xf]
      %v844 = vld [vmem:[%s832 + $0x38] sm:$0xf]
      %v845 = vld [vmem:[%s832 + $0x40] sm:$0x8]
      %v846 = vld [vmem:[%s832 + $0x44] sm:$0xf]
      %v847 = vld [vmem:[%s832 + $0x48] sm:$0xf]
      %v848 = vld [vmem:[%s832 + $0x50] sm:$0x8]
      %v849 = vld [vmem:[%s832 + $0x54] sm:$0xf]
      %v850 = vld [vmem:[%s832 + $0x58] sm:$0xf]
      %v851 = vld [vmem:[%s832 + $0x60] sm:$0x8]
      %v852 = vld [vmem:[%s832 + $0x64] sm:$0xf]
      %v853 = vld [vmem:[%s832 + $0x68] sm:$0xf]
      %v854 = vld [vmem:[%s832 + $0x70] sm:$0x8]
      %v855 = vld [vmem:[%s832 + $0x74] sm:$0xf]
      %v856 = vld [vmem:[%s832 + $0x78] sm:$0xf]
      %v857 = vld [vmem:[%s832 + $0x80] sm:$0x8]
      %v858 = vld [vmem:[%s832 + $0x84] sm:$0xf]
      %v859 = vld [vmem:[%s832 + $0x88] sm:$0xf]
      %v860 = vld [vmem:[%s832 + $0x90] sm:$0x8]
      %v861 = vld [vmem:[%s832 + $0x94] sm:$0xf]
      %v862 = vld [vmem:[%s832 + $0x98] sm:$0xf]
      %v863 = vld [vmem:[%s832 + $0xc] sm:$0x1]
      %v864 = vld [vmem:[%s832 + $0x1c] sm:$0x1]
      %v865 = vld [vmem:[%s832 + $0x2c] sm:$0x1]
      %v866 = vld [vmem:[%s832 + $0x3c] sm:$0x1]
      %v867 = vld [vmem:[%s832 + $0x4c] sm:$0x1]
      %v868 = vld [vmem:[%s832 + $0x5c] sm:$0x1]
      %v869 = vld [vmem:[%s832 + $0x6c] sm:$0x1]
      %v870 = vld [vmem:[%s832 + $0x7c] sm:$0x1]
      %v871 = vld [vmem:[%s832 + $0x8c] sm:$0x1]
      %v872 = vld [vmem:[%s832 + $0x9c] sm:$0x1]
      %v903 = vunpack.c.l.b16 %v833
      %v904 = vunpack.c.l.b16 %v834
      %v905 = vunpack.c.l.b16 %v835
      %v906 = vunpack.c.l.b16 %v836
      %v907 = vunpack.c.l.b16 %v837
      %v908 = vunpack.c.l.b16 %v838
      %v909 = vunpack.c.l.b16 %v839
      %v910 = vunpack.c.l.b16 %v840
      %v911 = vunpack.c.l.b16 %v841
      %v912 = vunpack.c.l.b16 %v842
      %v913 = vunpack.c.l.b16 %v843
      %v914 = vunpack.c.l.b16 %v844
      %v915 = vunpack.c.l.b16 %v845
      %v916 = vunpack.c.l.b16 %v846
      %v917 = vunpack.c.l.b16 %v847
      %v918 = vunpack.c.l.b16 %v848
      %v919 = vunpack.c.l.b16 %v849
      %v920 = vunpack.c.l.b16 %v850
      %v921 = vunpack.c.l.b16 %v851
      %v922 = vunpack.c.l.b16 %v852
      %v923 = vunpack.c.l.b16 %v853
      %v924 = vunpack.c.l.b16 %v854
      %v925 = vunpack.c.l.b16 %v855
      %v926 = vunpack.c.l.b16 %v856
      %v927 = vunpack.c.l.b16 %v857
      %v928 = vunpack.c.l.b16 %v858
      %v929 = vunpack.c.l.b16 %v859
      %v930 = vunpack.c.l.b16 %v860
      %v931 = vunpack.c.l.b16 %v861
      %v932 = vunpack.c.l.b16 %v862
      %v933 = vpack.c.b16 %v904, %v903
      %v934 = vpack.c.b16 %v905, %v905
      %v935 = vpack.c.b16 %v907, %v906
      %v936 = vpack.c.b16 %v908, %v908
      %v937 = vpack.c.b16 %v910, %v909
      %v938 = vpack.c.b16 %v911, %v911
      %v939 = vpack.c.b16 %v913, %v912
      %v940 = vpack.c.b16 %v914, %v914
      %v941 = vpack.c.b16 %v916, %v915
      %v942 = vpack.c.b16 %v917, %v917
      %v943 = vpack.c.b16 %v919, %v918
      %v944 = vpack.c.b16 %v920, %v920
      %v945 = vpack.c.b16 %v922, %v921
      %v946 = vpack.c.b16 %v923, %v923
      %v947 = vpack.c.b16 %v925, %v924
      %v948 = vpack.c.b16 %v926, %v926
      %v949 = vpack.c.b16 %v928, %v927
      %v950 = vpack.c.b16 %v929, %v929
      %v951 = vpack.c.b16 %v931, %v930
      %v952 = vpack.c.b16 %v932, %v932
      %v953 = vpack.c.b16 %v905, %v904
      %v954 = vpack.c.b16 %v908, %v907
      %v955 = vpack.c.b16 %v911, %v910
      %v956 = vpack.c.b16 %v914, %v913
      %v957 = vpack.c.b16 %v917, %v916
      %v958 = vpack.c.b16 %v920, %v919
      %v959 = vpack.c.b16 %v923, %v922
      %v960 = vpack.c.b16 %v926, %v925
      %v961 = vpack.c.b16 %v929, %v928
      %v962 = vpack.c.b16 %v932, %v931
      %v964 = vshrl.u32 %v953, 16
      %v966 = vrot.slane %v964, 4
      %v967 = vshll.u32 %v953, 16
      %v969 = vrot.slane %v967, 5
      %v970 = vor.u32 %v966, %v969
      %v972 = vshrl.u32 %v954, 16
      %v974 = vrot.slane %v972, 4
      %v975 = vshll.u32 %v954, 16
      %v977 = vrot.slane %v975, 5
      %v978 = vor.u32 %v974, %v977
      %v980 = vshrl.u32 %v955, 16
      %v982 = vrot.slane %v980, 4
      %v983 = vshll.u32 %v955, 16
      %v985 = vrot.slane %v983, 5
      %v986 = vor.u32 %v982, %v985
      %v988 = vshrl.u32 %v956, 16
      %v990 = vrot.slane %v988, 4
      %v991 = vshll.u32 %v956, 16
      %v993 = vrot.slane %v991, 5
      %v994 = vor.u32 %v990, %v993
      %v996 = vshrl.u32 %v957, 16
      %v998 = vrot.slane %v996, 4
      %v999 = vshll.u32 %v957, 16
      %v1001 = vrot.slane %v999, 5
      %v1002 = vor.u32 %v998, %v1001
      %v1004 = vshrl.u32 %v958, 16
      %v1006 = vrot.slane %v1004, 4
      %v1007 = vshll.u32 %v958, 16
      %v1009 = vrot.slane %v1007, 5
      %v1010 = vor.u32 %v1006, %v1009
      %v1012 = vshrl.u32 %v959, 16
      %v1014 = vrot.slane %v1012, 4
      %v1015 = vshll.u32 %v959, 16
      %v1017 = vrot.slane %v1015, 5
      %v1018 = vor.u32 %v1014, %v1017
      %v1020 = vshrl.u32 %v960, 16
      %v1022 = vrot.slane %v1020, 4
      %v1023 = vshll.u32 %v960, 16
      %v1025 = vrot.slane %v1023, 5
      %v1026 = vor.u32 %v1022, %v1025
      %v1028 = vshrl.u32 %v961, 16
      %v1030 = vrot.slane %v1028, 4
      %v1031 = vshll.u32 %v961, 16
      %v1033 = vrot.slane %v1031, 5
      %v1034 = vor.u32 %v1030, %v1033
      %v1036 = vshrl.u32 %v962, 16
      %v1038 = vrot.slane %v1036, 4
      %v1039 = vshll.u32 %v962, 16
      %v1041 = vrot.slane %v1039, 5
      %v1042 = vor.u32 %v1038, %v1041
      %1043 = vrot.lane.b32.xlu0 %v970, 4
      %v1044 = vpop.permute.xlu0 %1043
      %1045 = vrot.lane.b32.xlu0 %v978, 4
      %v1046 = vpop.permute.xlu0 %1045
      %1047 = vrot.lane.b32.xlu0 %v986, 4
      %v1048 = vpop.permute.xlu0 %1047
      %1049 = vrot.lane.b32.xlu0 %v994, 4
      %v1050 = vpop.permute.xlu0 %1049
      %1051 = vrot.lane.b32.xlu0 %v1002, 4
      %v1052 = vpop.permute.xlu0 %1051
      %1053 = vrot.lane.b32.xlu0 %v1010, 4
      %v1054 = vpop.permute.xlu0 %1053
      %1055 = vrot.lane.b32.xlu0 %v1018, 4
      %v1056 = vpop.permute.xlu0 %1055
      %1057 = vrot.lane.b32.xlu0 %v1026, 4
      %v1058 = vpop.permute.xlu0 %1057
      %1059 = vrot.lane.b32.xlu0 %v1034, 4
      %v1060 = vpop.permute.xlu0 %1059
      %1061 = vrot.lane.b32.xlu0 %v1042, 4
      %v1062 = vpop.permute.xlu0 %1061
      %v1073 = vunpack.c.l.b16 %v863
      %v1074 = vunpack.c.l.b16 %v864
      %v1075 = vunpack.c.l.b16 %v865
      %v1076 = vunpack.c.l.b16 %v866
      %v1077 = vunpack.c.l.b16 %v867
      %v1078 = vunpack.c.l.b16 %v868
      %v1079 = vunpack.c.l.b16 %v869
      %v1080 = vunpack.c.l.b16 %v870
      %v1081 = vunpack.c.l.b16 %v871
      %v1082 = vunpack.c.l.b16 %v872
      %v1083 = vpack.c.b16 %v1073, %v1073
      %v1084 = vpack.c.b16 %v1074, %v1074
      %v1085 = vpack.c.b16 %v1075, %v1075
      %v1086 = vpack.c.b16 %v1076, %v1076
      %v1087 = vpack.c.b16 %v1077, %v1077
      %v1088 = vpack.c.b16 %v1078, %v1078
      %v1089 = vpack.c.b16 %v1079, %v1079
      %v1090 = vpack.c.b16 %v1080, %v1080
      %v1091 = vpack.c.b16 %v1081, %v1081
      %v1092 = vpack.c.b16 %v1082, %v1082
      %v1093 = vrot.slane %v953, 5
      %v1094 = vrot.slane %v1083, 5
      %v1095 = vsel %vm513, %v1093, %v1094
      %v1096 = vrot.slane %v954, 5
      %v1097 = vrot.slane %v1084, 5
      %v1098 = vsel %vm513, %v1096, %v1097
      %v1099 = vrot.slane %v955, 5
      %v1100 = vrot.slane %v1085, 5
      %v1101 = vsel %vm513, %v1099, %v1100
      %v1102 = vrot.slane %v956, 5
      %v1103 = vrot.slane %v1086, 5
      %v1104 = vsel %vm513, %v1102, %v1103
      %v1105 = vrot.slane %v957, 5
      %v1106 = vrot.slane %v1087, 5
      %v1107 = vsel %vm513, %v1105, %v1106
      %v1108 = vrot.slane %v958, 5
      %v1109 = vrot.slane %v1088, 5
      %v1110 = vsel %vm513, %v1108, %v1109
      %v1111 = vrot.slane %v959, 5
      %v1112 = vrot.slane %v1089, 5
      %v1113 = vsel %vm513, %v1111, %v1112
      %v1114 = vrot.slane %v960, 5
      %v1115 = vrot.slane %v1090, 5
      %v1116 = vsel %vm513, %v1114, %v1115
      %v1117 = vrot.slane %v961, 5
      %v1118 = vrot.slane %v1091, 5
      %v1119 = vsel %vm513, %v1117, %v1118
      %v1120 = vrot.slane %v962, 5
      %v1121 = vrot.slane %v1092, 5
      %v1122 = vsel %vm513, %v1120, %v1121
      %1123 = vrot.lane.b32.xlu0 %v1093, 8
      %v1124 = vpop.permute.xlu0 %1123
      %1125 = vrot.lane.b32.xlu0 %v1095, 8
      %v1126 = vpop.permute.xlu0 %1125
      %1127 = vrot.lane.b32.xlu0 %v1096, 8
      %v1128 = vpop.permute.xlu0 %1127
      %1129 = vrot.lane.b32.xlu0 %v1098, 8
      %v1130 = vpop.permute.xlu0 %1129
      %1131 = vrot.lane.b32.xlu0 %v1099, 8
      %v1132 = vpop.permute.xlu0 %1131
      %1133 = vrot.lane.b32.xlu0 %v1101, 8
      %v1134 = vpop.permute.xlu0 %1133
      %1135 = vrot.lane.b32.xlu0 %v1102, 8
      %v1136 = vpop.permute.xlu0 %1135
      %1137 = vrot.lane.b32.xlu0 %v1104, 8
      %v1138 = vpop.permute.xlu0 %1137
      %1139 = vrot.lane.b32.xlu0 %v1105, 8
      %v1140 = vpop.permute.xlu0 %1139
      %1141 = vrot.lane.b32.xlu0 %v1107, 8
      %v1142 = vpop.permute.xlu0 %1141
      %1143 = vrot.lane.b32.xlu0 %v1108, 8
      %v1144 = vpop.permute.xlu0 %1143
      %1145 = vrot.lane.b32.xlu0 %v1110, 8
      %v1146 = vpop.permute.xlu0 %1145
      %1147 = vrot.lane.b32.xlu0 %v1111, 8
      %v1148 = vpop.permute.xlu0 %1147
      %1149 = vrot.lane.b32.xlu0 %v1113, 8
      %v1150 = vpop.permute.xlu0 %1149
      %1151 = vrot.lane.b32.xlu0 %v1114, 8
      %v1152 = vpop.permute.xlu0 %1151
      %1153 = vrot.lane.b32.xlu0 %v1116, 8
      %v1154 = vpop.permute.xlu0 %1153
      %1155 = vrot.lane.b32.xlu0 %v1117, 8
      %v1156 = vpop.permute.xlu0 %1155
      %1157 = vrot.lane.b32.xlu0 %v1119, 8
      %v1158 = vpop.permute.xlu0 %1157
      %1159 = vrot.lane.b32.xlu0 %v1120, 8
      %v1160 = vpop.permute.xlu0 %1159
      %1161 = vrot.lane.b32.xlu0 %v1122, 8
      %v1162 = vpop.permute.xlu0 %1161
      %v1165 = vsel %vm584, %v933, %v1044
      %v1167 = vsel %vm584, %v934, %v1044
      %v1170 = vsel %vm584, %v935, %v1046
      %v1172 = vsel %vm584, %v936, %v1046
      %v1175 = vsel %vm584, %v937, %v1048
      %v1177 = vsel %vm584, %v938, %v1048
      %v1180 = vsel %vm584, %v939, %v1050
      %v1182 = vsel %vm584, %v940, %v1050
      %v1185 = vsel %vm584, %v941, %v1052
      %v1187 = vsel %vm584, %v942, %v1052
      %v1190 = vsel %vm584, %v943, %v1054
      %v1192 = vsel %vm584, %v944, %v1054
      %v1195 = vsel %vm584, %v945, %v1056
      %v1197 = vsel %vm584, %v946, %v1056
      %v1200 = vsel %vm584, %v947, %v1058
      %v1202 = vsel %vm584, %v948, %v1058
      %v1205 = vsel %vm584, %v949, %v1060
      %v1207 = vsel %vm584, %v950, %v1060
      %v1210 = vsel %vm584, %v951, %v1062
      %v1212 = vsel %vm584, %v952, %v1062
      %v1214 = vsel %vm635, %v1165, %v1124
      %v1216 = vsel %vm635, %v1167, %v1126
      %v1218 = vsel %vm635, %v1170, %v1128
      %v1220 = vsel %vm635, %v1172, %v1130
      %v1222 = vsel %vm635, %v1175, %v1132
      %v1224 = vsel %vm635, %v1177, %v1134
      %v1226 = vsel %vm635, %v1180, %v1136
      %v1228 = vsel %vm635, %v1182, %v1138
      %v1230 = vsel %vm635, %v1185, %v1140
      %v1232 = vsel %vm635, %v1187, %v1142
      %v1234 = vsel %vm635, %v1190, %v1144
      %v1236 = vsel %vm635, %v1192, %v1146
      %v1238 = vsel %vm635, %v1195, %v1148
      %v1240 = vsel %vm635, %v1197, %v1150
      %v1242 = vsel %vm635, %v1200, %v1152
      %v1244 = vsel %vm635, %v1202, %v1154
      %v1246 = vsel %vm635, %v1205, %v1156
      %v1248 = vsel %vm635, %v1207, %v1158
      %v1250 = vsel %vm635, %v1210, %v1160
      %v1252 = vsel %vm635, %v1212, %v1162
      %v1253 = vshrl.u32 %v1214, 16
      %v1255 = vrot.slane %v1253, 3
      %v1256 = vshll.u32 %v1214, 16
      %v1258 = vrot.slane %v1256, 4
      %v1259 = vor.u32 %v1255, %v1258
      %v1260 = vshrl.u32 %v1216, 16
      %v1262 = vrot.slane %v1260, 3
      %v1263 = vshll.u32 %v1216, 16
      %v1265 = vrot.slane %v1263, 4
      %v1266 = vor.u32 %v1262, %v1265
      %v1267 = vsel %vm676, %v1259, %v1266
      %v1268 = vshrl.u32 %v1218, 16
      %v1270 = vrot.slane %v1268, 3
      %v1271 = vshll.u32 %v1218, 16
      %v1273 = vrot.slane %v1271, 4
      %v1274 = vor.u32 %v1270, %v1273
      %v1275 = vshrl.u32 %v1220, 16
      %v1277 = vrot.slane %v1275, 3
      %v1278 = vshll.u32 %v1220, 16
      %v1280 = vrot.slane %v1278, 4
      %v1281 = vor.u32 %v1277, %v1280
      %v1282 = vsel %vm676, %v1274, %v1281
      %v1283 = vshrl.u32 %v1222, 16
      %v1285 = vrot.slane %v1283, 3
      %v1286 = vshll.u32 %v1222, 16
      %v1288 = vrot.slane %v1286, 4
      %v1289 = vor.u32 %v1285, %v1288
      %v1290 = vshrl.u32 %v1224, 16
      %v1292 = vrot.slane %v1290, 3
      %v1293 = vshll.u32 %v1224, 16
      %v1295 = vrot.slane %v1293, 4
      %v1296 = vor.u32 %v1292, %v1295
      %v1297 = vsel %vm676, %v1289, %v1296
      %v1298 = vshrl.u32 %v1226, 16
      %v1300 = vrot.slane %v1298, 3
      %v1301 = vshll.u32 %v1226, 16
      %v1303 = vrot.slane %v1301, 4
      %v1304 = vor.u32 %v1300, %v1303
      %v1305 = vshrl.u32 %v1228, 16
      %v1307 = vrot.slane %v1305, 3
      %v1308 = vshll.u32 %v1228, 16
      %v1310 = vrot.slane %v1308, 4
      %v1311 = vor.u32 %v1307, %v1310
      %v1312 = vsel %vm676, %v1304, %v1311
      %v1313 = vshrl.u32 %v1230, 16
      %v1315 = vrot.slane %v1313, 3
      %v1316 = vshll.u32 %v1230, 16
      %v1318 = vrot.slane %v1316, 4
      %v1319 = vor.u32 %v1315, %v1318
      %v1320 = vshrl.u32 %v1232, 16
      %v1322 = vrot.slane %v1320, 3
      %v1323 = vshll.u32 %v1232, 16
      %v1325 = vrot.slane %v1323, 4
      %v1326 = vor.u32 %v1322, %v1325
      %v1327 = vsel %vm676, %v1319, %v1326
      %v1328 = vshrl.u32 %v1234, 16
      %v1330 = vrot.slane %v1328, 3
      %v1331 = vshll.u32 %v1234, 16
      %v1333 = vrot.slane %v1331, 4
      %v1334 = vor.u32 %v1330, %v1333
      %v1335 = vshrl.u32 %v1236, 16
      %v1337 = vrot.slane %v1335, 3
      %v1338 = vshll.u32 %v1236, 16
      %v1340 = vrot.slane %v1338, 4
      %v1341 = vor.u32 %v1337, %v1340
      %v1342 = vsel %vm676, %v1334, %v1341
      %v1343 = vshrl.u32 %v1238, 16
      %v1345 = vrot.slane %v1343, 3
      %v1346 = vshll.u32 %v1238, 16
      %v1348 = vrot.slane %v1346, 4
      %v1349 = vor.u32 %v1345, %v1348
      %v1350 = vshrl.u32 %v1240, 16
      %v1352 = vrot.slane %v1350, 3
      %v1353 = vshll.u32 %v1240, 16
      %v1355 = vrot.slane %v1353, 4
      %v1356 = vor.u32 %v1352, %v1355
      %v1357 = vsel %vm676, %v1349, %v1356
      %v1358 = vshrl.u32 %v1242, 16
      %v1360 = vrot.slane %v1358, 3
      %v1361 = vshll.u32 %v1242, 16
      %v1363 = vrot.slane %v1361, 4
      %v1364 = vor.u32 %v1360, %v1363
      %v1365 = vshrl.u32 %v1244, 16
      %v1367 = vrot.slane %v1365, 3
      %v1368 = vshll.u32 %v1244, 16
      %v1370 = vrot.slane %v1368, 4
      %v1371 = vor.u32 %v1367, %v1370
      %v1372 = vsel %vm676, %v1364, %v1371
      %v1373 = vshrl.u32 %v1246, 16
      %v1375 = vrot.slane %v1373, 3
      %v1376 = vshll.u32 %v1246, 16
      %v1378 = vrot.slane %v1376, 4
      %v1379 = vor.u32 %v1375, %v1378
      %v1380 = vshrl.u32 %v1248, 16
      %v1382 = vrot.slane %v1380, 3
      %v1383 = vshll.u32 %v1248, 16
      %v1385 = vrot.slane %v1383, 4
      %v1386 = vor.u32 %v1382, %v1385
      %v1387 = vsel %vm676, %v1379, %v1386
      %v1388 = vshrl.u32 %v1250, 16
      %v1390 = vrot.slane %v1388, 3
      %v1391 = vshll.u32 %v1250, 16
      %v1393 = vrot.slane %v1391, 4
      %v1394 = vor.u32 %v1390, %v1393
      %v1395 = vshrl.u32 %v1252, 16
      %v1397 = vrot.slane %v1395, 3
      %v1398 = vshll.u32 %v1252, 16
      %v1400 = vrot.slane %v1398, 4
      %v1401 = vor.u32 %v1397, %v1400
      %v1402 = vsel %vm676, %v1394, %v1401
      %s1403 = scalar_lea.vmem %s1, 8
      %v1404 = vld [vmem:[%s1403] sm:$0xf]
      %v1405 = vld [vmem:[%s1403 + $0x4] sm:$0x3]
      %v1408 = vunpack.c.l.b16 %v1404
      %v1409 = vunpack.c.l.b16 %v1405
      %v1410 = vpack.c.b16 %v1409, %v1408
      %vm1411 = vcmask 97280
      %v1413 = vsel %vm1411, %v1267, 0
      %v1416 = vsel %vm1411, %v1282, 0
      %v1419 = vsel %vm1411, %v1297, 0
      %v1422 = vsel %vm1411, %v1312, 0
      %v1425 = vsel %vm1411, %v1327, 0
      %v1428 = vsel %vm1411, %v1342, 0
      %v1431 = vsel %vm1411, %v1357, 0
      %v1434 = vsel %vm1411, %v1372, 0
      %v1437 = vsel %vm1411, %v1387, 0
      %v1440 = vsel %vm1411, %v1402, 0
      %vm1442 = vcmask 1045504
      %v1444 = vsel %vm1442, %v1410, 0
      %1446 = vmatprep.subr.bf16.mxu0 0
      %1447 = vmatpush1.bf16.msra.mxu0 %v1444
      %1448 = vmatprep.subr.bf16.mxu0 0
      %1449 = vmatpush1.bf16.msra.mxu0 0
      %1450 = vmatprep.subr.bf16.mxu0 0
      %1451 = vmatpush1.bf16.msra.mxu0 0
      %1452 = vmatprep.subr.bf16.mxu0 0
      %1453 = vmatpush1.bf16.msra.mxu0 0
      %1454 = vmatprep.subr.bf16.mxu0 0
      %1455 = vmatpush1.bf16.msra.mxu0 0
      %1456 = vmatprep.subr.bf16.mxu0 0
      %1457 = vmatpush1.bf16.msra.mxu0 0
      %1458 = vmatprep.subr.bf16.mxu0 0
      %1459 = vmatpush1.bf16.msra.mxu0 0
      %1460 = vmatprep.subr.bf16.mxu0 0
      %1461 = vmatpush1.bf16.msra.mxu0 0
      %1462 = vmatprep.subr.bf16.mxu0 0
      %1463 = vmatpush1.bf16.msra.mxu0 0
      %1464 = vmatprep.subr.bf16.mxu0 0
      %1465 = vmatpush1.bf16.msra.mxu0 0
      %1466 = vmatprep.subr.bf16.mxu0 0
      %1467 = vmatpush1.bf16.msra.mxu0 0
      %1468 = vmatprep.subr.bf16.mxu0 0
      %1469 = vmatpush1.bf16.msra.mxu0 0
      %1470 = vmatprep.subr.bf16.mxu0 0
      %1471 = vmatpush1.bf16.msra.mxu0 0
      %1472 = vmatprep.subr.bf16.mxu0 0
      %1473 = vmatpush1.bf16.msra.mxu0 0
      %1474 = vmatprep.subr.bf16.mxu0 0
      %1475 = vmatpush1.bf16.msra.mxu0 0
      %1476 = vmatprep.subr.bf16.mxu0 0
      %1477 = vmatpush1.bf16.msra.mxu0 0
      %1478 = vmatprep.mubr.bf16.mxu0 0
      %1479 = vmatmul.mubr.bf16.gmra.mrb[0].mxu0 %v1413
      %v1480 = vpop.f32.mrb[0].mxu0
      %v1481 = vadd.f32 0.0, %v1480
      %v1482 = vpop.f32.mrb[0].mxu0
      %v1483 = vpop.f32.mrb[0].mxu0
      %v1484 = vadd.f32 0.0, %v1483
      %v1485 = vpop.f32.mrb[0].mxu0
      %1486 = vmatprep.mubr.bf16.mxu0 0
      %1487 = vmatmul.mubr.bf16.gmra.mrb[0].mxu0 %v1416
      %v1488 = vpop.f32.mrb[0].mxu0
      %v1489 = vadd.f32 0.0, %v1488
      %v1490 = vpop.f32.mrb[0].mxu0
      %v1491 = vpop.f32.mrb[0].mxu0
      %v1492 = vadd.f32 0.0, %v1491
      %v1493 = vpop.f32.mrb[0].mxu0
      %1494 = vmatprep.mubr.bf16.mxu0 0
      %1495 = vmatmul.mubr.bf16.gmra.mrb[0].mxu0 %v1419
      %v1496 = vpop.f32.mrb[0].mxu0
      %v1497 = vadd.f32 0.0, %v1496
      %v1498 = vpop.f32.mrb[0].mxu0
      %v1499 = vpop.f32.mrb[0].mxu0
      %v1500 = vadd.f32 0.0, %v1499
      %v1501 = vpop.f32.mrb[0].mxu0
      %1502 = vmatprep.mubr.bf16.mxu0 0
      %1503 = vmatmul.mubr.bf16.gmra.mrb[0].mxu0 %v1422
      %v1504 = vpop.f32.mrb[0].mxu0
      %v1505 = vadd.f32 0.0, %v1504
      %v1506 = vpop.f32.mrb[0].mxu0
      %v1507 = vpop.f32.mrb[0].mxu0
      %v1508 = vadd.f32 0.0, %v1507
      %v1509 = vpop.f32.mrb[0].mxu0
      %1510 = vmatprep.mubr.bf16.mxu0 0
      %1511 = vmatmul.mubr.bf16.gmra.mrb[0].mxu0 %v1425
      %v1512 = vpop.f32.mrb[0].mxu0
      %v1513 = vadd.f32 0.0, %v1512
      %v1514 = vpop.f32.mrb[0].mxu0
      %v1515 = vpop.f32.mrb[0].mxu0
      %v1516 = vadd.f32 0.0, %v1515
      %v1517 = vpop.f32.mrb[0].mxu0
      %1518 = vmatprep.mubr.bf16.mxu0 0
      %1519 = vmatmul.mubr.bf16.gmra.mrb[0].mxu0 %v1428
      %v1520 = vpop.f32.mrb[0].mxu0
      %v1521 = vadd.f32 0.0, %v1520
      %v1522 = vpop.f32.mrb[0].mxu0
      %v1523 = vpop.f32.mrb[0].mxu0
      %v1524 = vadd.f32 0.0, %v1523
      %v1525 = vpop.f32.mrb[0].mxu0
      %1526 = vmatprep.mubr.bf16.mxu0 0
      %1527 = vmatmul.mubr.bf16.gmra.mrb[0].mxu0 %v1431
      %v1528 = vpop.f32.mrb[0].mxu0
      %v1529 = vadd.f32 0.0, %v1528
      %v1530 = vpop.f32.mrb[0].mxu0
      %v1531 = vpop.f32.mrb[0].mxu0
      %v1532 = vadd.f32 0.0, %v1531
      %v1533 = vpop.f32.mrb[0].mxu0
      %1534 = vmatprep.mubr.bf16.mxu0 0
      %1535 = vmatmul.mubr.bf16.gmra.mrb[0].mxu0 %v1434
      %v1536 = vpop.f32.mrb[0].mxu0
      %v1537 = vadd.f32 0.0, %v1536
      %v1538 = vpop.f32.mrb[0].mxu0
      %v1539 = vpop.f32.mrb[0].mxu0
      %v1540 = vadd.f32 0.0, %v1539
      %v1541 = vpop.f32.mrb[0].mxu0
      %1542 = vmatprep.mubr.bf16.mxu0 0
      %1543 = vmatmul.mubr.bf16.gmra.mrb[0].mxu0 %v1437
      %v1544 = vpop.f32.mrb[0].mxu0
      %v1545 = vadd.f32 0.0, %v1544
      %v1546 = vpop.f32.mrb[0].mxu0
      %v1547 = vpop.f32.mrb[0].mxu0
      %v1548 = vadd.f32 0.0, %v1547
      %v1549 = vpop.f32.mrb[0].mxu0
      %1550 = vmatprep.mubr.bf16.mxu0 0
      %1551 = vmatmul.mubr.bf16.gmra.mrb[0].mxu0 %v1440
      %v1552 = vpop.f32.mrb[0].mxu0
      %v1553 = vadd.f32 0.0, %v1552
      %v1554 = vpop.f32.mrb[0].mxu0
      %v1555 = vpop.f32.mrb[0].mxu0
      %v1556 = vadd.f32 0.0, %v1555
      %v1557 = vpop.f32.mrb[0].mxu0
      %1558 = vdwg.mxu0
      %v1561 = vunpack.c.l.b16 %v827
      %v1562 = vunpack.c.l.b16 %v828
      %v1563 = vpack.c.b16 %v1562, %v1561
      %v1565 = vsel %vm1411, %v691, 0
      %v1568 = vsel %vm1411, %v706, 0
      %v1571 = vsel %vm1411, %v721, 0
      %v1574 = vsel %vm1411, %v736, 0
      %v1577 = vsel %vm1411, %v751, 0
      %v1580 = vsel %vm1411, %v766, 0
      %v1583 = vsel %vm1411, %v781, 0
      %v1586 = vsel %vm1411, %v796, 0
      %v1589 = vsel %vm1411, %v811, 0
      %v1592 = vsel %vm1411, %v826, 0
      %v1595 = vsel %vm1442, %v1563, 0
      %1597 = vmatprep.subr.bf16.mxu0 0
      %1598 = vmatpush1.bf16.msra.mxu0 %v1595
      %1599 = vmatprep.subr.bf16.mxu0 0
      %1600 = vmatpush1.bf16.msra.mxu0 0
      %1601 = vmatprep.subr.bf16.mxu0 0
      %1602 = vmatpush1.bf16.msra.mxu0 0
      %1603 = vmatprep.subr.bf16.mxu0 0
      %1604 = vmatpush1.bf16.msra.mxu0 0
      %1605 = vmatprep.subr.bf16.mxu0 0
      %1606 = vmatpush1.bf16.msra.mxu0 0
      %1607 = vmatprep.subr.bf16.mxu0 0
      %1608 = vmatpush1.bf16.msra.mxu0 0
      %1609 = vmatprep.subr.bf16.mxu0 0
      %1610 = vmatpush1.bf16.msra.mxu0 0
      %1611 = vmatprep.subr.bf16.mxu0 0
      %1612 = vmatpush1.bf16.msra.mxu0 0
      %1613 = vmatprep.subr.bf16.mxu0 0
      %1614 = vmatpush1.bf16.msra.mxu0 0
      %1615 = vmatprep.subr.bf16.mxu0 0
      %1616 = vmatpush1.bf16.msra.mxu0 0
      %1617 = vmatprep.subr.bf16.mxu0 0
      %1618 = vmatpush1.bf16.msra.mxu0 0
      %1619 = vmatprep.subr.bf16.mxu0 0
      %1620 = vmatpush1.bf16.msra.mxu0 0
      %1621 = vmatprep.subr.bf16.mxu0 0
      %1622 = vmatpush1.bf16.msra.mxu0 0
      %1623 = vmatprep.subr.bf16.mxu0 0
      %1624 = vmatpush1.bf16.msra.mxu0 0
      %1625 = vmatprep.subr.bf16.mxu0 0
      %1626 = vmatpush1.bf16.msra.mxu0 0
      %1627 = vmatprep.subr.bf16.mxu0 0
      %1628 = vmatpush1.bf16.msra.mxu0 0
      %1629 = vmatprep.mubr.bf16.mxu0 0
      %1630 = vmatmul.mubr.bf16.gmra.mrb[0].mxu0 %v1565
      %v1631 = vpop.f32.mrb[0].mxu0
      %v1632 = vadd.f32 %v1481, %v1631
      %v1633 = vpop.f32.mrb[0].mxu0
      %v1634 = vpop.f32.mrb[0].mxu0
      %v1635 = vadd.f32 %v1484, %v1634
      %v1636 = vpop.f32.mrb[0].mxu0
      %1637 = vmatprep.mubr.bf16.mxu0 0
      %1638 = vmatmul.mubr.bf16.gmra.mrb[0].mxu0 %v1568
      %v1639 = vpop.f32.mrb[0].mxu0
      %v1640 = vadd.f32 %v1489, %v1639
      %v1641 = vpop.f32.mrb[0].mxu0
      %v1642 = vpop.f32.mrb[0].mxu0
      %v1643 = vadd.f32 %v1492, %v1642
      %v1644 = vpop.f32.mrb[0].mxu0
      %1645 = vmatprep.mubr.bf16.mxu0 0
      %1646 = vmatmul.mubr.bf16.gmra.mrb[0].mxu0 %v1571
      %v1647 = vpop.f32.mrb[0].mxu0
      %v1648 = vadd.f32 %v1497, %v1647
      %v1649 = vpop.f32.mrb[0].mxu0
      %v1650 = vpop.f32.mrb[0].mxu0
      %v1651 = vadd.f32 %v1500, %v1650
      %v1652 = vpop.f32.mrb[0].mxu0
      %1653 = vmatprep.mubr.bf16.mxu0 0
      %1654 = vmatmul.mubr.bf16.gmra.mrb[0].mxu0 %v1574
      %v1655 = vpop.f32.mrb[0].mxu0
      %v1656 = vadd.f32 %v1505, %v1655
      %v1657 = vpop.f32.mrb[0].mxu0
      %v1658 = vpop.f32.mrb[0].mxu0
      %v1659 = vadd.f32 %v1508, %v1658
      %v1660 = vpop.f32.mrb[0].mxu0
      %1661 = vmatprep.mubr.bf16.mxu0 0
      %1662 = vmatmul.mubr.bf16.gmra.mrb[0].mxu0 %v1577
      %v1663 = vpop.f32.mrb[0].mxu0
      %v1664 = vadd.f32 %v1513, %v1663
      %v1665 = vpop.f32.mrb[0].mxu0
      %v1666 = vpop.f32.mrb[0].mxu0
      %v1667 = vadd.f32 %v1516, %v1666
      %v1668 = vpop.f32.mrb[0].mxu0
      %1669 = vmatprep.mubr.bf16.mxu0 0
      %1670 = vmatmul.mubr.bf16.gmra.mrb[0].mxu0 %v1580
      %v1671 = vpop.f32.mrb[0].mxu0
      %v1672 = vadd.f32 %v1521, %v1671
      %v1673 = vpop.f32.mrb[0].mxu0
      %v1674 = vpop.f32.mrb[0].mxu0
      %v1675 = vadd.f32 %v1524, %v1674
      %v1676 = vpop.f32.mrb[0].mxu0
      %1677 = vmatprep.mubr.bf16.mxu0 0
      %1678 = vmatmul.mubr.bf16.gmra.mrb[0].mxu0 %v1583
      %v1679 = vpop.f32.mrb[0].mxu0
      %v1680 = vadd.f32 %v1529, %v1679
      %v1681 = vpop.f32.mrb[0].mxu0
      %v1682 = vpop.f32.mrb[0].mxu0
      %v1683 = vadd.f32 %v1532, %v1682
      %v1684 = vpop.f32.mrb[0].mxu0
      %1685 = vmatprep.mubr.bf16.mxu0 0
      %1686 = vmatmul.mubr.bf16.gmra.mrb[0].mxu0 %v1586
      %v1687 = vpop.f32.mrb[0].mxu0
      %v1688 = vadd.f32 %v1537, %v1687
      %v1689 = vpop.f32.mrb[0].mxu0
      %v1690 = vpop.f32.mrb[0].mxu0
      %v1691 = vadd.f32 %v1540, %v1690
      %v1692 = vpop.f32.mrb[0].mxu0
      %1693 = vmatprep.mubr.bf16.mxu0 0
      %1694 = vmatmul.mubr.bf16.gmra.mrb[0].mxu0 %v1589
      %v1695 = vpop.f32.mrb[0].mxu0
      %v1696 = vadd.f32 %v1545, %v1695
      %v1697 = vpop.f32.mrb[0].mxu0
      %v1698 = vpop.f32.mrb[0].mxu0
      %v1699 = vadd.f32 %v1548, %v1698
      %v1700 = vpop.f32.mrb[0].mxu0
      %1701 = vmatprep.mubr.bf16.mxu0 0
      %1702 = vmatmul.mubr.bf16.gmra.mrb[0].mxu0 %v1592
      %v1703 = vpop.f32.mrb[0].mxu0
      %v1704 = vadd.f32 %v1553, %v1703
      %v1705 = vpop.f32.mrb[0].mxu0
      %v1706 = vpop.f32.mrb[0].mxu0
      %v1707 = vadd.f32 %v1556, %v1706
      %v1708 = vpop.f32.mrb[0].mxu0
      %1709 = vdwg.mxu0
      %s1710 = sadd.s32 %s249, 2
      %s1711 = smul.u32 %s1710, 4
      %s1712 = smul.addr %s1711, 4
      %s1713 = scalar_lea.vmem %s237, %s1712
      %v1714 = vld [vmem:[%s1713] sm:$0x8]
      %v1715 = vld [vmem:[%s1713 + $0x4] sm:$0xf]
      %v1716 = vld [vmem:[%s1713 + $0x8] sm:$0xf]
      %v1717 = vld [vmem:[%s1713 + $0x10] sm:$0x8]
      %v1718 = vld [vmem:[%s1713 + $0x14] sm:$0xf]
      %v1719 = vld [vmem:[%s1713 + $0x18] sm:$0xf]
      %v1720 = vld [vmem:[%s1713 + $0x20] sm:$0x8]
      %v1721 = vld [vmem:[%s1713 + $0x24] sm:$0xf]
      %v1722 = vld [vmem:[%s1713 + $0x28] sm:$0xf]
      %v1723 = vld [vmem:[%s1713 + $0x30] sm:$0x8]
      %v1724 = vld [vmem:[%s1713 + $0x34] sm:$0xf]
      %v1725 = vld [vmem:[%s1713 + $0x38] sm:$0xf]
      %v1726 = vld [vmem:[%s1713 + $0x40] sm:$0x8]
      %v1727 = vld [vmem:[%s1713 + $0x44] sm:$0xf]
      %v1728 = vld [vmem:[%s1713 + $0x48] sm:$0xf]
      %v1729 = vld [vmem:[%s1713 + $0x50] sm:$0x8]
      %v1730 = vld [vmem:[%s1713 + $0x54] sm:$0xf]
      %v1731 = vld [vmem:[%s1713 + $0x58] sm:$0xf]
      %v1732 = vld [vmem:[%s1713 + $0x60] sm:$0x8]
      %v1733 = vld [vmem:[%s1713 + $0x64] sm:$0xf]
      %v1734 = vld [vmem:[%s1713 + $0x68] sm:$0xf]
      %v1735 = vld [vmem:[%s1713 + $0x70] sm:$0x8]
      %v1736 = vld [vmem:[%s1713 + $0x74] sm:$0xf]
      %v1737 = vld [vmem:[%s1713 + $0x78] sm:$0xf]
      %v1738 = vld [vmem:[%s1713 + $0x80] sm:$0x8]
      %v1739 = vld [vmem:[%s1713 + $0x84] sm:$0xf]
      %v1740 = vld [vmem:[%s1713 + $0x88] sm:$0xf]
      %v1741 = vld [vmem:[%s1713 + $0x90] sm:$0x8]
      %v1742 = vld [vmem:[%s1713 + $0x94] sm:$0xf]
      %v1743 = vld [vmem:[%s1713 + $0x98] sm:$0xf]
      %v1744 = vld [vmem:[%s1713 + $0xc] sm:$0x1]
      %v1745 = vld [vmem:[%s1713 + $0x1c] sm:$0x1]
      %v1746 = vld [vmem:[%s1713 + $0x2c] sm:$0x1]
      %v1747 = vld [vmem:[%s1713 + $0x3c] sm:$0x1]
      %v1748 = vld [vmem:[%s1713 + $0x4c] sm:$0x1]
      %v1749 = vld [vmem:[%s1713 + $0x5c] sm:$0x1]
      %v1750 = vld [vmem:[%s1713 + $0x6c] sm:$0x1]
      %v1751 = vld [vmem:[%s1713 + $0x7c] sm:$0x1]
      %v1752 = vld [vmem:[%s1713 + $0x8c] sm:$0x1]
      %v1753 = vld [vmem:[%s1713 + $0x9c] sm:$0x1]
      %v1784 = vunpack.c.l.b16 %v1714
      %v1785 = vunpack.c.l.b16 %v1715
      %v1786 = vunpack.c.l.b16 %v1716
      %v1787 = vunpack.c.l.b16 %v1717
      %v1788 = vunpack.c.l.b16 %v1718
      %v1789 = vunpack.c.l.b16 %v1719
      %v1790 = vunpack.c.l.b16 %v1720
      %v1791 = vunpack.c.l.b16 %v1721
      %v1792 = vunpack.c.l.b16 %v1722
      %v1793 = vunpack.c.l.b16 %v1723
      %v1794 = vunpack.c.l.b16 %v1724
      %v1795 = vunpack.c.l.b16 %v1725
      %v1796 = vunpack.c.l.b16 %v1726
      %v1797 = vunpack.c.l.b16 %v1727
      %v1798 = vunpack.c.l.b16 %v1728
      %v1799 = vunpack.c.l.b16 %v1729
      %v1800 = vunpack.c.l.b16 %v1730
      %v1801 = vunpack.c.l.b16 %v1731
      %v1802 = vunpack.c.l.b16 %v1732
      %v1803 = vunpack.c.l.b16 %v1733
      %v1804 = vunpack.c.l.b16 %v1734
      %v1805 = vunpack.c.l.b16 %v1735
      %v1806 = vunpack.c.l.b16 %v1736
      %v1807 = vunpack.c.l.b16 %v1737
      %v1808 = vunpack.c.l.b16 %v1738
      %v1809 = vunpack.c.l.b16 %v1739
      %v1810 = vunpack.c.l.b16 %v1740
      %v1811 = vunpack.c.l.b16 %v1741
      %v1812 = vunpack.c.l.b16 %v1742
      %v1813 = vunpack.c.l.b16 %v1743
      %v1814 = vpack.c.b16 %v1785, %v1784
      %v1815 = vpack.c.b16 %v1786, %v1786
      %v1816 = vpack.c.b16 %v1788, %v1787
      %v1817 = vpack.c.b16 %v1789, %v1789
      %v1818 = vpack.c.b16 %v1791, %v1790
      %v1819 = vpack.c.b16 %v1792, %v1792
      %v1820 = vpack.c.b16 %v1794, %v1793
      %v1821 = vpack.c.b16 %v1795, %v1795
      %v1822 = vpack.c.b16 %v1797, %v1796
      %v1823 = vpack.c.b16 %v1798, %v1798
      %v1824 = vpack.c.b16 %v1800, %v1799
      %v1825 = vpack.c.b16 %v1801, %v1801
      %v1826 = vpack.c.b16 %v1803, %v1802
      %v1827 = vpack.c.b16 %v1804, %v1804
      %v1828 = vpack.c.b16 %v1806, %v1805
      %v1829 = vpack.c.b16 %v1807, %v1807
      %v1830 = vpack.c.b16 %v1809, %v1808
      %v1831 = vpack.c.b16 %v1810, %v1810
      %v1832 = vpack.c.b16 %v1812, %v1811
      %v1833 = vpack.c.b16 %v1813, %v1813
      %v1834 = vpack.c.b16 %v1786, %v1785
      %v1835 = vpack.c.b16 %v1789, %v1788
      %v1836 = vpack.c.b16 %v1792, %v1791
      %v1837 = vpack.c.b16 %v1795, %v1794
      %v1838 = vpack.c.b16 %v1798, %v1797
      %v1839 = vpack.c.b16 %v1801, %v1800
      %v1840 = vpack.c.b16 %v1804, %v1803
      %v1841 = vpack.c.b16 %v1807, %v1806
      %v1842 = vpack.c.b16 %v1810, %v1809
      %v1843 = vpack.c.b16 %v1813, %v1812
      %v1845 = vshrl.u32 %v1834, 16
      %v1847 = vrot.slane %v1845, 4
      %v1848 = vshll.u32 %v1834, 16
      %v1850 = vrot.slane %v1848, 5
      %v1851 = vor.u32 %v1847, %v1850
      %v1853 = vshrl.u32 %v1835, 16
      %v1855 = vrot.slane %v1853, 4
      %v1856 = vshll.u32 %v1835, 16
      %v1858 = vrot.slane %v1856, 5
      %v1859 = vor.u32 %v1855, %v1858
      %v1861 = vshrl.u32 %v1836, 16
      %v1863 = vrot.slane %v1861, 4
      %v1864 = vshll.u32 %v1836, 16
      %v1866 = vrot.slane %v1864, 5
      %v1867 = vor.u32 %v1863, %v1866
      %v1869 = vshrl.u32 %v1837, 16
      %v1871 = vrot.slane %v1869, 4
      %v1872 = vshll.u32 %v1837, 16
      %v1874 = vrot.slane %v1872, 5
      %v1875 = vor.u32 %v1871, %v1874
      %v1877 = vshrl.u32 %v1838, 16
      %v1879 = vrot.slane %v1877, 4
      %v1880 = vshll.u32 %v1838, 16
      %v1882 = vrot.slane %v1880, 5
      %v1883 = vor.u32 %v1879, %v1882
      %v1885 = vshrl.u32 %v1839, 16
      %v1887 = vrot.slane %v1885, 4
      %v1888 = vshll.u32 %v1839, 16
      %v1890 = vrot.slane %v1888, 5
      %v1891 = vor.u32 %v1887, %v1890
      %v1893 = vshrl.u32 %v1840, 16
      %v1895 = vrot.slane %v1893, 4
      %v1896 = vshll.u32 %v1840, 16
      %v1898 = vrot.slane %v1896, 5
      %v1899 = vor.u32 %v1895, %v1898
      %v1901 = vshrl.u32 %v1841, 16
      %v1903 = vrot.slane %v1901, 4
      %v1904 = vshll.u32 %v1841, 16
      %v1906 = vrot.slane %v1904, 5
      %v1907 = vor.u32 %v1903, %v1906
      %v1909 = vshrl.u32 %v1842, 16
      %v1911 = vrot.slane %v1909, 4
      %v1912 = vshll.u32 %v1842, 16
      %v1914 = vrot.slane %v1912, 5
      %v1915 = vor.u32 %v1911, %v1914
      %v1917 = vshrl.u32 %v1843, 16
      %v1919 = vrot.slane %v1917, 4
      %v1920 = vshll.u32 %v1843, 16
      %v1922 = vrot.slane %v1920, 5
      %v1923 = vor.u32 %v1919, %v1922
      %1924 = vrot.lane.b32.xlu0 %v1851, 4
      %v1925 = vpop.permute.xlu0 %1924
      %1926 = vrot.lane.b32.xlu0 %v1859, 4
      %v1927 = vpop.permute.xlu0 %1926
      %1928 = vrot.lane.b32.xlu0 %v1867, 4
      %v1929 = vpop.permute.xlu0 %1928
      %1930 = vrot.lane.b32.xlu0 %v1875, 4
      %v1931 = vpop.permute.xlu0 %1930
      %1932 = vrot.lane.b32.xlu0 %v1883, 4
      %v1933 = vpop.permute.xlu0 %1932
      %1934 = vrot.lane.b32.xlu0 %v1891, 4
      %v1935 = vpop.permute.xlu0 %1934
      %1936 = vrot.lane.b32.xlu0 %v1899, 4
      %v1937 = vpop.permute.xlu0 %1936
      %1938 = vrot.lane.b32.xlu0 %v1907, 4
      %v1939 = vpop.permute.xlu0 %1938
      %1940 = vrot.lane.b32.xlu0 %v1915, 4
      %v1941 = vpop.permute.xlu0 %1940
      %1942 = vrot.lane.b32.xlu0 %v1923, 4
      %v1943 = vpop.permute.xlu0 %1942
      %v1954 = vunpack.c.l.b16 %v1744
      %v1955 = vunpack.c.l.b16 %v1745
      %v1956 = vunpack.c.l.b16 %v1746
      %v1957 = vunpack.c.l.b16 %v1747
      %v1958 = vunpack.c.l.b16 %v1748
      %v1959 = vunpack.c.l.b16 %v1749
      %v1960 = vunpack.c.l.b16 %v1750
      %v1961 = vunpack.c.l.b16 %v1751
      %v1962 = vunpack.c.l.b16 %v1752
      %v1963 = vunpack.c.l.b16 %v1753
      %v1964 = vpack.c.b16 %v1954, %v1954
      %v1965 = vpack.c.b16 %v1955, %v1955
      %v1966 = vpack.c.b16 %v1956, %v1956
      %v1967 = vpack.c.b16 %v1957, %v1957
      %v1968 = vpack.c.b16 %v1958, %v1958
      %v1969 = vpack.c.b16 %v1959, %v1959
      %v1970 = vpack.c.b16 %v1960, %v1960
      %v1971 = vpack.c.b16 %v1961, %v1961
      %v1972 = vpack.c.b16 %v1962, %v1962
      %v1973 = vpack.c.b16 %v1963, %v1963
      %v1974 = vrot.slane %v1834, 5
      %v1975 = vrot.slane %v1964, 5
      %v1976 = vsel %vm513, %v1974, %v1975
      %v1977 = vrot.slane %v1835, 5
      %v1978 = vrot.slane %v1965, 5
      %v1979 = vsel %vm513, %v1977, %v1978
      %v1980 = vrot.slane %v1836, 5
      %v1981 = vrot.slane %v1966, 5
      %v1982 = vsel %vm513, %v1980, %v1981
      %v1983 = vrot.slane %v1837, 5
      %v1984 = vrot.slane %v1967, 5
      %v1985 = vsel %vm513, %v1983, %v1984
      %v1986 = vrot.slane %v1838, 5
      %v1987 = vrot.slane %v1968, 5
      %v1988 = vsel %vm513, %v1986, %v1987
      %v1989 = vrot.slane %v1839, 5
      %v1990 = vrot.slane %v1969, 5
      %v1991 = vsel %vm513, %v1989, %v1990
      %v1992 = vrot.slane %v1840, 5
      %v1993 = vrot.slane %v1970, 5
      %v1994 = vsel %vm513, %v1992, %v1993
      %v1995 = vrot.slane %v1841, 5
      %v1996 = vrot.slane %v1971, 5
      %v1997 = vsel %vm513, %v1995, %v1996
      %v1998 = vrot.slane %v1842, 5
      %v1999 = vrot.slane %v1972, 5
      %v2000 = vsel %vm513, %v1998, %v1999
      %v2001 = vrot.slane %v1843, 5
      %v2002 = vrot.slane %v1973, 5
      %v2003 = vsel %vm513, %v2001, %v2002
      %2004 = vrot.lane.b32.xlu0 %v1974, 8
      %v2005 = vpop.permute.xlu0 %2004
      %2006 = vrot.lane.b32.xlu0 %v1976, 8
      %v2007 = vpop.permute.xlu0 %2006
      %2008 = vrot.lane.b32.xlu0 %v1977, 8
      %v2009 = vpop.permute.xlu0 %2008
      %2010 = vrot.lane.b32.xlu0 %v1979, 8
      %v2011 = vpop.permute.xlu0 %2010
      %2012 = vrot.lane.b32.xlu0 %v1980, 8
      %v2013 = vpop.permute.xlu0 %2012
      %2014 = vrot.lane.b32.xlu0 %v1982, 8
      %v2015 = vpop.permute.xlu0 %2014
      %2016 = vrot.lane.b32.xlu0 %v1983, 8
      %v2017 = vpop.permute.xlu0 %2016
      %2018 = vrot.lane.b32.xlu0 %v1985, 8
      %v2019 = vpop.permute.xlu0 %2018
      %2020 = vrot.lane.b32.xlu0 %v1986, 8
      %v2021 = vpop.permute.xlu0 %2020
      %2022 = vrot.lane.b32.xlu0 %v1988, 8
      %v2023 = vpop.permute.xlu0 %2022
      %2024 = vrot.lane.b32.xlu0 %v1989, 8
      %v2025 = vpop.permute.xlu0 %2024
      %2026 = vrot.lane.b32.xlu0 %v1991, 8
      %v2027 = vpop.permute.xlu0 %2026
      %2028 = vrot.lane.b32.xlu0 %v1992, 8
      %v2029 = vpop.permute.xlu0 %2028
      %2030 = vrot.lane.b32.xlu0 %v1994, 8
      %v2031 = vpop.permute.xlu0 %2030
      %2032 = vrot.lane.b32.xlu0 %v1995, 8
      %v2033 = vpop.permute.xlu0 %2032
      %2034 = vrot.lane.b32.xlu0 %v1997, 8
      %v2035 = vpop.permute.xlu0 %2034
      %2036 = vrot.lane.b32.xlu0 %v1998, 8
      %v2037 = vpop.permute.xlu0 %2036
      %2038 = vrot.lane.b32.xlu0 %v2000, 8
      %v2039 = vpop.permute.xlu0 %2038
      %2040 = vrot.lane.b32.xlu0 %v2001, 8
      %v2041 = vpop.permute.xlu0 %2040
      %2042 = vrot.lane.b32.xlu0 %v2003, 8
      %v2043 = vpop.permute.xlu0 %2042
      %v2046 = vsel %vm584, %v1814, %v1925
      %v2048 = vsel %vm584, %v1815, %v1925
      %v2051 = vsel %vm584, %v1816, %v1927
      %v2053 = vsel %vm584, %v1817, %v1927
      %v2056 = vsel %vm584, %v1818, %v1929
      %v2058 = vsel %vm584, %v1819, %v1929
      %v2061 = vsel %vm584, %v1820, %v1931
      %v2063 = vsel %vm584, %v1821, %v1931
      %v2066 = vsel %vm584, %v1822, %v1933
      %v2068 = vsel %vm584, %v1823, %v1933
      %v2071 = vsel %vm584, %v1824, %v1935
      %v2073 = vsel %vm584, %v1825, %v1935
      %v2076 = vsel %vm584, %v1826, %v1937
      %v2078 = vsel %vm584, %v1827, %v1937
      %v2081 = vsel %vm584, %v1828, %v1939
      %v2083 = vsel %vm584, %v1829, %v1939
      %v2086 = vsel %vm584, %v1830, %v1941
      %v2088 = vsel %vm584, %v1831, %v1941
      %v2091 = vsel %vm584, %v1832, %v1943
      %v2093 = vsel %vm584, %v1833, %v1943
      %v2095 = vsel %vm635, %v2046, %v2005
      %v2097 = vsel %vm635, %v2048, %v2007
      %v2099 = vsel %vm635, %v2051, %v2009
      %v2101 = vsel %vm635, %v2053, %v2011
      %v2103 = vsel %vm635, %v2056, %v2013
      %v2105 = vsel %vm635, %v2058, %v2015
      %v2107 = vsel %vm635, %v2061, %v2017
      %v2109 = vsel %vm635, %v2063, %v2019
      %v2111 = vsel %vm635, %v2066, %v2021
      %v2113 = vsel %vm635, %v2068, %v2023
      %v2115 = vsel %vm635, %v2071, %v2025
      %v2117 = vsel %vm635, %v2073, %v2027
      %v2119 = vsel %vm635, %v2076, %v2029
      %v2121 = vsel %vm635, %v2078, %v2031
      %v2123 = vsel %vm635, %v2081, %v2033
      %v2125 = vsel %vm635, %v2083, %v2035
      %v2127 = vsel %vm635, %v2086, %v2037
      %v2129 = vsel %vm635, %v2088, %v2039
      %v2131 = vsel %vm635, %v2091, %v2041
      %v2133 = vsel %vm635, %v2093, %v2043
      %v2134 = vshrl.u32 %v2095, 16
      %v2136 = vrot.slane %v2134, 3
      %v2137 = vshll.u32 %v2095, 16
      %v2139 = vrot.slane %v2137, 4
      %v2140 = vor.u32 %v2136, %v2139
      %v2141 = vshrl.u32 %v2097, 16
      %v2143 = vrot.slane %v2141, 3
      %v2144 = vshll.u32 %v2097, 16
      %v2146 = vrot.slane %v2144, 4
      %v2147 = vor.u32 %v2143, %v2146
      %v2148 = vsel %vm676, %v2140, %v2147
      %v2149 = vshrl.u32 %v2099, 16
      %v2151 = vrot.slane %v2149, 3
      %v2152 = vshll.u32 %v2099, 16
      %v2154 = vrot.slane %v2152, 4
      %v2155 = vor.u32 %v2151, %v2154
      %v2156 = vshrl.u32 %v2101, 16
      %v2158 = vrot.slane %v2156, 3
      %v2159 = vshll.u32 %v2101, 16
      %v2161 = vrot.slane %v2159, 4
      %v2162 = vor.u32 %v2158, %v2161
      %v2163 = vsel %vm676, %v2155, %v2162
      %v2164 = vshrl.u32 %v2103, 16
      %v2166 = vrot.slane %v2164, 3
      %v2167 = vshll.u32 %v2103, 16
      %v2169 = vrot.slane %v2167, 4
      %v2170 = vor.u32 %v2166, %v2169
      %v2171 = vshrl.u32 %v2105, 16
      %v2173 = vrot.slane %v2171, 3
      %v2174 = vshll.u32 %v2105, 16
      %v2176 = vrot.slane %v2174, 4
      %v2177 = vor.u32 %v2173, %v2176
      %v2178 = vsel %vm676, %v2170, %v2177
      %v2179 = vshrl.u32 %v2107, 16
      %v2181 = vrot.slane %v2179, 3
      %v2182 = vshll.u32 %v2107, 16
      %v2184 = vrot.slane %v2182, 4
      %v2185 = vor.u32 %v2181, %v2184
      %v2186 = vshrl.u32 %v2109, 16
      %v2188 = vrot.slane %v2186, 3
      %v2189 = vshll.u32 %v2109, 16
      %v2191 = vrot.slane %v2189, 4
      %v2192 = vor.u32 %v2188, %v2191
      %v2193 = vsel %vm676, %v2185, %v2192
      %v2194 = vshrl.u32 %v2111, 16
      %v2196 = vrot.slane %v2194, 3
      %v2197 = vshll.u32 %v2111, 16
      %v2199 = vrot.slane %v2197, 4
      %v2200 = vor.u32 %v2196, %v2199
      %v2201 = vshrl.u32 %v2113, 16
      %v2203 = vrot.slane %v2201, 3
      %v2204 = vshll.u32 %v2113, 16
      %v2206 = vrot.slane %v2204, 4
      %v2207 = vor.u32 %v2203, %v2206
      %v2208 = vsel %vm676, %v2200, %v2207
      %v2209 = vshrl.u32 %v2115, 16
      %v2211 = vrot.slane %v2209, 3
      %v2212 = vshll.u32 %v2115, 16
      %v2214 = vrot.slane %v2212, 4
      %v2215 = vor.u32 %v2211, %v2214
      %v2216 = vshrl.u32 %v2117, 16
      %v2218 = vrot.slane %v2216, 3
      %v2219 = vshll.u32 %v2117, 16
      %v2221 = vrot.slane %v2219, 4
      %v2222 = vor.u32 %v2218, %v2221
      %v2223 = vsel %vm676, %v2215, %v2222
      %v2224 = vshrl.u32 %v2119, 16
      %v2226 = vrot.slane %v2224, 3
      %v2227 = vshll.u32 %v2119, 16
      %v2229 = vrot.slane %v2227, 4
      %v2230 = vor.u32 %v2226, %v2229
      %v2231 = vshrl.u32 %v2121, 16
      %v2233 = vrot.slane %v2231, 3
      %v2234 = vshll.u32 %v2121, 16
      %v2236 = vrot.slane %v2234, 4
      %v2237 = vor.u32 %v2233, %v2236
      %v2238 = vsel %vm676, %v2230, %v2237
      %v2239 = vshrl.u32 %v2123, 16
      %v2241 = vrot.slane %v2239, 3
      %v2242 = vshll.u32 %v2123, 16
      %v2244 = vrot.slane %v2242, 4
      %v2245 = vor.u32 %v2241, %v2244
      %v2246 = vshrl.u32 %v2125, 16
      %v2248 = vrot.slane %v2246, 3
      %v2249 = vshll.u32 %v2125, 16
      %v2251 = vrot.slane %v2249, 4
      %v2252 = vor.u32 %v2248, %v2251
      %v2253 = vsel %vm676, %v2245, %v2252
      %v2254 = vshrl.u32 %v2127, 16
      %v2256 = vrot.slane %v2254, 3
      %v2257 = vshll.u32 %v2127, 16
      %v2259 = vrot.slane %v2257, 4
      %v2260 = vor.u32 %v2256, %v2259
      %v2261 = vshrl.u32 %v2129, 16
      %v2263 = vrot.slane %v2261, 3
      %v2264 = vshll.u32 %v2129, 16
      %v2266 = vrot.slane %v2264, 4
      %v2267 = vor.u32 %v2263, %v2266
      %v2268 = vsel %vm676, %v2260, %v2267
      %v2269 = vshrl.u32 %v2131, 16
      %v2271 = vrot.slane %v2269, 3
      %v2272 = vshll.u32 %v2131, 16
      %v2274 = vrot.slane %v2272, 4
      %v2275 = vor.u32 %v2271, %v2274
      %v2276 = vshrl.u32 %v2133, 16
      %v2278 = vrot.slane %v2276, 3
      %v2279 = vshll.u32 %v2133, 16
      %v2281 = vrot.slane %v2279, 4
      %v2282 = vor.u32 %v2278, %v2281
      %v2283 = vsel %vm676, %v2275, %v2282
      %s2284 = scalar_lea.vmem %s1, 16
      %v2285 = vld [vmem:[%s2284] sm:$0xf]
      %v2286 = vld [vmem:[%s2284 + $0x4] sm:$0x3]
      %v2289 = vunpack.c.l.b16 %v2285
      %v2290 = vunpack.c.l.b16 %v2286
      %v2291 = vpack.c.b16 %v2290, %v2289
      %v2293 = vsel %vm1411, %v2148, 0
      %v2296 = vsel %vm1411, %v2163, 0
      %v2299 = vsel %vm1411, %v2178, 0
      %v2302 = vsel %vm1411, %v2193, 0
      %v2305 = vsel %vm1411, %v2208, 0
      %v2308 = vsel %vm1411, %v2223, 0
      %v2311 = vsel %vm1411, %v2238, 0
      %v2314 = vsel %vm1411, %v2253, 0
      %v2317 = vsel %vm1411, %v2268, 0
      %v2320 = vsel %vm1411, %v2283, 0
      %v2323 = vsel %vm1442, %v2291, 0
      %2325 = vmatprep.subr.bf16.mxu0 0
      %2326 = vmatpush1.bf16.msra.mxu0 %v2323
      %2327 = vmatprep.subr.bf16.mxu0 0
      %2328 = vmatpush1.bf16.msra.mxu0 0
      %2329 = vmatprep.subr.bf16.mxu0 0
      %2330 = vmatpush1.bf16.msra.mxu0 0
      %2331 = vmatprep.subr.bf16.mxu0 0
      %2332 = vmatpush1.bf16.msra.mxu0 0
      %2333 = vmatprep.subr.bf16.mxu0 0
      %2334 = vmatpush1.bf16.msra.mxu0 0
      %2335 = vmatprep.subr.bf16.mxu0 0
      %2336 = vmatpush1.bf16.msra.mxu0 0
      %2337 = vmatprep.subr.bf16.mxu0 0
      %2338 = vmatpush1.bf16.msra.mxu0 0
      %2339 = vmatprep.subr.bf16.mxu0 0
      %2340 = vmatpush1.bf16.msra.mxu0 0
      %2341 = vmatprep.subr.bf16.mxu0 0
      %2342 = vmatpush1.bf16.msra.mxu0 0
      %2343 = vmatprep.subr.bf16.mxu0 0
      %2344 = vmatpush1.bf16.msra.mxu0 0
      %2345 = vmatprep.subr.bf16.mxu0 0
      %2346 = vmatpush1.bf16.msra.mxu0 0
      %2347 = vmatprep.subr.bf16.mxu0 0
      %2348 = vmatpush1.bf16.msra.mxu0 0
      %2349 = vmatprep.subr.bf16.mxu0 0
      %2350 = vmatpush1.bf16.msra.mxu0 0
      %2351 = vmatprep.subr.bf16.mxu0 0
      %2352 = vmatpush1.bf16.msra.mxu0 0
      %2353 = vmatprep.subr.bf16.mxu0 0
      %2354 = vmatpush1.bf16.msra.mxu0 0
      %2355 = vmatprep.subr.bf16.mxu0 0
      %2356 = vmatpush1.bf16.msra.mxu0 0
      %2357 = vmatprep.mubr.bf16.mxu0 0
      %2358 = vmatmul.mubr.bf16.gmra.mrb[0].mxu0 %v2293
      %v2359 = vpop.f32.mrb[0].mxu0
      %v2360 = vadd.f32 0.0, %v2359
      %v2361 = vpop.f32.mrb[0].mxu0
      %v2362 = vpop.f32.mrb[0].mxu0
      %v2363 = vadd.f32 0.0, %v2362
      %v2364 = vpop.f32.mrb[0].mxu0
      %2365 = vmatprep.mubr.bf16.mxu0 0
      %2366 = vmatmul.mubr.bf16.gmra.mrb[0].mxu0 %v2296
      %v2367 = vpop.f32.mrb[0].mxu0
      %v2368 = vadd.f32 0.0, %v2367
      %v2369 = vpop.f32.mrb[0].mxu0
      %v2370 = vpop.f32.mrb[0].mxu0
      %v2371 = vadd.f32 0.0, %v2370
      %v2372 = vpop.f32.mrb[0].mxu0
      %2373 = vmatprep.mubr.bf16.mxu0 0
      %2374 = vmatmul.mubr.bf16.gmra.mrb[0].mxu0 %v2299
      %v2375 = vpop.f32.mrb[0].mxu0
      %v2376 = vadd.f32 0.0, %v2375
      %v2377 = vpop.f32.mrb[0].mxu0
      %v2378 = vpop.f32.mrb[0].mxu0
      %v2379 = vadd.f32 0.0, %v2378
      %v2380 = vpop.f32.mrb[0].mxu0
      %2381 = vmatprep.mubr.bf16.mxu0 0
      %2382 = vmatmul.mubr.bf16.gmra.mrb[0].mxu0 %v2302
      %v2383 = vpop.f32.mrb[0].mxu0
      %v2384 = vadd.f32 0.0, %v2383
      %v2385 = vpop.f32.mrb[0].mxu0
      %v2386 = vpop.f32.mrb[0].mxu0
      %v2387 = vadd.f32 0.0, %v2386
      %v2388 = vpop.f32.mrb[0].mxu0
      %2389 = vmatprep.mubr.bf16.mxu0 0
      %2390 = vmatmul.mubr.bf16.gmra.mrb[0].mxu0 %v2305
      %v2391 = vpop.f32.mrb[0].mxu0
      %v2392 = vadd.f32 0.0, %v2391
      %v2393 = vpop.f32.mrb[0].mxu0
      %v2394 = vpop.f32.mrb[0].mxu0
      %v2395 = vadd.f32 0.0, %v2394
      %v2396 = vpop.f32.mrb[0].mxu0
      %2397 = vmatprep.mubr.bf16.mxu0 0
      %2398 = vmatmul.mubr.bf16.gmra.mrb[0].mxu0 %v2308
      %v2399 = vpop.f32.mrb[0].mxu0
      %v2400 = vadd.f32 0.0, %v2399
      %v2401 = vpop.f32.mrb[0].mxu0
      %v2402 = vpop.f32.mrb[0].mxu0
      %v2403 = vadd.f32 0.0, %v2402
      %v2404 = vpop.f32.mrb[0].mxu0
      %2405 = vmatprep.mubr.bf16.mxu0 0
      %2406 = vmatmul.mubr.bf16.gmra.mrb[0].mxu0 %v2311
      %v2407 = vpop.f32.mrb[0].mxu0
      %v2408 = vadd.f32 0.0, %v2407
      %v2409 = vpop.f32.mrb[0].mxu0
      %v2410 = vpop.f32.mrb[0].mxu0
      %v2411 = vadd.f32 0.0, %v2410
      %v2412 = vpop.f32.mrb[0].mxu0
      %2413 = vmatprep.mubr.bf16.mxu0 0
      %2414 = vmatmul.mubr.bf16.gmra.mrb[0].mxu0 %v2314
      %v2415 = vpop.f32.mrb[0].mxu0
      %v2416 = vadd.f32 0.0, %v2415
      %v2417 = vpop.f32.mrb[0].mxu0
      %v2418 = vpop.f32.mrb[0].mxu0
      %v2419 = vadd.f32 0.0, %v2418
      %v2420 = vpop.f32.mrb[0].mxu0
      %2421 = vmatprep.mubr.bf16.mxu0 0
      %2422 = vmatmul.mubr.bf16.gmra.mrb[0].mxu0 %v2317
      %v2423 = vpop.f32.mrb[0].mxu0
      %v2424 = vadd.f32 0.0, %v2423
      %v2425 = vpop.f32.mrb[0].mxu0
      %v2426 = vpop.f32.mrb[0].mxu0
      %v2427 = vadd.f32 0.0, %v2426
      %v2428 = vpop.f32.mrb[0].mxu0
      %2429 = vmatprep.mubr.bf16.mxu0 0
      %2430 = vmatmul.mubr.bf16.gmra.mrb[0].mxu0 %v2320
      %v2431 = vpop.f32.mrb[0].mxu0
      %v2432 = vadd.f32 0.0, %v2431
      %v2433 = vpop.f32.mrb[0].mxu0
      %v2434 = vpop.f32.mrb[0].mxu0
      %v2435 = vadd.f32 0.0, %v2434
      %v2436 = vpop.f32.mrb[0].mxu0
      %2437 = vdwg.mxu0
      %v2438 = vadd.f32 %v1632, %v2360
      %v2439 = vadd.f32 %v1635, %v2363
      %v2440 = vadd.f32 %v1640, %v2368
      %v2441 = vadd.f32 %v1643, %v2371
      %v2442 = vadd.f32 %v1648, %v2376
      %v2443 = vadd.f32 %v1651, %v2379
      %v2444 = vadd.f32 %v1656, %v2384
      %v2445 = vadd.f32 %v1659, %v2387
      %v2446 = vadd.f32 %v1664, %v2392
      %v2447 = vadd.f32 %v1667, %v2395
      %v2448 = vadd.f32 %v1672, %v2400
      %v2449 = vadd.f32 %v1675, %v2403
      %v2450 = vadd.f32 %v1680, %v2408
      %v2451 = vadd.f32 %v1683, %v2411
      %v2452 = vadd.f32 %v1688, %v2416
      %v2453 = vadd.f32 %v1691, %v2419
      %v2454 = vadd.f32 %v1696, %v2424
      %v2455 = vadd.f32 %v1699, %v2427
      %v2456 = vadd.f32 %v1704, %v2432
      %v2457 = vadd.f32 %v1707, %v2435
      %v2458 = vld [vmem:[%s2] sm:$0x1]
      %v2460 = vlaneseq
      %v2461 = vshrl.u32 %v2460, 7
      %v2462 = vsub.s32 0, %v2461
      %v2463 = vrot.slane %v2458, %v2462
      %v2465 = vadd.f32 %v2438, %v2463
      %v2466 = vadd.f32 %v2439, %v2463
      %v2467 = vadd.f32 %v2440, %v2463
      %v2468 = vadd.f32 %v2441, %v2463
      %v2469 = vadd.f32 %v2442, %v2463
      %v2470 = vadd.f32 %v2443, %v2463
      %v2471 = vadd.f32 %v2444, %v2463
      %v2472 = vadd.f32 %v2445, %v2463
      %v2473 = vadd.f32 %v2446, %v2463
      %v2474 = vadd.f32 %v2447, %v2463
      %v2475 = vadd.f32 %v2448, %v2463
      %v2476 = vadd.f32 %v2449, %v2463
      %v2477 = vadd.f32 %v2450, %v2463
      %v2478 = vadd.f32 %v2451, %v2463
      %v2479 = vadd.f32 %v2452, %v2463
      %v2480 = vadd.f32 %v2453, %v2463
      %v2481 = vadd.f32 %v2454, %v2463
      %v2482 = vadd.f32 %v2455, %v2463
      %v2483 = vadd.f32 %v2456, %v2463
      %v2484 = vadd.f32 %v2457, %v2463
      %v2485 = vmax.f32 %v2465, 0.0
      %v2486 = vmax.f32 %v2466, 0.0
      %v2487 = vmax.f32 %v2467, 0.0
      %v2488 = vmax.f32 %v2468, 0.0
      %v2489 = vmax.f32 %v2469, 0.0
      %v2490 = vmax.f32 %v2470, 0.0
      %v2491 = vmax.f32 %v2471, 0.0
      %v2492 = vmax.f32 %v2472, 0.0
      %v2493 = vmax.f32 %v2473, 0.0
      %v2494 = vmax.f32 %v2474, 0.0
      %v2495 = vmax.f32 %v2475, 0.0
      %v2496 = vmax.f32 %v2476, 0.0
      %v2497 = vmax.f32 %v2477, 0.0
      %v2498 = vmax.f32 %v2478, 0.0
      %v2499 = vmax.f32 %v2479, 0.0
      %v2500 = vmax.f32 %v2480, 0.0
      %v2501 = vmax.f32 %v2481, 0.0
      %v2502 = vmax.f32 %v2482, 0.0
      %v2503 = vmax.f32 %v2483, 0.0
      %v2504 = vmax.f32 %v2484, 0.0
      %v2505 = vpack.c.bf16 %v2486, %v2485
      %v2506 = vpack.c.bf16 %v2488, %v2487
      %v2507 = vpack.c.bf16 %v2490, %v2489
      %v2508 = vpack.c.bf16 %v2492, %v2491
      %v2509 = vpack.c.bf16 %v2494, %v2493
      %v2510 = vpack.c.bf16 %v2496, %v2495
      %v2511 = vpack.c.bf16 %v2498, %v2497
      %v2512 = vpack.c.bf16 %v2500, %v2499
      %v2513 = vpack.c.bf16 %v2502, %v2501
      %v2514 = vpack.c.bf16 %v2504, %v2503
      %v2525 = vrot.slane %v2505, 4
      %v2526 = vrot.slane %v2506, 4
      %v2527 = vrot.slane %v2507, 4
      %v2528 = vrot.slane %v2508, 4
      %v2529 = vrot.slane %v2509, 4
      %v2530 = vrot.slane %v2510, 4
      %v2531 = vrot.slane %v2511, 4
      %v2532 = vrot.slane %v2512, 4
      %v2533 = vrot.slane %v2513, 4
      %v2534 = vrot.slane %v2514, 4
      %vm2545 = vcmask 64516
      %2546 = vst.msk [vmem:[#allocation2] sm:$0xf0] %vm2545, %v2525
      %vm2547 = vcmask 60416
      %2548 = vst.msk [vmem:[#allocation2 + $0x8] sm:$0xf] %vm2547, %v2525
      %2549 = vst.msk [vmem:[#allocation2 + $0x10] sm:$0xf0] %vm2545, %v2526
      %2550 = vst.msk [vmem:[#allocation2 + $0x18] sm:$0xf] %vm2547, %v2526
      %2551 = vst.msk [vmem:[#allocation2 + $0x20] sm:$0xf0] %vm2545, %v2527
      %2552 = vst.msk [vmem:[#allocation2 + $0x28] sm:$0xf] %vm2547, %v2527
      %2553 = vst.msk [vmem:[#allocation2 + $0x30] sm:$0xf0] %vm2545, %v2528
      %2554 = vst.msk [vmem:[#allocation2 + $0x38] sm:$0xf] %vm2547, %v2528
      %2555 = vst.msk [vmem:[#allocation2 + $0x40] sm:$0xf0] %vm2545, %v2529
      %2556 = vst.msk [vmem:[#allocation2 + $0x48] sm:$0xf] %vm2547, %v2529
      %2557 = vst.msk [vmem:[#allocation2 + $0x50] sm:$0xf0] %vm2545, %v2530
      %2558 = vst.msk [vmem:[#allocation2 + $0x58] sm:$0xf] %vm2547, %v2530
      %2559 = vst.msk [vmem:[#allocation2 + $0x60] sm:$0xf0] %vm2545, %v2531
      %2560 = vst.msk [vmem:[#allocation2 + $0x68] sm:$0xf] %vm2547, %v2531
      %2561 = vst.msk [vmem:[#allocation2 + $0x70] sm:$0xf0] %vm2545, %v2532
      %2562 = vst.msk [vmem:[#allocation2 + $0x78] sm:$0xf] %vm2547, %v2532
      %2563 = vst.msk [vmem:[#allocation2 + $0x80] sm:$0xf0] %vm2545, %v2533
      %2564 = vst.msk [vmem:[#allocation2 + $0x88] sm:$0xf] %vm2547, %v2533
      %2565 = vst.msk [vmem:[#allocation2 + $0x90] sm:$0xf0] %vm2545, %v2534
      %2566 = vst.msk [vmem:[#allocation2 + $0x98] sm:$0xf] %vm2547, %v2534
      %vm2567 = vcmask 60419
      %vm2568 = vsmask.f32 7950
      %vm2569 = vmand %vm2567, %vm2568
      %v2570 = vld [vmem:[#allocation2] sm:$0x8]
      %v2571 = vsel %vm2569, 0, %v2570
      %2572 = vst [vmem:[#allocation2] sm:$0x8] %v2571
      %v2573 = vld [vmem:[#allocation2 + $0x10] sm:$0x8]
      %v2574 = vsel %vm2569, 0, %v2573
      %2575 = vst [vmem:[#allocation2 + $0x10] sm:$0x8] %v2574
      %v2576 = vld [vmem:[#allocation2 + $0x20] sm:$0x8]
      %v2577 = vsel %vm2569, 0, %v2576
      %2578 = vst [vmem:[#allocation2 + $0x20] sm:$0x8] %v2577
      %v2579 = vld [vmem:[#allocation2 + $0x30] sm:$0x8]
      %v2580 = vsel %vm2569, 0, %v2579
      %2581 = vst [vmem:[#allocation2 + $0x30] sm:$0x8] %v2580
      %v2582 = vld [vmem:[#allocation2 + $0x40] sm:$0x8]
      %v2583 = vsel %vm2569, 0, %v2582
      %2584 = vst [vmem:[#allocation2 + $0x40] sm:$0x8] %v2583
      %v2585 = vld [vmem:[#allocation2 + $0x50] sm:$0x8]
      %v2586 = vsel %vm2569, 0, %v2585
      %2587 = vst [vmem:[#allocation2 + $0x50] sm:$0x8] %v2586
      %v2588 = vld [vmem:[#allocation2 + $0x60] sm:$0x8]
      %v2589 = vsel %vm2569, 0, %v2588
      %2590 = vst [vmem:[#allocation2 + $0x60] sm:$0x8] %v2589
      %v2591 = vld [vmem:[#allocation2 + $0x70] sm:$0x8]
      %v2592 = vsel %vm2569, 0, %v2591
      %2593 = vst [vmem:[#allocation2 + $0x70] sm:$0x8] %v2592
      %v2594 = vld [vmem:[#allocation2 + $0x80] sm:$0x8]
      %v2595 = vsel %vm2569, 0, %v2594
      %2596 = vst [vmem:[#allocation2 + $0x80] sm:$0x8] %v2595
      %v2597 = vld [vmem:[#allocation2 + $0x90] sm:$0x8]
      %v2598 = vsel %vm2569, 0, %v2597
      %2599 = vst [vmem:[#allocation2 + $0x90] sm:$0x8] %v2598
      %vm2600 = vcmask 61444
      %vm2601 = vmand %vm2600, %vm676
      %v2602 = vld [vmem:[#allocation2 + $0x8] sm:$0x10]
      %v2603 = vsel %vm2601, 0, %v2602
      %2604 = vst [vmem:[#allocation2 + $0x8] sm:$0x10] %v2603
      %v2605 = vld [vmem:[#allocation2 + $0x18] sm:$0x10]
      %v2606 = vsel %vm2601, 0, %v2605
      %2607 = vst [vmem:[#allocation2 + $0x18] sm:$0x10] %v2606
      %v2608 = vld [vmem:[#allocation2 + $0x28] sm:$0x10]
      %v2609 = vsel %vm2601, 0, %v2608
      %2610 = vst [vmem:[#allocation2 + $0x28] sm:$0x10] %v2609
      %v2611 = vld [vmem:[#allocation2 + $0x38] sm:$0x10]
      %v2612 = vsel %vm2601, 0, %v2611
      %2613 = vst [vmem:[#allocation2 + $0x38] sm:$0x10] %v2612
      %v2614 = vld [vmem:[#allocation2 + $0x48] sm:$0x10]
      %v2615 = vsel %vm2601, 0, %v2614
      %2616 = vst [vmem:[#allocation2 + $0x48] sm:$0x10] %v2615
      %v2617 = vld [vmem:[#allocation2 + $0x58] sm:$0x10]
      %v2618 = vsel %vm2601, 0, %v2617
      %2619 = vst [vmem:[#allocation2 + $0x58] sm:$0x10] %v2618
      %v2620 = vld [vmem:[#allocation2 + $0x68] sm:$0x10]
      %v2621 = vsel %vm2601, 0, %v2620
      %2622 = vst [vmem:[#allocation2 + $0x68] sm:$0x10] %v2621
      %v2623 = vld [vmem:[#allocation2 + $0x78] sm:$0x10]
      %v2624 = vsel %vm2601, 0, %v2623
      %2625 = vst [vmem:[#allocation2 + $0x78] sm:$0x10] %v2624
      %v2626 = vld [vmem:[#allocation2 + $0x88] sm:$0x10]
      %v2627 = vsel %vm2601, 0, %v2626
      %2628 = vst [vmem:[#allocation2 + $0x88] sm:$0x10] %v2627
      %v2629 = vld [vmem:[#allocation2 + $0x98] sm:$0x10]
      %v2630 = vsel %vm2601, 0, %v2629
      %2631 = vst [vmem:[#allocation2 + $0x98] sm:$0x10] %v2630
      %p2632 = scmp.eq.s32.totalorder %s21, 0
      // Predicated region
      $region41: #{input_conv_forward.1} parent=39 // pred_check
        %p2633 = pneg %p2632
      $region42: #{input_conv_forward.1} parent=39 // pred_check_branch
        %2635 = sbr.rel (%p2633) target = $region44
      $region43: #{input_conv_forward.1} parent=39 // pred_region
        %2636 = vst.msk [vmem:[#allocation2] sm:$0xff] %vm635, 0
        %2637 = vst.msk [vmem:[#allocation2 + $0x8] sm:$0xff] %vm635, 0
      $region44: #{input_conv_forward.1} parent=39 // pred_fallthru
        _
      %p2638 = scmp.eq.s32.totalorder %s21, 1
      // Predicated region
      $region45: #{input_conv_forward.1} parent=39 // pred_check
        %p2639 = pneg %p2638
      $region46: #{input_conv_forward.1} parent=39 // pred_check_branch
        %2641 = sbr.rel (%p2639) target = $region48
      $region47: #{input_conv_forward.1} parent=39 // pred_region
        %s2642 = scalar_lea.vmem [#allocation2], 144
        %2643 = vst.msk [vmem:[%s2642] sm:$0xff] %vm635, 0
        %2644 = vst.msk [vmem:[%s2642 + $0x8] sm:$0xff] %vm635, 0
      $region48: #{input_conv_forward.1} parent=39 // pred_fallthru
        _
      %v2645 = vld [vmem:[#allocation2] sm:$0xf8]
      %v2646 = vld [vmem:[#allocation2 + $0x8] sm:$0xf]
      %v2647 = vld [vmem:[#allocation2 + $0x10] sm:$0xf8]
      %v2648 = vld [vmem:[#allocation2 + $0x18] sm:$0xf]
      %v2649 = vld [vmem:[#allocation2 + $0x20] sm:$0xf8]
      %v2650 = vld [vmem:[#allocation2 + $0x28] sm:$0xf]
      %v2651 = vld [vmem:[#allocation2 + $0x30] sm:$0xf8]
      %v2652 = vld [vmem:[#allocation2 + $0x38] sm:$0xf]
      %v2653 = vld [vmem:[#allocation2 + $0x40] sm:$0xf8]
      %v2654 = vld [vmem:[#allocation2 + $0x48] sm:$0xf]
      %v2655 = vld [vmem:[#allocation2 + $0x50] sm:$0xf8]
      %v2656 = vld [vmem:[#allocation2 + $0x58] sm:$0xf]
      %v2657 = vld [vmem:[#allocation2 + $0x60] sm:$0xf8]
      %v2658 = vld [vmem:[#allocation2 + $0x68] sm:$0xf]
      %v2659 = vld [vmem:[#allocation2 + $0x70] sm:$0xf8]
      %v2660 = vld [vmem:[#allocation2 + $0x78] sm:$0xf]
      %v2661 = vld [vmem:[#allocation2] sm:$0xf0]
      %v2662 = vld [vmem:[#allocation2 + $0x10] sm:$0xf0]
      %v2663 = vld [vmem:[#allocation2 + $0x20] sm:$0xf0]
      %v2664 = vld [vmem:[#allocation2 + $0x30] sm:$0xf0]
      %v2665 = vld [vmem:[#allocation2 + $0x40] sm:$0xf0]
      %v2666 = vld [vmem:[#allocation2 + $0x50] sm:$0xf0]
      %v2667 = vld [vmem:[#allocation2 + $0x60] sm:$0xf0]
      %v2668 = vld [vmem:[#allocation2 + $0x70] sm:$0xf0]
      %v2669 = vld [vmem:[#allocation2 + $0x8] sm:$0x1f]
      %v2670 = vld [vmem:[#allocation2 + $0x18] sm:$0x1f]
      %v2671 = vld [vmem:[#allocation2 + $0x28] sm:$0x1f]
      %v2672 = vld [vmem:[#allocation2 + $0x38] sm:$0x1f]
      %v2673 = vld [vmem:[#allocation2 + $0x48] sm:$0x1f]
      %v2674 = vld [vmem:[#allocation2 + $0x58] sm:$0x1f]
      %v2675 = vld [vmem:[#allocation2 + $0x68] sm:$0x1f]
      %v2676 = vld [vmem:[#allocation2 + $0x78] sm:$0x1f]
      %vm2677 = vsmask.f32 7424
      %v2679 = vshrl.u32 %v2661, 16
      %v2681 = vshll.u32 %v2661, 16
      %v2683 = vrot.slane %v2681, 1
      %v2684 = vor.u32 %v2679, %v2683
      %v2686 = vshll.u32 %v2646, 16
      %v2688 = vrot.slane %v2686, 1
      %v2689 = vsel %vm2677, %v2684, %v2688
      %v2690 = vshrl.u32 %v2646, 16
      %v2692 = vor.u32 %v2690, %v2688
      %v2694 = vshrl.u32 %v2662, 16
      %v2696 = vshll.u32 %v2662, 16
      %v2698 = vrot.slane %v2696, 1
      %v2699 = vor.u32 %v2694, %v2698
      %v2701 = vshll.u32 %v2648, 16
      %v2703 = vrot.slane %v2701, 1
      %v2704 = vsel %vm2677, %v2699, %v2703
      %v2705 = vshrl.u32 %v2648, 16
      %v2707 = vor.u32 %v2705, %v2703
      %v2709 = vshrl.u32 %v2663, 16
      %v2711 = vshll.u32 %v2663, 16
      %v2713 = vrot.slane %v2711, 1
      %v2714 = vor.u32 %v2709, %v2713
      %v2716 = vshll.u32 %v2650, 16
      %v2718 = vrot.slane %v2716, 1
      %v2719 = vsel %vm2677, %v2714, %v2718
      %v2720 = vshrl.u32 %v2650, 16
      %v2722 = vor.u32 %v2720, %v2718
      %v2724 = vshrl.u32 %v2664, 16
      %v2726 = vshll.u32 %v2664, 16
      %v2728 = vrot.slane %v2726, 1
      %v2729 = vor.u32 %v2724, %v2728
      %v2731 = vshll.u32 %v2652, 16
      %v2733 = vrot.slane %v2731, 1
      %v2734 = vsel %vm2677, %v2729, %v2733
      %v2735 = vshrl.u32 %v2652, 16
      %v2737 = vor.u32 %v2735, %v2733
      %v2739 = vshrl.u32 %v2665, 16
      %v2741 = vshll.u32 %v2665, 16
      %v2743 = vrot.slane %v2741, 1
      %v2744 = vor.u32 %v2739, %v2743
      %v2746 = vshll.u32 %v2654, 16
      %v2748 = vrot.slane %v2746, 1
      %v2749 = vsel %vm2677, %v2744, %v2748
      %v2750 = vshrl.u32 %v2654, 16
      %v2752 = vor.u32 %v2750, %v2748
      %v2754 = vshrl.u32 %v2666, 16
      %v2756 = vshll.u32 %v2666, 16
      %v2758 = vrot.slane %v2756, 1
      %v2759 = vor.u32 %v2754, %v2758
      %v2761 = vshll.u32 %v2656, 16
      %v2763 = vrot.slane %v2761, 1
      %v2764 = vsel %vm2677, %v2759, %v2763
      %v2765 = vshrl.u32 %v2656, 16
      %v2767 = vor.u32 %v2765, %v2763
      %v2769 = vshrl.u32 %v2667, 16
      %v2771 = vshll.u32 %v2667, 16
      %v2773 = vrot.slane %v2771, 1
      %v2774 = vor.u32 %v2769, %v2773
      %v2776 = vshll.u32 %v2658, 16
      %v2778 = vrot.slane %v2776, 1
      %v2779 = vsel %vm2677, %v2774, %v2778
      %v2780 = vshrl.u32 %v2658, 16
      %v2782 = vor.u32 %v2780, %v2778
      %v2784 = vshrl.u32 %v2668, 16
      %v2786 = vshll.u32 %v2668, 16
      %v2788 = vrot.slane %v2786, 1
      %v2789 = vor.u32 %v2784, %v2788
      %v2791 = vshll.u32 %v2660, 16
      %v2793 = vrot.slane %v2791, 1
      %v2794 = vsel %vm2677, %v2789, %v2793
      %v2795 = vshrl.u32 %v2660, 16
      %v2797 = vor.u32 %v2795, %v2793
      %2798 = vrot.lane.b32.xlu0 %v2689, 8
      %v2799 = vpop.permute.xlu0 %2798
      %2800 = vrot.lane.b32.xlu0 %v2692, 8
      %v2801 = vpop.permute.xlu0 %2800
      %2802 = vrot.lane.b32.xlu0 %v2704, 8
      %v2803 = vpop.permute.xlu0 %2802
      %2804 = vrot.lane.b32.xlu0 %v2707, 8
      %v2805 = vpop.permute.xlu0 %2804
      %2806 = vrot.lane.b32.xlu0 %v2719, 8
      %v2807 = vpop.permute.xlu0 %2806
      %2808 = vrot.lane.b32.xlu0 %v2722, 8
      %v2809 = vpop.permute.xlu0 %2808
      %2810 = vrot.lane.b32.xlu0 %v2734, 8
      %v2811 = vpop.permute.xlu0 %2810
      %2812 = vrot.lane.b32.xlu0 %v2737, 8
      %v2813 = vpop.permute.xlu0 %2812
      %2814 = vrot.lane.b32.xlu0 %v2749, 8
      %v2815 = vpop.permute.xlu0 %2814
      %2816 = vrot.lane.b32.xlu0 %v2752, 8
      %v2817 = vpop.permute.xlu0 %2816
      %2818 = vrot.lane.b32.xlu0 %v2764, 8
      %v2819 = vpop.permute.xlu0 %2818
      %2820 = vrot.lane.b32.xlu0 %v2767, 8
      %v2821 = vpop.permute.xlu0 %2820
      %2822 = vrot.lane.b32.xlu0 %v2779, 8
      %v2823 = vpop.permute.xlu0 %2822
      %2824 = vrot.lane.b32.xlu0 %v2782, 8
      %v2825 = vpop.permute.xlu0 %2824
      %2826 = vrot.lane.b32.xlu0 %v2794, 8
      %v2827 = vpop.permute.xlu0 %2826
      %2828 = vrot.lane.b32.xlu0 %v2797, 8
      %v2829 = vpop.permute.xlu0 %2828
      %vm2846 = vcmask 1046528
      %v2847 = vrot.slane %v2661, 1
      %v2848 = vrot.slane %v2669, 1
      %v2849 = vsel %vm2846, %v2847, %v2848
      %v2850 = vrot.slane %v2662, 1
      %v2851 = vrot.slane %v2670, 1
      %v2852 = vsel %vm2846, %v2850, %v2851
      %v2853 = vrot.slane %v2663, 1
      %v2854 = vrot.slane %v2671, 1
      %v2855 = vsel %vm2846, %v2853, %v2854
      %v2856 = vrot.slane %v2664, 1
      %v2857 = vrot.slane %v2672, 1
      %v2858 = vsel %vm2846, %v2856, %v2857
      %v2859 = vrot.slane %v2665, 1
      %v2860 = vrot.slane %v2673, 1
      %v2861 = vsel %vm2846, %v2859, %v2860
      %v2862 = vrot.slane %v2666, 1
      %v2863 = vrot.slane %v2674, 1
      %v2864 = vsel %vm2846, %v2862, %v2863
      %v2865 = vrot.slane %v2667, 1
      %v2866 = vrot.slane %v2675, 1
      %v2867 = vsel %vm2846, %v2865, %v2866
      %v2868 = vrot.slane %v2668, 1
      %v2869 = vrot.slane %v2676, 1
      %v2870 = vsel %vm2846, %v2868, %v2869
      %2871 = vrot.lane.b32.xlu0 %v2849, 16
      %v2872 = vpop.permute.xlu0 %2871
      %2873 = vrot.lane.b32.xlu0 %v2848, 16
      %v2874 = vpop.permute.xlu0 %2873
      %2875 = vrot.lane.b32.xlu0 %v2852, 16
      %v2876 = vpop.permute.xlu0 %2875
      %2877 = vrot.lane.b32.xlu0 %v2851, 16
      %v2878 = vpop.permute.xlu0 %2877
      %2879 = vrot.lane.b32.xlu0 %v2855, 16
      %v2880 = vpop.permute.xlu0 %2879
      %2881 = vrot.lane.b32.xlu0 %v2854, 16
      %v2882 = vpop.permute.xlu0 %2881
      %2883 = vrot.lane.b32.xlu0 %v2858, 16
      %v2884 = vpop.permute.xlu0 %2883
      %2885 = vrot.lane.b32.xlu0 %v2857, 16
      %v2886 = vpop.permute.xlu0 %2885
      %2887 = vrot.lane.b32.xlu0 %v2861, 16
      %v2888 = vpop.permute.xlu0 %2887
      %2889 = vrot.lane.b32.xlu0 %v2860, 16
      %v2890 = vpop.permute.xlu0 %2889
      %2891 = vrot.lane.b32.xlu0 %v2864, 16
      %v2892 = vpop.permute.xlu0 %2891
      %2893 = vrot.lane.b32.xlu0 %v2863, 16
      %v2894 = vpop.permute.xlu0 %2893
      %2895 = vrot.lane.b32.xlu0 %v2867, 16
      %v2896 = vpop.permute.xlu0 %2895
      %2897 = vrot.lane.b32.xlu0 %v2866, 16
      %v2898 = vpop.permute.xlu0 %2897
      %2899 = vrot.lane.b32.xlu0 %v2870, 16
      %v2900 = vpop.permute.xlu0 %2899
      %2901 = vrot.lane.b32.xlu0 %v2869, 16
      %v2902 = vpop.permute.xlu0 %2901
      %v2905 = vsel %vm635, %v2645, %v2799
      %v2907 = vsel %vm635, %v2646, %v2801
      %v2910 = vsel %vm635, %v2647, %v2803
      %v2912 = vsel %vm635, %v2648, %v2805
      %v2915 = vsel %vm635, %v2649, %v2807
      %v2917 = vsel %vm635, %v2650, %v2809
      %v2920 = vsel %vm635, %v2651, %v2811
      %v2922 = vsel %vm635, %v2652, %v2813
      %v2925 = vsel %vm635, %v2653, %v2815
      %v2927 = vsel %vm635, %v2654, %v2817
      %v2930 = vsel %vm635, %v2655, %v2819
      %v2932 = vsel %vm635, %v2656, %v2821
      %v2935 = vsel %vm635, %v2657, %v2823
      %v2937 = vsel %vm635, %v2658, %v2825
      %v2940 = vsel %vm635, %v2659, %v2827
      %v2942 = vsel %vm635, %v2660, %v2829
      %vm2943 = vcmask 130048
      %v2945 = vsel %vm2943, %v2905, %v2872
      %v2947 = vsel %vm2943, %v2907, %v2874
      %v2949 = vsel %vm2943, %v2910, %v2876
      %v2951 = vsel %vm2943, %v2912, %v2878
      %v2953 = vsel %vm2943, %v2915, %v2880
      %v2955 = vsel %vm2943, %v2917, %v2882
      %v2957 = vsel %vm2943, %v2920, %v2884
      %v2959 = vsel %vm2943, %v2922, %v2886
      %v2961 = vsel %vm2943, %v2925, %v2888
      %v2963 = vsel %vm2943, %v2927, %v2890
      %v2965 = vsel %vm2943, %v2930, %v2892
      %v2967 = vsel %vm2943, %v2932, %v2894
      %v2969 = vsel %vm2943, %v2935, %v2896
      %v2971 = vsel %vm2943, %v2937, %v2898
      %v2973 = vsel %vm2943, %v2940, %v2900
      %v2975 = vsel %vm2943, %v2942, %v2902
      %v2976 = vshrl.u32 %v2945, 16
      %v2978 = vrot.slane %v2976, 3
      %v2979 = vshll.u32 %v2945, 16
      %v2981 = vrot.slane %v2979, 4
      %v2982 = vor.u32 %v2978, %v2981
      %v2983 = vshrl.u32 %v2947, 16
      %v2985 = vrot.slane %v2983, 3
      %v2986 = vshll.u32 %v2947, 16
      %v2988 = vrot.slane %v2986, 4
      %v2989 = vor.u32 %v2985, %v2988
      %v2990 = vsel %vm676, %v2982, %v2989
      %v2991 = vshrl.u32 %v2949, 16
      %v2993 = vrot.slane %v2991, 3
      %v2994 = vshll.u32 %v2949, 16
      %v2996 = vrot.slane %v2994, 4
      %v2997 = vor.u32 %v2993, %v2996
      %v2998 = vshrl.u32 %v2951, 16
      %v3000 = vrot.slane %v2998, 3
      %v3001 = vshll.u32 %v2951, 16
      %v3003 = vrot.slane %v3001, 4
      %v3004 = vor.u32 %v3000, %v3003
      %v3005 = vsel %vm676, %v2997, %v3004
      %v3006 = vshrl.u32 %v2953, 16
      %v3008 = vrot.slane %v3006, 3
      %v3009 = vshll.u32 %v2953, 16
      %v3011 = vrot.slane %v3009, 4
      %v3012 = vor.u32 %v3008, %v3011
      %v3013 = vshrl.u32 %v2955, 16
      %v3015 = vrot.slane %v3013, 3
      %v3016 = vshll.u32 %v2955, 16
      %v3018 = vrot.slane %v3016, 4
      %v3019 = vor.u32 %v3015, %v3018
      %v3020 = vsel %vm676, %v3012, %v3019
      %v3021 = vshrl.u32 %v2957, 16
      %v3023 = vrot.slane %v3021, 3
      %v3024 = vshll.u32 %v2957, 16
      %v3026 = vrot.slane %v3024, 4
      %v3027 = vor.u32 %v3023, %v3026
      %v3028 = vshrl.u32 %v2959, 16
      %v3030 = vrot.slane %v3028, 3
      %v3031 = vshll.u32 %v2959, 16
      %v3033 = vrot.slane %v3031, 4
      %v3034 = vor.u32 %v3030, %v3033
      %v3035 = vsel %vm676, %v3027, %v3034
      %v3036 = vshrl.u32 %v2961, 16
      %v3038 = vrot.slane %v3036, 3
      %v3039 = vshll.u32 %v2961, 16
      %v3041 = vrot.slane %v3039, 4
      %v3042 = vor.u32 %v3038, %v3041
      %v3043 = vshrl.u32 %v2963, 16
      %v3045 = vrot.slane %v3043, 3
      %v3046 = vshll.u32 %v2963, 16
      %v3048 = vrot.slane %v3046, 4
      %v3049 = vor.u32 %v3045, %v3048
      %v3050 = vsel %vm676, %v3042, %v3049
      %v3051 = vshrl.u32 %v2965, 16
      %v3053 = vrot.slane %v3051, 3
      %v3054 = vshll.u32 %v2965, 16
      %v3056 = vrot.slane %v3054, 4
      %v3057 = vor.u32 %v3053, %v3056
      %v3058 = vshrl.u32 %v2967, 16
      %v3060 = vrot.slane %v3058, 3
      %v3061 = vshll.u32 %v2967, 16
      %v3063 = vrot.slane %v3061, 4
      %v3064 = vor.u32 %v3060, %v3063
      %v3065 = vsel %vm676, %v3057, %v3064
      %v3066 = vshrl.u32 %v2969, 16
      %v3068 = vrot.slane %v3066, 3
      %v3069 = vshll.u32 %v2969, 16
      %v3071 = vrot.slane %v3069, 4
      %v3072 = vor.u32 %v3068, %v3071
      %v3073 = vshrl.u32 %v2971, 16
      %v3075 = vrot.slane %v3073, 3
      %v3076 = vshll.u32 %v2971, 16
      %v3078 = vrot.slane %v3076, 4
      %v3079 = vor.u32 %v3075, %v3078
      %v3080 = vsel %vm676, %v3072, %v3079
      %v3081 = vshrl.u32 %v2973, 16
      %v3083 = vrot.slane %v3081, 3
      %v3084 = vshll.u32 %v2973, 16
      %v3086 = vrot.slane %v3084, 4
      %v3087 = vor.u32 %v3083, %v3086
      %v3088 = vshrl.u32 %v2975, 16
      %v3090 = vrot.slane %v3088, 3
      %v3091 = vshll.u32 %v2975, 16
      %v3093 = vrot.slane %v3091, 4
      %v3094 = vor.u32 %v3090, %v3093
      %v3095 = vsel %vm676, %v3087, %v3094
      %v3096 = vld [vmem:[%s3] sm:$0xf]
      %v3097 = vld [vmem:[%s3 + $0x4] sm:$0xf]
      %v3098 = vld [vmem:[%s3 + $0x8] sm:$0xf]
      %s3099 = scalar_lea.vmem [#allocation2], 16
      %v3100 = vld [vmem:[%s3099] sm:$0xf8]
      %v3101 = vld [vmem:[%s3099 + $0x8] sm:$0xf]
      %v3102 = vld [vmem:[%s3099 + $0x10] sm:$0xf8]
      %v3103 = vld [vmem:[%s3099 + $0x18] sm:$0xf]
      %v3104 = vld [vmem:[%s3099 + $0x20] sm:$0xf8]
      %v3105 = vld [vmem:[%s3099 + $0x28] sm:$0xf]
      %v3106 = vld [vmem:[%s3099 + $0x30] sm:$0xf8]
      %v3107 = vld [vmem:[%s3099 + $0x38] sm:$0xf]
      %v3108 = vld [vmem:[%s3099 + $0x40] sm:$0xf8]
      %v3109 = vld [vmem:[%s3099 + $0x48] sm:$0xf]
      %v3110 = vld [vmem:[%s3099 + $0x50] sm:$0xf8]
      %v3111 = vld [vmem:[%s3099 + $0x58] sm:$0xf]
      %v3112 = vld [vmem:[%s3099 + $0x60] sm:$0xf8]
      %v3113 = vld [vmem:[%s3099 + $0x68] sm:$0xf]
      %v3114 = vld [vmem:[%s3099 + $0x70] sm:$0xf8]
      %v3115 = vld [vmem:[%s3099 + $0x78] sm:$0xf]
      %v3116 = vld [vmem:[%s3099] sm:$0xf0]
      %v3117 = vld [vmem:[%s3099 + $0x10] sm:$0xf0]
      %v3118 = vld [vmem:[%s3099 + $0x20] sm:$0xf0]
      %v3119 = vld [vmem:[%s3099 + $0x30] sm:$0xf0]
      %v3120 = vld [vmem:[%s3099 + $0x40] sm:$0xf0]
      %v3121 = vld [vmem:[%s3099 + $0x50] sm:$0xf0]
      %v3122 = vld [vmem:[%s3099 + $0x60] sm:$0xf0]
      %v3123 = vld [vmem:[%s3099 + $0x70] sm:$0xf0]
      %v3124 = vld [vmem:[%s3099 + $0x8] sm:$0x1f]
      %v3125 = vld [vmem:[%s3099 + $0x18] sm:$0x1f]
      %v3126 = vld [vmem:[%s3099 + $0x28] sm:$0x1f]
      %v3127 = vld [vmem:[%s3099 + $0x38] sm:$0x1f]
      %v3128 = vld [vmem:[%s3099 + $0x48] sm:$0x1f]
      %v3129 = vld [vmem:[%s3099 + $0x58] sm:$0x1f]
      %v3130 = vld [vmem:[%s3099 + $0x68] sm:$0x1f]
      %v3131 = vld [vmem:[%s3099 + $0x78] sm:$0x1f]
      %v3133 = vshrl.u32 %v3116, 16
      %v3135 = vshll.u32 %v3116, 16
      %v3137 = vrot.slane %v3135, 1
      %v3138 = vor.u32 %v3133, %v3137
      %v3140 = vshll.u32 %v3101, 16
      %v3142 = vrot.slane %v3140, 1
      %v3143 = vsel %vm2677, %v3138, %v3142
      %v3144 = vshrl.u32 %v3101, 16
      %v3146 = vor.u32 %v3144, %v3142
      %v3148 = vshrl.u32 %v3117, 16
      %v3150 = vshll.u32 %v3117, 16
      %v3152 = vrot.slane %v3150, 1
      %v3153 = vor.u32 %v3148, %v3152
      %v3155 = vshll.u32 %v3103, 16
      %v3157 = vrot.slane %v3155, 1
      %v3158 = vsel %vm2677, %v3153, %v3157
      %v3159 = vshrl.u32 %v3103, 16
      %v3161 = vor.u32 %v3159, %v3157
      %v3163 = vshrl.u32 %v3118, 16
      %v3165 = vshll.u32 %v3118, 16
      %v3167 = vrot.slane %v3165, 1
      %v3168 = vor.u32 %v3163, %v3167
      %v3170 = vshll.u32 %v3105, 16
      %v3172 = vrot.slane %v3170, 1
      %v3173 = vsel %vm2677, %v3168, %v3172
      %v3174 = vshrl.u32 %v3105, 16
      %v3176 = vor.u32 %v3174, %v3172
      %v3178 = vshrl.u32 %v3119, 16
      %v3180 = vshll.u32 %v3119, 16
      %v3182 = vrot.slane %v3180, 1
      %v3183 = vor.u32 %v3178, %v3182
      %v3185 = vshll.u32 %v3107, 16
      %v3187 = vrot.slane %v3185, 1
      %v3188 = vsel %vm2677, %v3183, %v3187
      %v3189 = vshrl.u32 %v3107, 16
      %v3191 = vor.u32 %v3189, %v3187
      %v3193 = vshrl.u32 %v3120, 16
      %v3195 = vshll.u32 %v3120, 16
      %v3197 = vrot.slane %v3195, 1
      %v3198 = vor.u32 %v3193, %v3197
      %v3200 = vshll.u32 %v3109, 16
      %v3202 = vrot.slane %v3200, 1
      %v3203 = vsel %vm2677, %v3198, %v3202
      %v3204 = vshrl.u32 %v3109, 16
      %v3206 = vor.u32 %v3204, %v3202
      %v3208 = vshrl.u32 %v3121, 16
      %v3210 = vshll.u32 %v3121, 16
      %v3212 = vrot.slane %v3210, 1
      %v3213 = vor.u32 %v3208, %v3212
      %v3215 = vshll.u32 %v3111, 16
      %v3217 = vrot.slane %v3215, 1
      %v3218 = vsel %vm2677, %v3213, %v3217
      %v3219 = vshrl.u32 %v3111, 16
      %v3221 = vor.u32 %v3219, %v3217
      %v3223 = vshrl.u32 %v3122, 16
      %v3225 = vshll.u32 %v3122, 16
      %v3227 = vrot.slane %v3225, 1
      %v3228 = vor.u32 %v3223, %v3227
      %v3230 = vshll.u32 %v3113, 16
      %v3232 = vrot.slane %v3230, 1
      %v3233 = vsel %vm2677, %v3228, %v3232
      %v3234 = vshrl.u32 %v3113, 16
      %v3236 = vor.u32 %v3234, %v3232
      %v3238 = vshrl.u32 %v3123, 16
      %v3240 = vshll.u32 %v3123, 16
      %v3242 = vrot.slane %v3240, 1
      %v3243 = vor.u32 %v3238, %v3242
      %v3245 = vshll.u32 %v3115, 16
      %v3247 = vrot.slane %v3245, 1
      %v3248 = vsel %vm2677, %v3243, %v3247
      %v3249 = vshrl.u32 %v3115, 16
      %v3251 = vor.u32 %v3249, %v3247
      %3252 = vrot.lane.b32.xlu0 %v3143, 8
      %v3253 = vpop.permute.xlu0 %3252
      %3254 = vrot.lane.b32.xlu0 %v3146, 8
      %v3255 = vpop.permute.xlu0 %3254
      %3256 = vrot.lane.b32.xlu0 %v3158, 8
      %v3257 = vpop.permute.xlu0 %3256
      %3258 = vrot.lane.b32.xlu0 %v3161, 8
      %v3259 = vpop.permute.xlu0 %3258
      %3260 = vrot.lane.b32.xlu0 %v3173, 8
      %v3261 = vpop.permute.xlu0 %3260
      %3262 = vrot.lane.b32.xlu0 %v3176, 8
      %v3263 = vpop.permute.xlu0 %3262
      %3264 = vrot.lane.b32.xlu0 %v3188, 8
      %v3265 = vpop.permute.xlu0 %3264
      %3266 = vrot.lane.b32.xlu0 %v3191, 8
      %v3267 = vpop.permute.xlu0 %3266
      %3268 = vrot.lane.b32.xlu0 %v3203, 8
      %v3269 = vpop.permute.xlu0 %3268
      %3270 = vrot.lane.b32.xlu0 %v3206, 8
      %v3271 = vpop.permute.xlu0 %3270
      %3272 = vrot.lane.b32.xlu0 %v3218, 8
      %v3273 = vpop.permute.xlu0 %3272
      %3274 = vrot.lane.b32.xlu0 %v3221, 8
      %v3275 = vpop.permute.xlu0 %3274
      %3276 = vrot.lane.b32.xlu0 %v3233, 8
      %v3277 = vpop.permute.xlu0 %3276
      %3278 = vrot.lane.b32.xlu0 %v3236, 8
      %v3279 = vpop.permute.xlu0 %3278
      %3280 = vrot.lane.b32.xlu0 %v3248, 8
      %v3281 = vpop.permute.xlu0 %3280
      %3282 = vrot.lane.b32.xlu0 %v3251, 8
      %v3283 = vpop.permute.xlu0 %3282
      %v3300 = vrot.slane %v3116, 1
      %v3301 = vrot.slane %v3124, 1
      %v3302 = vsel %vm2846, %v3300, %v3301
      %v3303 = vrot.slane %v3117, 1
      %v3304 = vrot.slane %v3125, 1
      %v3305 = vsel %vm2846, %v3303, %v3304
      %v3306 = vrot.slane %v3118, 1
      %v3307 = vrot.slane %v3126, 1
      %v3308 = vsel %vm2846, %v3306, %v3307
      %v3309 = vrot.slane %v3119, 1
      %v3310 = vrot.slane %v3127, 1
      %v3311 = vsel %vm2846, %v3309, %v3310
      %v3312 = vrot.slane %v3120, 1
      %v3313 = vrot.slane %v3128, 1
      %v3314 = vsel %vm2846, %v3312, %v3313
      %v3315 = vrot.slane %v3121, 1
      %v3316 = vrot.slane %v3129, 1
      %v3317 = vsel %vm2846, %v3315, %v3316
      %v3318 = vrot.slane %v3122, 1
      %v3319 = vrot.slane %v3130, 1
      %v3320 = vsel %vm2846, %v3318, %v3319
      %v3321 = vrot.slane %v3123, 1
      %v3322 = vrot.slane %v3131, 1
      %v3323 = vsel %vm2846, %v3321, %v3322
      %3324 = vrot.lane.b32.xlu0 %v3302, 16
      %v3325 = vpop.permute.xlu0 %3324
      %3326 = vrot.lane.b32.xlu0 %v3301, 16
      %v3327 = vpop.permute.xlu0 %3326
      %3328 = vrot.lane.b32.xlu0 %v3305, 16
      %v3329 = vpop.permute.xlu0 %3328
      %3330 = vrot.lane.b32.xlu0 %v3304, 16
      %v3331 = vpop.permute.xlu0 %3330
      %3332 = vrot.lane.b32.xlu0 %v3308, 16
      %v3333 = vpop.permute.xlu0 %3332
      %3334 = vrot.lane.b32.xlu0 %v3307, 16
      %v3335 = vpop.permute.xlu0 %3334
      %3336 = vrot.lane.b32.xlu0 %v3311, 16
      %v3337 = vpop.permute.xlu0 %3336
      %3338 = vrot.lane.b32.xlu0 %v3310, 16
      %v3339 = vpop.permute.xlu0 %3338
      %3340 = vrot.lane.b32.xlu0 %v3314, 16
      %v3341 = vpop.permute.xlu0 %3340
      %3342 = vrot.lane.b32.xlu0 %v3313, 16
      %v3343 = vpop.permute.xlu0 %3342
      %3344 = vrot.lane.b32.xlu0 %v3317, 16
      %v3345 = vpop.permute.xlu0 %3344
      %3346 = vrot.lane.b32.xlu0 %v3316, 16
      %v3347 = vpop.permute.xlu0 %3346
      %3348 = vrot.lane.b32.xlu0 %v3320, 16
      %v3349 = vpop.permute.xlu0 %3348
      %3350 = vrot.lane.b32.xlu0 %v3319, 16
      %v3351 = vpop.permute.xlu0 %3350
      %3352 = vrot.lane.b32.xlu0 %v3323, 16
      %v3353 = vpop.permute.xlu0 %3352
      %3354 = vrot.lane.b32.xlu0 %v3322, 16
      %v3355 = vpop.permute.xlu0 %3354
      %v3358 = vsel %vm635, %v3100, %v3253
      %v3360 = vsel %vm635, %v3101, %v3255
      %v3363 = vsel %vm635, %v3102, %v3257
      %v3365 = vsel %vm635, %v3103, %v3259
      %v3368 = vsel %vm635, %v3104, %v3261
      %v3370 = vsel %vm635, %v3105, %v3263
      %v3373 = vsel %vm635, %v3106, %v3265
      %v3375 = vsel %vm635, %v3107, %v3267
      %v3378 = vsel %vm635, %v3108, %v3269
      %v3380 = vsel %vm635, %v3109, %v3271
      %v3383 = vsel %vm635, %v3110, %v3273
      %v3385 = vsel %vm635, %v3111, %v3275
      %v3388 = vsel %vm635, %v3112, %v3277
      %v3390 = vsel %vm635, %v3113, %v3279
      %v3393 = vsel %vm635, %v3114, %v3281
      %v3395 = vsel %vm635, %v3115, %v3283
      %v3397 = vsel %vm2943, %v3358, %v3325
      %v3399 = vsel %vm2943, %v3360, %v3327
      %v3401 = vsel %vm2943, %v3363, %v3329
      %v3403 = vsel %vm2943, %v3365, %v3331
      %v3405 = vsel %vm2943, %v3368, %v3333
      %v3407 = vsel %vm2943, %v3370, %v3335
      %v3409 = vsel %vm2943, %v3373, %v3337
      %v3411 = vsel %vm2943, %v3375, %v3339
      %v3413 = vsel %vm2943, %v3378, %v3341
      %v3415 = vsel %vm2943, %v3380, %v3343
      %v3417 = vsel %vm2943, %v3383, %v3345
      %v3419 = vsel %vm2943, %v3385, %v3347
      %v3421 = vsel %vm2943, %v3388, %v3349
      %v3423 = vsel %vm2943, %v3390, %v3351
      %v3425 = vsel %vm2943, %v3393, %v3353
      %v3427 = vsel %vm2943, %v3395, %v3355
      %v3428 = vshrl.u32 %v3397, 16
      %v3430 = vrot.slane %v3428, 3
      %v3431 = vshll.u32 %v3397, 16
      %v3433 = vrot.slane %v3431, 4
      %v3434 = vor.u32 %v3430, %v3433
      %v3435 = vshrl.u32 %v3399, 16
      %v3437 = vrot.slane %v3435, 3
      %v3438 = vshll.u32 %v3399, 16
      %v3440 = vrot.slane %v3438, 4
      %v3441 = vor.u32 %v3437, %v3440
      %v3442 = vsel %vm676, %v3434, %v3441
      %v3443 = vshrl.u32 %v3401, 16
      %v3445 = vrot.slane %v3443, 3
      %v3446 = vshll.u32 %v3401, 16
      %v3448 = vrot.slane %v3446, 4
      %v3449 = vor.u32 %v3445, %v3448
      %v3450 = vshrl.u32 %v3403, 16
      %v3452 = vrot.slane %v3450, 3
      %v3453 = vshll.u32 %v3403, 16
      %v3455 = vrot.slane %v3453, 4
      %v3456 = vor.u32 %v3452, %v3455
      %v3457 = vsel %vm676, %v3449, %v3456
      %v3458 = vshrl.u32 %v3405, 16
      %v3460 = vrot.slane %v3458, 3
      %v3461 = vshll.u32 %v3405, 16
      %v3463 = vrot.slane %v3461, 4
      %v3464 = vor.u32 %v3460, %v3463
      %v3465 = vshrl.u32 %v3407, 16
      %v3467 = vrot.slane %v3465, 3
      %v3468 = vshll.u32 %v3407, 16
      %v3470 = vrot.slane %v3468, 4
      %v3471 = vor.u32 %v3467, %v3470
      %v3472 = vsel %vm676, %v3464, %v3471
      %v3473 = vshrl.u32 %v3409, 16
      %v3475 = vrot.slane %v3473, 3
      %v3476 = vshll.u32 %v3409, 16
      %v3478 = vrot.slane %v3476, 4
      %v3479 = vor.u32 %v3475, %v3478
      %v3480 = vshrl.u32 %v3411, 16
      %v3482 = vrot.slane %v3480, 3
      %v3483 = vshll.u32 %v3411, 16
      %v3485 = vrot.slane %v3483, 4
      %v3486 = vor.u32 %v3482, %v3485
      %v3487 = vsel %vm676, %v3479, %v3486
      %v3488 = vshrl.u32 %v3413, 16
      %v3490 = vrot.slane %v3488, 3
      %v3491 = vshll.u32 %v3413, 16
      %v3493 = vrot.slane %v3491, 4
      %v3494 = vor.u32 %v3490, %v3493
      %v3495 = vshrl.u32 %v3415, 16
      %v3497 = vrot.slane %v3495, 3
      %v3498 = vshll.u32 %v3415, 16
      %v3500 = vrot.slane %v3498, 4
      %v3501 = vor.u32 %v3497, %v3500
      %v3502 = vsel %vm676, %v3494, %v3501
      %v3503 = vshrl.u32 %v3417, 16
      %v3505 = vrot.slane %v3503, 3
      %v3506 = vshll.u32 %v3417, 16
      %v3508 = vrot.slane %v3506, 4
      %v3509 = vor.u32 %v3505, %v3508
      %v3510 = vshrl.u32 %v3419, 16
      %v3512 = vrot.slane %v3510, 3
      %v3513 = vshll.u32 %v3419, 16
      %v3515 = vrot.slane %v3513, 4
      %v3516 = vor.u32 %v3512, %v3515
      %v3517 = vsel %vm676, %v3509, %v3516
      %v3518 = vshrl.u32 %v3421, 16
      %v3520 = vrot.slane %v3518, 3
      %v3521 = vshll.u32 %v3421, 16
      %v3523 = vrot.slane %v3521, 4
      %v3524 = vor.u32 %v3520, %v3523
      %v3525 = vshrl.u32 %v3423, 16
      %v3527 = vrot.slane %v3525, 3
      %v3528 = vshll.u32 %v3423, 16
      %v3530 = vrot.slane %v3528, 4
      %v3531 = vor.u32 %v3527, %v3530
      %v3532 = vsel %vm676, %v3524, %v3531
      %v3533 = vshrl.u32 %v3425, 16
      %v3535 = vrot.slane %v3533, 3
      %v3536 = vshll.u32 %v3425, 16
      %v3538 = vrot.slane %v3536, 4
      %v3539 = vor.u32 %v3535, %v3538
      %v3540 = vshrl.u32 %v3427, 16
      %v3542 = vrot.slane %v3540, 3
      %v3543 = vshll.u32 %v3427, 16
      %v3545 = vrot.slane %v3543, 4
      %v3546 = vor.u32 %v3542, %v3545
      %v3547 = vsel %vm676, %v3539, %v3546
      %s3548 = scalar_lea.vmem %s3, 12
      %v3549 = vld [vmem:[%s3548] sm:$0xf]
      %v3550 = vld [vmem:[%s3548 + $0x4] sm:$0xf]
      %v3551 = vld [vmem:[%s3548 + $0x8] sm:$0xf]
      %v3555 = vunpack.c.l.b16 %v3549
      %v3556 = vunpack.c.l.b16 %v3550
      %v3557 = vunpack.c.l.b16 %v3551
      %v3558 = vpack.c.b16 %v3556, %v3555
      %v3559 = vpack.c.b16 %v3557, %v3557
      %vm3561 = vcmask 195584
      %v3563 = vsel %vm3561, %v3442, 0
      %v3566 = vsel %vm3561, %v3457, 0
      %v3569 = vsel %vm3561, %v3472, 0
      %v3572 = vsel %vm3561, %v3487, 0
      %v3575 = vsel %vm3561, %v3502, 0
      %v3578 = vsel %vm3561, %v3517, 0
      %v3581 = vsel %vm3561, %v3532, 0
      %v3584 = vsel %vm3561, %v3547, 0
      %vm3586 = vcmask 1043456
      %v3588 = vsel %vm3586, %v3559, 0
      %3590 = vmatprep.subr.bf16.mxu0 0
      %3591 = vmatpush1.bf16.msra.mxu0 %v3558
      %3592 = vmatprep.subr.bf16.mxu0 0
      %3593 = vmatpush1.bf16.msra.mxu0 %v3588
      %3594 = vmatprep.subr.bf16.mxu0 0
      %3595 = vmatpush1.bf16.msra.mxu0 0
      %3596 = vmatprep.subr.bf16.mxu0 0
      %3597 = vmatpush1.bf16.msra.mxu0 0
      %3598 = vmatprep.subr.bf16.mxu0 0
      %3599 = vmatpush1.bf16.msra.mxu0 0
      %3600 = vmatprep.subr.bf16.mxu0 0
      %3601 = vmatpush1.bf16.msra.mxu0 0
      %3602 = vmatprep.subr.bf16.mxu0 0
      %3603 = vmatpush1.bf16.msra.mxu0 0
      %3604 = vmatprep.subr.bf16.mxu0 0
      %3605 = vmatpush1.bf16.msra.mxu0 0
      %3606 = vmatprep.subr.bf16.mxu0 0
      %3607 = vmatpush1.bf16.msra.mxu0 0
      %3608 = vmatprep.subr.bf16.mxu0 0
      %3609 = vmatpush1.bf16.msra.mxu0 0
      %3610 = vmatprep.subr.bf16.mxu0 0
      %3611 = vmatpush1.bf16.msra.mxu0 0
      %3612 = vmatprep.subr.bf16.mxu0 0
      %3613 = vmatpush1.bf16.msra.mxu0 0
      %3614 = vmatprep.subr.bf16.mxu0 0
      %3615 = vmatpush1.bf16.msra.mxu0 0
      %3616 = vmatprep.subr.bf16.mxu0 0
      %3617 = vmatpush1.bf16.msra.mxu0 0
      %3618 = vmatprep.subr.bf16.mxu0 0
      %3619 = vmatpush1.bf16.msra.mxu0 0
      %3620 = vmatprep.subr.bf16.mxu0 0
      %3621 = vmatpush1.bf16.msra.mxu0 0
      %3622 = vmatprep.mubr.bf16.mxu0 0
      %3623 = vmatmul.mubr.bf16.gmra.mrb[0].mxu0 %v3563
      %v3624 = vpop.f32.mrb[0].mxu0
      %v3625 = vadd.f32 0.0, %v3624
      %v3626 = vpop.f32.mrb[0].mxu0
      %v3627 = vpop.f32.mrb[0].mxu0
      %v3628 = vadd.f32 0.0, %v3627
      %v3629 = vpop.f32.mrb[0].mxu0
      %3630 = vmatprep.mubr.bf16.mxu0 0
      %3631 = vmatmul.mubr.bf16.gmra.mrb[0].mxu0 %v3566
      %v3632 = vpop.f32.mrb[0].mxu0
      %v3633 = vadd.f32 0.0, %v3632
      %v3634 = vpop.f32.mrb[0].mxu0
      %v3635 = vpop.f32.mrb[0].mxu0
      %v3636 = vadd.f32 0.0, %v3635
      %v3637 = vpop.f32.mrb[0].mxu0
      %3638 = vmatprep.mubr.bf16.mxu0 0
      %3639 = vmatmul.mubr.bf16.gmra.mrb[0].mxu0 %v3569
      %v3640 = vpop.f32.mrb[0].mxu0
      %v3641 = vadd.f32 0.0, %v3640
      %v3642 = vpop.f32.mrb[0].mxu0
      %v3643 = vpop.f32.mrb[0].mxu0
      %v3644 = vadd.f32 0.0, %v3643
      %v3645 = vpop.f32.mrb[0].mxu0
      %3646 = vmatprep.mubr.bf16.mxu0 0
      %3647 = vmatmul.mubr.bf16.gmra.mrb[0].mxu0 %v3572
      %v3648 = vpop.f32.mrb[0].mxu0
      %v3649 = vadd.f32 0.0, %v3648
      %v3650 = vpop.f32.mrb[0].mxu0
      %v3651 = vpop.f32.mrb[0].mxu0
      %v3652 = vadd.f32 0.0, %v3651
      %v3653 = vpop.f32.mrb[0].mxu0
      %3654 = vmatprep.mubr.bf16.mxu0 0
      %3655 = vmatmul.mubr.bf16.gmra.mrb[0].mxu0 %v3575
      %v3656 = vpop.f32.mrb[0].mxu0
      %v3657 = vadd.f32 0.0, %v3656
      %v3658 = vpop.f32.mrb[0].mxu0
      %v3659 = vpop.f32.mrb[0].mxu0
      %v3660 = vadd.f32 0.0, %v3659
      %v3661 = vpop.f32.mrb[0].mxu0
      %3662 = vmatprep.mubr.bf16.mxu0 0
      %3663 = vmatmul.mubr.bf16.gmra.mrb[0].mxu0 %v3578
      %v3664 = vpop.f32.mrb[0].mxu0
      %v3665 = vadd.f32 0.0, %v3664
      %v3666 = vpop.f32.mrb[0].mxu0
      %v3667 = vpop.f32.mrb[0].mxu0
      %v3668 = vadd.f32 0.0, %v3667
      %v3669 = vpop.f32.mrb[0].mxu0
      %3670 = vmatprep.mubr.bf16.mxu0 0
      %3671 = vmatmul.mubr.bf16.gmra.mrb[0].mxu0 %v3581
      %v3672 = vpop.f32.mrb[0].mxu0
      %v3673 = vadd.f32 0.0, %v3672
      %v3674 = vpop.f32.mrb[0].mxu0
      %v3675 = vpop.f32.mrb[0].mxu0
      %v3676 = vadd.f32 0.0, %v3675
      %v3677 = vpop.f32.mrb[0].mxu0
      %3678 = vmatprep.mubr.bf16.mxu0 0
      %3679 = vmatmul.mubr.bf16.gmra.mrb[0].mxu0 %v3584
      %v3680 = vpop.f32.mrb[0].mxu0
      %v3681 = vadd.f32 0.0, %v3680
      %v3682 = vpop.f32.mrb[0].mxu0
      %v3683 = vpop.f32.mrb[0].mxu0
      %v3684 = vadd.f32 0.0, %v3683
      %v3685 = vpop.f32.mrb[0].mxu0
      %3686 = vdwg.mxu0
      %v3690 = vunpack.c.l.b16 %v3096
      %v3691 = vunpack.c.l.b16 %v3097
      %v3692 = vunpack.c.l.b16 %v3098
      %v3693 = vpack.c.b16 %v3691, %v3690
      %v3694 = vpack.c.b16 %v3692, %v3692
      %v3697 = vsel %vm3561, %v2990, 0
      %v3700 = vsel %vm3561, %v3005, 0
      %v3703 = vsel %vm3561, %v3020, 0
      %v3706 = vsel %vm3561, %v3035, 0
      %v3709 = vsel %vm3561, %v3050, 0
      %v3712 = vsel %vm3561, %v3065, 0
      %v3715 = vsel %vm3561, %v3080, 0
      %v3718 = vsel %vm3561, %v3095, 0
      %v3721 = vsel %vm3586, %v3694, 0
      %3723 = vmatprep.subr.bf16.mxu0 0
      %3724 = vmatpush1.bf16.msra.mxu0 %v3693
      %3725 = vmatprep.subr.bf16.mxu0 0
      %3726 = vmatpush1.bf16.msra.mxu0 %v3721
      %3727 = vmatprep.subr.bf16.mxu0 0
      %3728 = vmatpush1.bf16.msra.mxu0 0
      %3729 = vmatprep.subr.bf16.mxu0 0
      %3730 = vmatpush1.bf16.msra.mxu0 0
      %3731 = vmatprep.subr.bf16.mxu0 0
      %3732 = vmatpush1.bf16.msra.mxu0 0
      %3733 = vmatprep.subr.bf16.mxu0 0
      %3734 = vmatpush1.bf16.msra.mxu0 0
      %3735 = vmatprep.subr.bf16.mxu0 0
      %3736 = vmatpush1.bf16.msra.mxu0 0
      %3737 = vmatprep.subr.bf16.mxu0 0
      %3738 = vmatpush1.bf16.msra.mxu0 0
      %3739 = vmatprep.subr.bf16.mxu0 0
      %3740 = vmatpush1.bf16.msra.mxu0 0
      %3741 = vmatprep.subr.bf16.mxu0 0
      %3742 = vmatpush1.bf16.msra.mxu0 0
      %3743 = vmatprep.subr.bf16.mxu0 0
      %3744 = vmatpush1.bf16.msra.mxu0 0
      %3745 = vmatprep.subr.bf16.mxu0 0
      %3746 = vmatpush1.bf16.msra.mxu0 0
      %3747 = vmatprep.subr.bf16.mxu0 0
      %3748 = vmatpush1.bf16.msra.mxu0 0
      %3749 = vmatprep.subr.bf16.mxu0 0
      %3750 = vmatpush1.bf16.msra.mxu0 0
      %3751 = vmatprep.subr.bf16.mxu0 0
      %3752 = vmatpush1.bf16.msra.mxu0 0
      %3753 = vmatprep.subr.bf16.mxu0 0
      %3754 = vmatpush1.bf16.msra.mxu0 0
      %3755 = vmatprep.mubr.bf16.mxu0 0
      %3756 = vmatmul.mubr.bf16.gmra.mrb[0].mxu0 %v3697
      %v3757 = vpop.f32.mrb[0].mxu0
      %v3758 = vadd.f32 %v3625, %v3757
      %v3759 = vpop.f32.mrb[0].mxu0
      %v3760 = vpop.f32.mrb[0].mxu0
      %v3761 = vadd.f32 %v3628, %v3760
      %v3762 = vpop.f32.mrb[0].mxu0
      %3763 = vmatprep.mubr.bf16.mxu0 0
      %3764 = vmatmul.mubr.bf16.gmra.mrb[0].mxu0 %v3700
      %v3765 = vpop.f32.mrb[0].mxu0
      %v3766 = vadd.f32 %v3633, %v3765
      %v3767 = vpop.f32.mrb[0].mxu0
      %v3768 = vpop.f32.mrb[0].mxu0
      %v3769 = vadd.f32 %v3636, %v3768
      %v3770 = vpop.f32.mrb[0].mxu0
      %3771 = vmatprep.mubr.bf16.mxu0 0
      %3772 = vmatmul.mubr.bf16.gmra.mrb[0].mxu0 %v3703
      %v3773 = vpop.f32.mrb[0].mxu0
      %v3774 = vadd.f32 %v3641, %v3773
      %v3775 = vpop.f32.mrb[0].mxu0
      %v3776 = vpop.f32.mrb[0].mxu0
      %v3777 = vadd.f32 %v3644, %v3776
      %v3778 = vpop.f32.mrb[0].mxu0
      %3779 = vmatprep.mubr.bf16.mxu0 0
      %3780 = vmatmul.mubr.bf16.gmra.mrb[0].mxu0 %v3706
      %v3781 = vpop.f32.mrb[0].mxu0
      %v3782 = vadd.f32 %v3649, %v3781
      %v3783 = vpop.f32.mrb[0].mxu0
      %v3784 = vpop.f32.mrb[0].mxu0
      %v3785 = vadd.f32 %v3652, %v3784
      %v3786 = vpop.f32.mrb[0].mxu0
      %3787 = vmatprep.mubr.bf16.mxu0 0
      %3788 = vmatmul.mubr.bf16.gmra.mrb[0].mxu0 %v3709
      %v3789 = vpop.f32.mrb[0].mxu0
      %v3790 = vadd.f32 %v3657, %v3789
      %v3791 = vpop.f32.mrb[0].mxu0
      %v3792 = vpop.f32.mrb[0].mxu0
      %v3793 = vadd.f32 %v3660, %v3792
      %v3794 = vpop.f32.mrb[0].mxu0
      %3795 = vmatprep.mubr.bf16.mxu0 0
      %3796 = vmatmul.mubr.bf16.gmra.mrb[0].mxu0 %v3712
      %v3797 = vpop.f32.mrb[0].mxu0
      %v3798 = vadd.f32 %v3665, %v3797
      %v3799 = vpop.f32.mrb[0].mxu0
      %v3800 = vpop.f32.mrb[0].mxu0
      %v3801 = vadd.f32 %v3668, %v3800
      %v3802 = vpop.f32.mrb[0].mxu0
      %3803 = vmatprep.mubr.bf16.mxu0 0
      %3804 = vmatmul.mubr.bf16.gmra.mrb[0].mxu0 %v3715
      %v3805 = vpop.f32.mrb[0].mxu0
      %v3806 = vadd.f32 %v3673, %v3805
      %v3807 = vpop.f32.mrb[0].mxu0
      %v3808 = vpop.f32.mrb[0].mxu0
      %v3809 = vadd.f32 %v3676, %v3808
      %v3810 = vpop.f32.mrb[0].mxu0
      %3811 = vmatprep.mubr.bf16.mxu0 0
      %3812 = vmatmul.mubr.bf16.gmra.mrb[0].mxu0 %v3718
      %v3813 = vpop.f32.mrb[0].mxu0
      %v3814 = vadd.f32 %v3681, %v3813
      %v3815 = vpop.f32.mrb[0].mxu0
      %v3816 = vpop.f32.mrb[0].mxu0
      %v3817 = vadd.f32 %v3684, %v3816
      %v3818 = vpop.f32.mrb[0].mxu0
      %3819 = vdwg.mxu0
      %s3820 = scalar_lea.vmem [#allocation2], 32
      %v3821 = vld [vmem:[%s3820] sm:$0xf8]
      %v3822 = vld [vmem:[%s3820 + $0x8] sm:$0xf]
      %v3823 = vld [vmem:[%s3820 + $0x10] sm:$0xf8]
      %v3824 = vld [vmem:[%s3820 + $0x18] sm:$0xf]
      %v3825 = vld [vmem:[%s3820 + $0x20] sm:$0xf8]
      %v3826 = vld [vmem:[%s3820 + $0x28] sm:$0xf]
      %v3827 = vld [vmem:[%s3820 + $0x30] sm:$0xf8]
      %v3828 = vld [vmem:[%s3820 + $0x38] sm:$0xf]
      %v3829 = vld [vmem:[%s3820 + $0x40] sm:$0xf8]
      %v3830 = vld [vmem:[%s3820 + $0x48] sm:$0xf]
      %v3831 = vld [vmem:[%s3820 + $0x50] sm:$0xf8]
      %v3832 = vld [vmem:[%s3820 + $0x58] sm:$0xf]
      %v3833 = vld [vmem:[%s3820 + $0x60] sm:$0xf8]
      %v3834 = vld [vmem:[%s3820 + $0x68] sm:$0xf]
      %v3835 = vld [vmem:[%s3820 + $0x70] sm:$0xf8]
      %v3836 = vld [vmem:[%s3820 + $0x78] sm:$0xf]
      %v3837 = vld [vmem:[%s3820] sm:$0xf0]
      %v3838 = vld [vmem:[%s3820 + $0x10] sm:$0xf0]
      %v3839 = vld [vmem:[%s3820 + $0x20] sm:$0xf0]
      %v3840 = vld [vmem:[%s3820 + $0x30] sm:$0xf0]
      %v3841 = vld [vmem:[%s3820 + $0x40] sm:$0xf0]
      %v3842 = vld [vmem:[%s3820 + $0x50] sm:$0xf0]
      %v3843 = vld [vmem:[%s3820 + $0x60] sm:$0xf0]
      %v3844 = vld [vmem:[%s3820 + $0x70] sm:$0xf0]
      %v3845 = vld [vmem:[%s3820 + $0x8] sm:$0x1f]
      %v3846 = vld [vmem:[%s3820 + $0x18] sm:$0x1f]
      %v3847 = vld [vmem:[%s3820 + $0x28] sm:$0x1f]
      %v3848 = vld [vmem:[%s3820 + $0x38] sm:$0x1f]
      %v3849 = vld [vmem:[%s3820 + $0x48] sm:$0x1f]
      %v3850 = vld [vmem:[%s3820 + $0x58] sm:$0x1f]
      %v3851 = vld [vmem:[%s3820 + $0x68] sm:$0x1f]
      %v3852 = vld [vmem:[%s3820 + $0x78] sm:$0x1f]
      %v3854 = vshrl.u32 %v3837, 16
      %v3856 = vshll.u32 %v3837, 16
      %v3858 = vrot.slane %v3856, 1
      %v3859 = vor.u32 %v3854, %v3858
      %v3861 = vshll.u32 %v3822, 16
      %v3863 = vrot.slane %v3861, 1
      %v3864 = vsel %vm2677, %v3859, %v3863
      %v3865 = vshrl.u32 %v3822, 16
      %v3867 = vor.u32 %v3865, %v3863
      %v3869 = vshrl.u32 %v3838, 16
      %v3871 = vshll.u32 %v3838, 16
      %v3873 = vrot.slane %v3871, 1
      %v3874 = vor.u32 %v3869, %v3873
      %v3876 = vshll.u32 %v3824, 16
      %v3878 = vrot.slane %v3876, 1
      %v3879 = vsel %vm2677, %v3874, %v3878
      %v3880 = vshrl.u32 %v3824, 16
      %v3882 = vor.u32 %v3880, %v3878
      %v3884 = vshrl.u32 %v3839, 16
      %v3886 = vshll.u32 %v3839, 16
      %v3888 = vrot.slane %v3886, 1
      %v3889 = vor.u32 %v3884, %v3888
      %v3891 = vshll.u32 %v3826, 16
      %v3893 = vrot.slane %v3891, 1
      %v3894 = vsel %vm2677, %v3889, %v3893
      %v3895 = vshrl.u32 %v3826, 16
      %v3897 = vor.u32 %v3895, %v3893
      %v3899 = vshrl.u32 %v3840, 16
      %v3901 = vshll.u32 %v3840, 16
      %v3903 = vrot.slane %v3901, 1
      %v3904 = vor.u32 %v3899, %v3903
      %v3906 = vshll.u32 %v3828, 16
      %v3908 = vrot.slane %v3906, 1
      %v3909 = vsel %vm2677, %v3904, %v3908
      %v3910 = vshrl.u32 %v3828, 16
      %v3912 = vor.u32 %v3910, %v3908
      %v3914 = vshrl.u32 %v3841, 16
      %v3916 = vshll.u32 %v3841, 16
      %v3918 = vrot.slane %v3916, 1
      %v3919 = vor.u32 %v3914, %v3918
      %v3921 = vshll.u32 %v3830, 16
      %v3923 = vrot.slane %v3921, 1
      %v3924 = vsel %vm2677, %v3919, %v3923
      %v3925 = vshrl.u32 %v3830, 16
      %v3927 = vor.u32 %v3925, %v3923
      %v3929 = vshrl.u32 %v3842, 16
      %v3931 = vshll.u32 %v3842, 16
      %v3933 = vrot.slane %v3931, 1
      %v3934 = vor.u32 %v3929, %v3933
      %v3936 = vshll.u32 %v3832, 16
      %v3938 = vrot.slane %v3936, 1
      %v3939 = vsel %vm2677, %v3934, %v3938
      %v3940 = vshrl.u32 %v3832, 16
      %v3942 = vor.u32 %v3940, %v3938
      %v3944 = vshrl.u32 %v3843, 16
      %v3946 = vshll.u32 %v3843, 16
      %v3948 = vrot.slane %v3946, 1
      %v3949 = vor.u32 %v3944, %v3948
      %v3951 = vshll.u32 %v3834, 16
      %v3953 = vrot.slane %v3951, 1
      %v3954 = vsel %vm2677, %v3949, %v3953
      %v3955 = vshrl.u32 %v3834, 16
      %v3957 = vor.u32 %v3955, %v3953
      %v3959 = vshrl.u32 %v3844, 16
      %v3961 = vshll.u32 %v3844, 16
      %v3963 = vrot.slane %v3961, 1
      %v3964 = vor.u32 %v3959, %v3963
      %v3966 = vshll.u32 %v3836, 16
      %v3968 = vrot.slane %v3966, 1
      %v3969 = vsel %vm2677, %v3964, %v3968
      %v3970 = vshrl.u32 %v3836, 16
      %v3972 = vor.u32 %v3970, %v3968
      %3973 = vrot.lane.b32.xlu0 %v3864, 8
      %v3974 = vpop.permute.xlu0 %3973
      %3975 = vrot.lane.b32.xlu0 %v3867, 8
      %v3976 = vpop.permute.xlu0 %3975
      %3977 = vrot.lane.b32.xlu0 %v3879, 8
      %v3978 = vpop.permute.xlu0 %3977
      %3979 = vrot.lane.b32.xlu0 %v3882, 8
      %v3980 = vpop.permute.xlu0 %3979
      %3981 = vrot.lane.b32.xlu0 %v3894, 8
      %v3982 = vpop.permute.xlu0 %3981
      %3983 = vrot.lane.b32.xlu0 %v3897, 8
      %v3984 = vpop.permute.xlu0 %3983
      %3985 = vrot.lane.b32.xlu0 %v3909, 8
      %v3986 = vpop.permute.xlu0 %3985
      %3987 = vrot.lane.b32.xlu0 %v3912, 8
      %v3988 = vpop.permute.xlu0 %3987
      %3989 = vrot.lane.b32.xlu0 %v3924, 8
      %v3990 = vpop.permute.xlu0 %3989
      %3991 = vrot.lane.b32.xlu0 %v3927, 8
      %v3992 = vpop.permute.xlu0 %3991
      %3993 = vrot.lane.b32.xlu0 %v3939, 8
      %v3994 = vpop.permute.xlu0 %3993
      %3995 = vrot.lane.b32.xlu0 %v3942, 8
      %v3996 = vpop.permute.xlu0 %3995
      %3997 = vrot.lane.b32.xlu0 %v3954, 8
      %v3998 = vpop.permute.xlu0 %3997
      %3999 = vrot.lane.b32.xlu0 %v3957, 8
      %v4000 = vpop.permute.xlu0 %3999
      %4001 = vrot.lane.b32.xlu0 %v3969, 8
      %v4002 = vpop.permute.xlu0 %4001
      %4003 = vrot.lane.b32.xlu0 %v3972, 8
      %v4004 = vpop.permute.xlu0 %4003
      %v4021 = vrot.slane %v3837, 1
      %v4022 = vrot.slane %v3845, 1
      %v4023 = vsel %vm2846, %v4021, %v4022
      %v4024 = vrot.slane %v3838, 1
      %v4025 = vrot.slane %v3846, 1
      %v4026 = vsel %vm2846, %v4024, %v4025
      %v4027 = vrot.slane %v3839, 1
      %v4028 = vrot.slane %v3847, 1
      %v4029 = vsel %vm2846, %v4027, %v4028
      %v4030 = vrot.slane %v3840, 1
      %v4031 = vrot.slane %v3848, 1
      %v4032 = vsel %vm2846, %v4030, %v4031
      %v4033 = vrot.slane %v3841, 1
      %v4034 = vrot.slane %v3849, 1
      %v4035 = vsel %vm2846, %v4033, %v4034
      %v4036 = vrot.slane %v3842, 1
      %v4037 = vrot.slane %v3850, 1
      %v4038 = vsel %vm2846, %v4036, %v4037
      %v4039 = vrot.slane %v3843, 1
      %v4040 = vrot.slane %v3851, 1
      %v4041 = vsel %vm2846, %v4039, %v4040
      %v4042 = vrot.slane %v3844, 1
      %v4043 = vrot.slane %v3852, 1
      %v4044 = vsel %vm2846, %v4042, %v4043
      %4045 = vrot.lane.b32.xlu0 %v4023, 16
      %v4046 = vpop.permute.xlu0 %4045
      %4047 = vrot.lane.b32.xlu0 %v4022, 16
      %v4048 = vpop.permute.xlu0 %4047
      %4049 = vrot.lane.b32.xlu0 %v4026, 16
      %v4050 = vpop.permute.xlu0 %4049
      %4051 = vrot.lane.b32.xlu0 %v4025, 16
      %v4052 = vpop.permute.xlu0 %4051
      %4053 = vrot.lane.b32.xlu0 %v4029, 16
      %v4054 = vpop.permute.xlu0 %4053
      %4055 = vrot.lane.b32.xlu0 %v4028, 16
      %v4056 = vpop.permute.xlu0 %4055
      %4057 = vrot.lane.b32.xlu0 %v4032, 16
      %v4058 = vpop.permute.xlu0 %4057
      %4059 = vrot.lane.b32.xlu0 %v4031, 16
      %v4060 = vpop.permute.xlu0 %4059
      %4061 = vrot.lane.b32.xlu0 %v4035, 16
      %v4062 = vpop.permute.xlu0 %4061
      %4063 = vrot.lane.b32.xlu0 %v4034, 16
      %v4064 = vpop.permute.xlu0 %4063
      %4065 = vrot.lane.b32.xlu0 %v4038, 16
      %v4066 = vpop.permute.xlu0 %4065
      %4067 = vrot.lane.b32.xlu0 %v4037, 16
      %v4068 = vpop.permute.xlu0 %4067
      %4069 = vrot.lane.b32.xlu0 %v4041, 16
      %v4070 = vpop.permute.xlu0 %4069
      %4071 = vrot.lane.b32.xlu0 %v4040, 16
      %v4072 = vpop.permute.xlu0 %4071
      %4073 = vrot.lane.b32.xlu0 %v4044, 16
      %v4074 = vpop.permute.xlu0 %4073
      %4075 = vrot.lane.b32.xlu0 %v4043, 16
      %v4076 = vpop.permute.xlu0 %4075
      %v4079 = vsel %vm635, %v3821, %v3974
      %v4081 = vsel %vm635, %v3822, %v3976
      %v4084 = vsel %vm635, %v3823, %v3978
      %v4086 = vsel %vm635, %v3824, %v3980
      %v4089 = vsel %vm635, %v3825, %v3982
      %v4091 = vsel %vm635, %v3826, %v3984
      %v4094 = vsel %vm635, %v3827, %v3986
      %v4096 = vsel %vm635, %v3828, %v3988
      %v4099 = vsel %vm635, %v3829, %v3990
      %v4101 = vsel %vm635, %v3830, %v3992
      %v4104 = vsel %vm635, %v3831, %v3994
      %v4106 = vsel %vm635, %v3832, %v3996
      %v4109 = vsel %vm635, %v3833, %v3998
      %v4111 = vsel %vm635, %v3834, %v4000
      %v4114 = vsel %vm635, %v3835, %v4002
      %v4116 = vsel %vm635, %v3836, %v4004
      %v4118 = vsel %vm2943, %v4079, %v4046
      %v4120 = vsel %vm2943, %v4081, %v4048
      %v4122 = vsel %vm2943, %v4084, %v4050
      %v4124 = vsel %vm2943, %v4086, %v4052
      %v4126 = vsel %vm2943, %v4089, %v4054
      %v4128 = vsel %vm2943, %v4091, %v4056
      %v4130 = vsel %vm2943, %v4094, %v4058
      %v4132 = vsel %vm2943, %v4096, %v4060
      %v4134 = vsel %vm2943, %v4099, %v4062
      %v4136 = vsel %vm2943, %v4101, %v4064
      %v4138 = vsel %vm2943, %v4104, %v4066
      %v4140 = vsel %vm2943, %v4106, %v4068
      %v4142 = vsel %vm2943, %v4109, %v4070
      %v4144 = vsel %vm2943, %v4111, %v4072
      %v4146 = vsel %vm2943, %v4114, %v4074
      %v4148 = vsel %vm2943, %v4116, %v4076
      %v4149 = vshrl.u32 %v4118, 16
      %v4151 = vrot.slane %v4149, 3
      %v4152 = vshll.u32 %v4118, 16
      %v4154 = vrot.slane %v4152, 4
      %v4155 = vor.u32 %v4151, %v4154
      %v4156 = vshrl.u32 %v4120, 16
      %v4158 = vrot.slane %v4156, 3
      %v4159 = vshll.u32 %v4120, 16
      %v4161 = vrot.slane %v4159, 4
      %v4162 = vor.u32 %v4158, %v4161
      %v4163 = vsel %vm676, %v4155, %v4162
      %v4164 = vshrl.u32 %v4122, 16
      %v4166 = vrot.slane %v4164, 3
      %v4167 = vshll.u32 %v4122, 16
      %v4169 = vrot.slane %v4167, 4
      %v4170 = vor.u32 %v4166, %v4169
      %v4171 = vshrl.u32 %v4124, 16
      %v4173 = vrot.slane %v4171, 3
      %v4174 = vshll.u32 %v4124, 16
      %v4176 = vrot.slane %v4174, 4
      %v4177 = vor.u32 %v4173, %v4176
      %v4178 = vsel %vm676, %v4170, %v4177
      %v4179 = vshrl.u32 %v4126, 16
      %v4181 = vrot.slane %v4179, 3
      %v4182 = vshll.u32 %v4126, 16
      %v4184 = vrot.slane %v4182, 4
      %v4185 = vor.u32 %v4181, %v4184
      %v4186 = vshrl.u32 %v4128, 16
      %v4188 = vrot.slane %v4186, 3
      %v4189 = vshll.u32 %v4128, 16
      %v4191 = vrot.slane %v4189, 4
      %v4192 = vor.u32 %v4188, %v4191
      %v4193 = vsel %vm676, %v4185, %v4192
      %v4194 = vshrl.u32 %v4130, 16
      %v4196 = vrot.slane %v4194, 3
      %v4197 = vshll.u32 %v4130, 16
      %v4199 = vrot.slane %v4197, 4
      %v4200 = vor.u32 %v4196, %v4199
      %v4201 = vshrl.u32 %v4132, 16
      %v4203 = vrot.slane %v4201, 3
      %v4204 = vshll.u32 %v4132, 16
      %v4206 = vrot.slane %v4204, 4
      %v4207 = vor.u32 %v4203, %v4206
      %v4208 = vsel %vm676, %v4200, %v4207
      %v4209 = vshrl.u32 %v4134, 16
      %v4211 = vrot.slane %v4209, 3
      %v4212 = vshll.u32 %v4134, 16
      %v4214 = vrot.slane %v4212, 4
      %v4215 = vor.u32 %v4211, %v4214
      %v4216 = vshrl.u32 %v4136, 16
      %v4218 = vrot.slane %v4216, 3
      %v4219 = vshll.u32 %v4136, 16
      %v4221 = vrot.slane %v4219, 4
      %v4222 = vor.u32 %v4218, %v4221
      %v4223 = vsel %vm676, %v4215, %v4222
      %v4224 = vshrl.u32 %v4138, 16
      %v4226 = vrot.slane %v4224, 3
      %v4227 = vshll.u32 %v4138, 16
      %v4229 = vrot.slane %v4227, 4
      %v4230 = vor.u32 %v4226, %v4229
      %v4231 = vshrl.u32 %v4140, 16
      %v4233 = vrot.slane %v4231, 3
      %v4234 = vshll.u32 %v4140, 16
      %v4236 = vrot.slane %v4234, 4
      %v4237 = vor.u32 %v4233, %v4236
      %v4238 = vsel %vm676, %v4230, %v4237
      %v4239 = vshrl.u32 %v4142, 16
      %v4241 = vrot.slane %v4239, 3
      %v4242 = vshll.u32 %v4142, 16
      %v4244 = vrot.slane %v4242, 4
      %v4245 = vor.u32 %v4241, %v4244
      %v4246 = vshrl.u32 %v4144, 16
      %v4248 = vrot.slane %v4246, 3
      %v4249 = vshll.u32 %v4144, 16
      %v4251 = vrot.slane %v4249, 4
      %v4252 = vor.u32 %v4248, %v4251
      %v4253 = vsel %vm676, %v4245, %v4252
      %v4254 = vshrl.u32 %v4146, 16
      %v4256 = vrot.slane %v4254, 3
      %v4257 = vshll.u32 %v4146, 16
      %v4259 = vrot.slane %v4257, 4
      %v4260 = vor.u32 %v4256, %v4259
      %v4261 = vshrl.u32 %v4148, 16
      %v4263 = vrot.slane %v4261, 3
      %v4264 = vshll.u32 %v4148, 16
      %v4266 = vrot.slane %v4264, 4
      %v4267 = vor.u32 %v4263, %v4266
      %v4268 = vsel %vm676, %v4260, %v4267
      %s4269 = scalar_lea.vmem %s3, 24
      %v4270 = vld [vmem:[%s4269] sm:$0xf]
      %v4271 = vld [vmem:[%s4269 + $0x4] sm:$0xf]
      %v4272 = vld [vmem:[%s4269 + $0x8] sm:$0xf]
      %v4276 = vunpack.c.l.b16 %v4270
      %v4277 = vunpack.c.l.b16 %v4271
      %v4278 = vunpack.c.l.b16 %v4272
      %v4279 = vpack.c.b16 %v4277, %v4276
      %v4280 = vpack.c.b16 %v4278, %v4278
      %v4283 = vsel %vm3561, %v4163, 0
      %v4286 = vsel %vm3561, %v4178, 0
      %v4289 = vsel %vm3561, %v4193, 0
      %v4292 = vsel %vm3561, %v4208, 0
      %v4295 = vsel %vm3561, %v4223, 0
      %v4298 = vsel %vm3561, %v4238, 0
      %v4301 = vsel %vm3561, %v4253, 0
      %v4304 = vsel %vm3561, %v4268, 0
      %v4307 = vsel %vm3586, %v4280, 0
      %4309 = vmatprep.subr.bf16.mxu0 0
      %4310 = vmatpush1.bf16.msra.mxu0 %v4279
      %4311 = vmatprep.subr.bf16.mxu0 0
      %4312 = vmatpush1.bf16.msra.mxu0 %v4307
      %4313 = vmatprep.subr.bf16.mxu0 0
      %4314 = vmatpush1.bf16.msra.mxu0 0
      %4315 = vmatprep.subr.bf16.mxu0 0
      %4316 = vmatpush1.bf16.msra.mxu0 0
      %4317 = vmatprep.subr.bf16.mxu0 0
      %4318 = vmatpush1.bf16.msra.mxu0 0
      %4319 = vmatprep.subr.bf16.mxu0 0
      %4320 = vmatpush1.bf16.msra.mxu0 0
      %4321 = vmatprep.subr.bf16.mxu0 0
      %4322 = vmatpush1.bf16.msra.mxu0 0
      %4323 = vmatprep.subr.bf16.mxu0 0
      %4324 = vmatpush1.bf16.msra.mxu0 0
      %4325 = vmatprep.subr.bf16.mxu0 0
      %4326 = vmatpush1.bf16.msra.mxu0 0
      %4327 = vmatprep.subr.bf16.mxu0 0
      %4328 = vmatpush1.bf16.msra.mxu0 0
      %4329 = vmatprep.subr.bf16.mxu0 0
      %4330 = vmatpush1.bf16.msra.mxu0 0
      %4331 = vmatprep.subr.bf16.mxu0 0
      %4332 = vmatpush1.bf16.msra.mxu0 0
      %4333 = vmatprep.subr.bf16.mxu0 0
      %4334 = vmatpush1.bf16.msra.mxu0 0
      %4335 = vmatprep.subr.bf16.mxu0 0
      %4336 = vmatpush1.bf16.msra.mxu0 0
      %4337 = vmatprep.subr.bf16.mxu0 0
      %4338 = vmatpush1.bf16.msra.mxu0 0
      %4339 = vmatprep.subr.bf16.mxu0 0
      %4340 = vmatpush1.bf16.msra.mxu0 0
      %4341 = vmatprep.mubr.bf16.mxu0 0
      %4342 = vmatmul.mubr.bf16.gmra.mrb[0].mxu0 %v4283
      %v4343 = vpop.f32.mrb[0].mxu0
      %v4344 = vadd.f32 0.0, %v4343
      %v4345 = vpop.f32.mrb[0].mxu0
      %v4346 = vpop.f32.mrb[0].mxu0
      %v4347 = vadd.f32 0.0, %v4346
      %v4348 = vpop.f32.mrb[0].mxu0
      %4349 = vmatprep.mubr.bf16.mxu0 0
      %4350 = vmatmul.mubr.bf16.gmra.mrb[0].mxu0 %v4286
      %v4351 = vpop.f32.mrb[0].mxu0
      %v4352 = vadd.f32 0.0, %v4351
      %v4353 = vpop.f32.mrb[0].mxu0
      %v4354 = vpop.f32.mrb[0].mxu0
      %v4355 = vadd.f32 0.0, %v4354
      %v4356 = vpop.f32.mrb[0].mxu0
      %4357 = vmatprep.mubr.bf16.mxu0 0
      %4358 = vmatmul.mubr.bf16.gmra.mrb[0].mxu0 %v4289
      %v4359 = vpop.f32.mrb[0].mxu0
      %v4360 = vadd.f32 0.0, %v4359
      %v4361 = vpop.f32.mrb[0].mxu0
      %v4362 = vpop.f32.mrb[0].mxu0
      %v4363 = vadd.f32 0.0, %v4362
      %v4364 = vpop.f32.mrb[0].mxu0
      %4365 = vmatprep.mubr.bf16.mxu0 0
      %4366 = vmatmul.mubr.bf16.gmra.mrb[0].mxu0 %v4292
      %v4367 = vpop.f32.mrb[0].mxu0
      %v4368 = vadd.f32 0.0, %v4367
      %v4369 = vpop.f32.mrb[0].mxu0
      %v4370 = vpop.f32.mrb[0].mxu0
      %v4371 = vadd.f32 0.0, %v4370
      %v4372 = vpop.f32.mrb[0].mxu0
      %4373 = vmatprep.mubr.bf16.mxu0 0
      %4374 = vmatmul.mubr.bf16.gmra.mrb[0].mxu0 %v4295
      %v4375 = vpop.f32.mrb[0].mxu0
      %v4376 = vadd.f32 0.0, %v4375
      %v4377 = vpop.f32.mrb[0].mxu0
      %v4378 = vpop.f32.mrb[0].mxu0
      %v4379 = vadd.f32 0.0, %v4378
      %v4380 = vpop.f32.mrb[0].mxu0
      %4381 = vmatprep.mubr.bf16.mxu0 0
      %4382 = vmatmul.mubr.bf16.gmra.mrb[0].mxu0 %v4298
      %v4383 = vpop.f32.mrb[0].mxu0
      %v4384 = vadd.f32 0.0, %v4383
      %v4385 = vpop.f32.mrb[0].mxu0
      %v4386 = vpop.f32.mrb[0].mxu0
      %v4387 = vadd.f32 0.0, %v4386
      %v4388 = vpop.f32.mrb[0].mxu0
      %4389 = vmatprep.mubr.bf16.mxu0 0
      %4390 = vmatmul.mubr.bf16.gmra.mrb[0].mxu0 %v4301
      %v4391 = vpop.f32.mrb[0].mxu0
      %v4392 = vadd.f32 0.0, %v4391
      %v4393 = vpop.f32.mrb[0].mxu0
      %v4394 = vpop.f32.mrb[0].mxu0
      %v4395 = vadd.f32 0.0, %v4394
      %v4396 = vpop.f32.mrb[0].mxu0
      %4397 = vmatprep.mubr.bf16.mxu0 0
      %4398 = vmatmul.mubr.bf16.gmra.mrb[0].mxu0 %v4304
      %v4399 = vpop.f32.mrb[0].mxu0
      %v4400 = vadd.f32 0.0, %v4399
      %v4401 = vpop.f32.mrb[0].mxu0
      %v4402 = vpop.f32.mrb[0].mxu0
      %v4403 = vadd.f32 0.0, %v4402
      %v4404 = vpop.f32.mrb[0].mxu0
      %4405 = vdwg.mxu0
      %v4406 = vadd.f32 %v3758, %v4344
      %v4407 = vadd.f32 %v3761, %v4347
      %v4408 = vadd.f32 %v3766, %v4352
      %v4409 = vadd.f32 %v3769, %v4355
      %v4410 = vadd.f32 %v3774, %v4360
      %v4411 = vadd.f32 %v3777, %v4363
      %v4412 = vadd.f32 %v3782, %v4368
      %v4413 = vadd.f32 %v3785, %v4371
      %v4414 = vadd.f32 %v3790, %v4376
      %v4415 = vadd.f32 %v3793, %v4379
      %v4416 = vadd.f32 %v3798, %v4384
      %v4417 = vadd.f32 %v3801, %v4387
      %v4418 = vadd.f32 %v3806, %v4392
      %v4419 = vadd.f32 %v3809, %v4395
      %v4420 = vadd.f32 %v3814, %v4400
      %v4421 = vadd.f32 %v3817, %v4403
      %v4422 = vld [vmem:[%s4] sm:$0x1]
      %v4424 = vlaneseq
      %v4425 = vshrl.u32 %v4424, 7
      %v4426 = vsub.s32 0, %v4425
      %v4427 = vrot.slane %v4422, %v4426
      %v4429 = vadd.f32 %v4406, %v4427
      %v4430 = vadd.f32 %v4407, %v4427
      %v4431 = vadd.f32 %v4408, %v4427
      %v4432 = vadd.f32 %v4409, %v4427
      %v4433 = vadd.f32 %v4410, %v4427
      %v4434 = vadd.f32 %v4411, %v4427
      %v4435 = vadd.f32 %v4412, %v4427
      %v4436 = vadd.f32 %v4413, %v4427
      %v4437 = vadd.f32 %v4414, %v4427
      %v4438 = vadd.f32 %v4415, %v4427
      %v4439 = vadd.f32 %v4416, %v4427
      %v4440 = vadd.f32 %v4417, %v4427
      %v4441 = vadd.f32 %v4418, %v4427
      %v4442 = vadd.f32 %v4419, %v4427
      %v4443 = vadd.f32 %v4420, %v4427
      %v4444 = vadd.f32 %v4421, %v4427
      %v4445 = vmax.f32 %v4429, 0.0
      %v4446 = vmax.f32 %v4430, 0.0
      %v4447 = vmax.f32 %v4431, 0.0
      %v4448 = vmax.f32 %v4432, 0.0
      %v4449 = vmax.f32 %v4433, 0.0
      %v4450 = vmax.f32 %v4434, 0.0
      %v4451 = vmax.f32 %v4435, 0.0
      %v4452 = vmax.f32 %v4436, 0.0
      %v4453 = vmax.f32 %v4437, 0.0
      %v4454 = vmax.f32 %v4438, 0.0
      %v4455 = vmax.f32 %v4439, 0.0
      %v4456 = vmax.f32 %v4440, 0.0
      %v4457 = vmax.f32 %v4441, 0.0
      %v4458 = vmax.f32 %v4442, 0.0
      %v4459 = vmax.f32 %v4443, 0.0
      %v4460 = vmax.f32 %v4444, 0.0
      %v4461 = vpack.c.bf16 %v4446, %v4445
      %v4462 = vpack.c.bf16 %v4448, %v4447
      %v4463 = vpack.c.bf16 %v4450, %v4449
      %v4464 = vpack.c.bf16 %v4452, %v4451
      %v4465 = vpack.c.bf16 %v4454, %v4453
      %v4466 = vpack.c.bf16 %v4456, %v4455
      %v4467 = vpack.c.bf16 %v4458, %v4457
      %v4468 = vpack.c.bf16 %v4460, %v4459
      %v4477 = vunpack.c.l.b16 %v4461
      %v4478 = vunpack.c.h.b16 %v4461
      %v4479 = vunpack.c.l.b16 %v4462
      %v4480 = vunpack.c.h.b16 %v4462
      %v4481 = vunpack.c.l.b16 %v4463
      %v4482 = vunpack.c.h.b16 %v4463
      %v4483 = vunpack.c.l.b16 %v4464
      %v4484 = vunpack.c.h.b16 %v4464
      %v4485 = vunpack.c.l.b16 %v4465
      %v4486 = vunpack.c.h.b16 %v4465
      %v4487 = vunpack.c.l.b16 %v4466
      %v4488 = vunpack.c.h.b16 %v4466
      %v4489 = vunpack.c.l.b16 %v4467
      %v4490 = vunpack.c.h.b16 %v4467
      %v4491 = vunpack.c.l.b16 %v4468
      %v4492 = vunpack.c.h.b16 %v4468
      %v4493 = vpack.c.b16 %v4477, %v4477
      %v4494 = vpack.c.b16 %v4478, %v4478
      %v4495 = vpack.c.b16 %v4479, %v4479
      %v4496 = vpack.c.b16 %v4480, %v4480
      %v4497 = vpack.c.b16 %v4481, %v4481
      %v4498 = vpack.c.b16 %v4482, %v4482
      %v4499 = vpack.c.b16 %v4483, %v4483
      %v4500 = vpack.c.b16 %v4484, %v4484
      %v4501 = vpack.c.b16 %v4485, %v4485
      %v4502 = vpack.c.b16 %v4486, %v4486
      %v4503 = vpack.c.b16 %v4487, %v4487
      %v4504 = vpack.c.b16 %v4488, %v4488
      %v4505 = vpack.c.b16 %v4489, %v4489
      %v4506 = vpack.c.b16 %v4490, %v4490
      %v4507 = vpack.c.b16 %v4491, %v4491
      %v4508 = vpack.c.b16 %v4492, %v4492
      %4525 = vst.msk [vmem:[%s246] sm:$0xf] %vm2547, %v4493
      %4526 = vst.msk [vmem:[%s246 + $0x4] sm:$0xf] %vm2547, %v4494
      %4527 = vst.msk [vmem:[%s246 + $0x8] sm:$0xf] %vm2547, %v4495
      %4528 = vst.msk [vmem:[%s246 + $0xc] sm:$0xf] %vm2547, %v4496
      %4529 = vst.msk [vmem:[%s246 + $0x10] sm:$0xf] %vm2547, %v4497
      %4530 = vst.msk [vmem:[%s246 + $0x14] sm:$0xf] %vm2547, %v4498
      %4531 = vst.msk [vmem:[%s246 + $0x18] sm:$0xf] %vm2547, %v4499
      %4532 = vst.msk [vmem:[%s246 + $0x1c] sm:$0xf] %vm2547, %v4500
      %4533 = vst.msk [vmem:[%s246 + $0x20] sm:$0xf] %vm2547, %v4501
      %4534 = vst.msk [vmem:[%s246 + $0x24] sm:$0xf] %vm2547, %v4502
      %4535 = vst.msk [vmem:[%s246 + $0x28] sm:$0xf] %vm2547, %v4503
      %4536 = vst.msk [vmem:[%s246 + $0x2c] sm:$0xf] %vm2547, %v4504
      %4537 = vst.msk [vmem:[%s246 + $0x30] sm:$0xf] %vm2547, %v4505
      %4538 = vst.msk [vmem:[%s246 + $0x34] sm:$0xf] %vm2547, %v4506
      %4539 = vst.msk [vmem:[%s246 + $0x38] sm:$0xf] %vm2547, %v4507
      %4540 = vst.msk [vmem:[%s246 + $0x3c] sm:$0xf] %vm2547, %v4508
      %s4541 = smul.u32 16, %s21
      %p4542 = scmp.lt.s32.totalorder %s20, 1
      %s4543 = scalar_select %p4542, %s20, 1
      %p4544 = scmp.lt.s32.totalorder %s4541, 31
      %s4545 = scalar_select %p4544, %s4541, 31
      %s4546 = smul.addr %s4543, 32
      %s4547 = sadd.s32 %s4545, %s4546
      %s4548 = smul.addr %s4547, 4
      %s4549 = scalar_lea.vmem %s5, %s4548
      // Predicated region
      $region49: #{input_conv_forward.1} parent=39 // pred_check
        %p4550 = pneg %p158
      $region50: #{input_conv_forward.1} parent=39 // pred_check_branch
        %4552 = sbr.rel (%p4550) target = $region52
      $region51: #{input_conv_forward.1} parent=39 // pred_region
        %s4553 = smul.u32 16, %s21
      $region52: #{input_conv_forward.1} parent=39 // pred_fallthru
        _
    $region40: #{input_conv_forward.1} parent=5 // pred_fallthru
      _
    %p4554 = scmp.le.s32.totalorder 2, %s11
    // Predicated region
    $region53: #{input_conv_forward.1} parent=5 // pred_check
      %p4555 = pneg %p4554
    $region54: #{input_conv_forward.1} parent=5 // pred_check_branch
      %4557 = sbr.rel (%p4555) target = $region56
    $region55: #{input_conv_forward.1} parent=5 // pred_region
      %s4558 = ssub.s32 %s11, 2
      // Predicated region
      $region57: #{input_conv_forward.1} parent=55 // pred_check
        %p4559 = pneg %p164
      $region58: #{input_conv_forward.1} parent=55 // pred_check_branch
        %4561 = sbr.rel (%p4559) target = $region60
      $region59: #{input_conv_forward.1} parent=55 // pred_region
        %s4562 = smul.u32 16, %s23
        %p4563 = scmp.lt.s32.totalorder %s22, 1
        %s4564 = scalar_select %p4563, %s22, 1
        %p4565 = scmp.lt.s32.totalorder %s4562, 31
        %s4566 = scalar_select %p4565, %s4562, 31
        %s4567 = smul.addr %s4564, 32
        %s4568 = sadd.s32 %s4566, %s4567
        %s4569 = smul.addr %s4568, 4
        %s4570 = scalar_lea.vmem %s5, %s4569
      $region60: #{input_conv_forward.1} parent=55 // pred_fallthru
        _
    $region56: #{input_conv_forward.1} parent=5 // pred_fallthru
      _
  $region6: #{input_conv_forward.1} parent=0 // loop_footer
    %s15 = sadd.s32 1, %s11
  $region7: #{input_conv_forward.1} parent=0 // loop_footer_branch
    %10 = sbr.rel target = $region3
  $region8: #{input_conv_forward.1} parent=0 // loop_exit
    _

</llo_original>
